<compile_context>
chip_gen: v7x
topology: tpu7x:2x2x1
jax: 0.10.0
libtpu: 0.0.40
codegen_flags: <defaults>
</compile_context>

<pallas_src>
import math

import jax
import jax.numpy as jnp
from jax.experimental import pallas as pl
from jax.experimental.pallas import tpu as pltpu


def _round_up(a, m):
    return ((a + m - 1) // m) * m


def model1_kernel(xcT_ref,                   # (8, BB*L)    bf16  conv1 taps (tap axis on sublanes)
                  w1_ref,                    # (8, 32)      f32   conv1 weight (tap, out)
                  w2_ref,                    # (96, 64)     bf16  conv2 (3 taps stacked on K)
                  w3_ref,                    # (192, 128)   bf16  conv3
                  wfc1_ref,                  # (128, 512)   bf16
                  wfc2_ref,                  # (512, NCP)   bf16  lane-padded classifier
                  st_ref,                    # (2, 384)     f32   BN scale(row0)/shift(row1)
                  b_ref,                     # (1, 512+NCP) f32   [bfc1 | bfc2]
                  out_ref):                  # (BB, NCP)    f32
    BL = xcT_ref.shape[1]
    BB, NCP = out_ref.shape
    L = BL // BB
    C1 = w1_ref.shape[1]                     # 32
    C2 = w2_ref.shape[1]                     # 64
    C3 = w3_ref.shape[1]                     # 128
    H = wfc1_ref.shape[1]                    # 512
    f32, bf16 = jnp.float32, jnp.bfloat16

    # folded BN scale/shift; each layer lives in its own 128-lane block
    s1 = st_ref[0:1, 0:C1]
    t1 = st_ref[1:2, 0:C1]
    s2 = st_ref[0:1, 128:128 + C2]
    t2 = st_ref[1:2, 128:128 + C2]
    s3 = st_ref[0:1, 256:256 + C3]           # 1/L of the mean pool folded in here
    t3 = st_ref[1:2, 256:256 + C3]
    bfc1 = b_ref[:, 0:H]
    bfc2 = b_ref[:, H:H + NCP]

    # position of each flattened row inside its own sequence -> halo masks for
    # the cross-batch roll (taps that would cross a batch boundary are zeroed)
    pos = jax.lax.broadcasted_iota(jnp.int32, (BB, L, 1), 1).reshape(BL, 1)
    not_first = pos != 0
    not_last = pos != (L - 1)

    def taps3(h):
        """(BL, C) f32 -> (BL, 3C) bf16: [x[i-1], x[i], x[i+1]] with zero halos."""
        prev = jnp.where(not_first, pltpu.roll(h, shift=1, axis=0), 0.0)
        nxt = jnp.where(not_last, pltpu.roll(h, shift=BL - 1, axis=0), 0.0)
        return jnp.concatenate([prev, h, nxt], axis=1).astype(bf16)

    # ---- conv1 (k=5, pad=2): transposed-LHS matmul contracting the 8-row tap
    #      axis; rows 5..7 of xcT and w1 are zero so they contribute nothing ----
    h1 = jax.lax.dot_general(
        xcT_ref[...].astype(f32), w1_ref[...],
        dimension_numbers=(((0,), (0,)), ((), ())),
        preferred_element_type=f32)                          # (BL, 32)
    h1 = jnp.maximum(h1 * s1 + t1, 0.0)

    # ---- conv2 (k=3, pad=1) + BN2 + ReLU : single K=96 matmul ----
    h2 = jnp.dot(taps3(h1), w2_ref[...], preferred_element_type=f32)
    h2 = jnp.maximum(h2 * s2 + t2, 0.0)                      # (BL, 64)

    # ---- conv3 (k=3, pad=1) + BN3 + ReLU : single K=192 matmul ----
    h3 = jnp.dot(taps3(h2), w3_ref[...], preferred_element_type=f32)
    h3 = jnp.maximum(h3 * s3 + t3, 0.0)                      # (BL, 128)

    # ---- adaptive average pool to length 1 (1/L already folded into s3/t3) ----
    pooled = jnp.sum(h3.reshape(BB, L, C3), axis=1)          # (BB, 128)

    # ---- fc1 + L2 normalization (torch F.normalize, p=2, dim=1, eps=1e-12) ----
    z = jnp.dot(pooled.astype(bf16), wfc1_ref[...],
                preferred_element_type=f32) + bfc1
    ss = jnp.sum(z * z, axis=1, keepdims=True)
    z = z * jax.lax.rsqrt(jnp.maximum(ss, 1e-24))            # 1/max(||z||, 1e-12)

    # Dropout(p=0.25) is identity in eval mode.
    # ---- fc2 (lane-padded classifier) ----
    out_ref[...] = jnp.dot(z.astype(bf16), wfc2_ref[...],
                           preferred_element_type=f32) + bfc2


def model1_forward(x_ncl, params, *, target_rows=4096):
    """x_ncl: (B, 1, L) float32 (PyTorch NCW layout) -> (B, num_classes) f32."""
    B, _, L = x_ncl.shape
    nc = params["wfc2"].shape[1]
    ncp = _round_up(nc, 128)                  # lane-dense classifier width

    # ---- batch tile: big enough (BB*L ~ target_rows) to amortize per-step
    #      pipeline overhead and MXU weight pushes; aligned so the lane-blocked
    #      conv1 input stays (8,128)-tileable when nb > 1 ----
    bb = max(8, target_rows // max(L, 1))
    need = 128 // math.gcd(L, 128)            # BB*L must be a multiple of 128
    align = 8 * need // math.gcd(8, need)     # lcm(8, need)
    bb = _round_up(bb, align)
    if B <= bb:
        BB, nb = _round_up(B, 8), 1           # single step: blocks == full dims
    else:
        BB = bb
        nb = -(-B // BB)
    B_pad = nb * BB

    # ---- conv1 taps: 5 shifted copies stacked on SUBLANES (padded to 8),
    #      flattened (batch, seq) lane-dense, bf16 on the wire ----
    x = x_ncl[:, 0, :].astype(jnp.float32)                           # (B, L)
    if B_pad != B:
        x = jnp.pad(x, ((0, B_pad - B), (0, 0)))
    x_pad = jnp.pad(x, ((0, 0), (2, 2)))                             # (B_pad, L+4)
    xcT = jnp.stack([x_pad[:, k:k + L] for k in range(5)], axis=0)   # (5, B_pad, L)
    xcT = jnp.pad(xcT.reshape(5, B_pad * L), ((0, 3), (0, 0)))       # (8, B_pad*L)
    xcT = xcT.astype(jnp.bfloat16)

    # ---- pack BN scale/shift into one (2, 384) array; fold 1/L into layer 3
    #      (valid: relu(a/L) == relu(a)/L for L > 0) ----
    def st_block(s, t, scale=1.0):
        blk = jnp.concatenate([s, t], axis=0) * scale                # (2, C)
        return jnp.pad(blk, ((0, 0), (0, 128 - blk.shape[1])))
    st_all = jnp.concatenate(
        [st_block(params["s1"], params["t1"]),
         st_block(params["s2"], params["t2"]),
         st_block(params["s3"], params["t3"], 1.0 / L)], axis=1)     # (2, 384)

    # ---- lane-pad classifier, merge fc biases ----
    wfc2 = jnp.pad(params["wfc2"], ((0, 0), (0, ncp - nc)))
    bfc2 = jnp.pad(params["bfc2"], ((0, 0), (0, ncp - nc)))
    bias_all = jnp.concatenate([params["bfc1"], bfc2], axis=1)       # (1, 512+ncp)

    bf16 = jnp.bfloat16
    w1 = jnp.pad(params["w1"], ((0, 3), (0, 0)))                     # (8, 32) f32
    w2 = params["w2"].reshape(-1, params["w2"].shape[-1]).astype(bf16)   # (96, 64)
    w3 = params["w3"].reshape(-1, params["w3"].shape[-1]).astype(bf16)   # (192, 128)
    wfc1 = params["wfc1"].astype(bf16)                               # (128, 512)
    wfc2 = wfc2.astype(bf16)                                         # (512, ncp)

    # advisory cost estimate so XLA can schedule the host-side glue around us
    flops = (2 * B_pad * L * (8 * 32 + 96 * 64 + 192 * 128)
             + 2 * B_pad * (128 * 512 + 512 * ncp))
    bytes_accessed = (xcT.size * 2 + w1.size * 4 + w2.size * 2 + w3.size * 2
                      + wfc1.size * 2 + wfc2.size * 2 + st_all.size * 4
                      + bias_all.size * 4 + B_pad * ncp * 4)
    cost = pl.CostEstimate(flops=int(flops), transcendentals=int(B_pad),
                           bytes_accessed=int(bytes_accessed))

    full = lambda a: pl.BlockSpec(a.shape, lambda i: (0,) * a.ndim)
    out = pl.pallas_call(
        model1_kernel,
        out_shape=jax.ShapeDtypeStruct((B_pad, ncp), jnp.float32),
        grid=(nb,),
        in_specs=[
            pl.BlockSpec((8, BB * L), lambda i: (0, i)),   # conv1 taps, blocked over batch
            full(w1), full(w2), full(w3), full(wfc1), full(wfc2),
            full(st_all), full(bias_all),
        ],
        out_specs=pl.BlockSpec((BB, ncp), lambda i: (i, 0)),
        compiler_params=pltpu.CompilerParams(
            dimension_semantics=("parallel",),
            vmem_limit_bytes=32 * 1024 * 1024),
        cost_estimate=cost,
    )(xcT, w1, w2, w3, wfc1, wfc2, st_all, bias_all)
    return out[:B, :nc]


def make_params(key, num_classes=10, eps=1e-5):
    """Deterministic synthetic parameters.  Conv bias + eval-mode BatchNorm
    (gamma, beta, running_mean, running_var) folded into scale/shift."""
    ks = jax.random.split(key, 32)

    def fold_bn(conv_b, gamma, beta, mean, var):
        inv = gamma / jnp.sqrt(var + eps)
        scale = inv
        shift = beta - mean * inv + conv_b * inv
        return scale.reshape(1, -1), shift.reshape(1, -1)

    def bn_stats(k, c):
        k0, k1, k2, k3 = jax.random.split(k, 4)
        gamma = 1.0 + 0.1 * jax.random.normal(k0, (c,), jnp.float32)
        beta = 0.1 * jax.random.normal(k1, (c,), jnp.float32)
        mean = 0.1 * jax.random.normal(k2, (c,), jnp.float32)
        var = 1.0 + 0.2 * jax.random.uniform(k3, (c,), jnp.float32)
        return gamma, beta, mean, var

    p = {}
    # conv1: torch weight (32, 1, 5) -> kernel layout (tap, out) = (5, 32)
    p["w1"] = 0.2 * jax.random.normal(ks[0], (5, 32), jnp.float32)
    b1 = 0.1 * jax.random.normal(ks[1], (32,), jnp.float32)
    p["s1"], p["t1"] = fold_bn(b1, *bn_stats(ks[2], 32))

    # conv2: torch weight (64, 32, 3) -> (tap, in, out) = (3, 32, 64)
    p["w2"] = 0.1 * jax.random.normal(ks[3], (3, 32, 64), jnp.float32)
    b2 = 0.1 * jax.random.normal(ks[4], (64,), jnp.float32)
    p["s2"], p["t2"] = fold_bn(b2, *bn_stats(ks[5], 64))

    # conv3: torch weight (128, 64, 3) -> (3, 64, 128)
    p["w3"] = 0.08 * jax.random.normal(ks[6], (3, 64, 128), jnp.float32)
    b3 = 0.1 * jax.random.normal(ks[7], (128,), jnp.float32)
    p["s3"], p["t3"] = fold_bn(b3, *bn_stats(ks[8], 128))

    # fc1: torch weight (512, 128) -> (128, 512)
    p["wfc1"] = 0.05 * jax.random.normal(ks[9], (128, 512), jnp.float32)
    p["bfc1"] = 0.1 * jax.random.normal(ks[10], (1, 512), jnp.float32)

    # fc2: torch weight (num_classes, 512) -> (512, num_classes)
    p["wfc2"] = 0.05 * jax.random.normal(ks[11], (512, num_classes), jnp.float32)
    p["bfc2"] = 0.1 * jax.random.normal(ks[12], (1, num_classes), jnp.float32)
    return p


if __name__ == "__main__":
    B, L, NUM_CLASSES = 2, 64, 10
    key = jax.random.PRNGKey(0)
    k_x, k_p = jax.random.split(key)

    x = jax.random.normal(k_x, (B, 1, L), jnp.float32)   # (batch, 1, seq) like torch
    params = make_params(k_p, NUM_CLASSES)

    out = jax.jit(model1_forward)(x, params)
    jax.block_until_ready(out)
    assert out.shape == (B, NUM_CLASSES) and out.dtype == jnp.float32
    print("KERNEL_OK")
</pallas_src>

<mosaic_0001>
module attributes {stable_mosaic.version = 11 : i64} {
  func.func @model1_kernel(%arg0: i32, %arg1: memref<8x512xbf16, #tpu.memory_space<vmem>>, %arg2: memref<8x32xf32, #tpu.memory_space<vmem>>, %arg3: memref<96x64xbf16, #tpu.memory_space<vmem>>, %arg4: memref<192x128xbf16, #tpu.memory_space<vmem>>, %arg5: memref<128x512xbf16, #tpu.memory_space<vmem>>, %arg6: memref<512x128xbf16, #tpu.memory_space<vmem>>, %arg7: memref<2x384xf32, #tpu.memory_space<vmem>>, %arg8: memref<1x640xf32, #tpu.memory_space<vmem>>, %arg9: memref<8x128xf32, #tpu.memory_space<vmem>>) attributes {dimension_semantics = [#tpu.dimension_semantics<parallel>], iteration_bounds = array<i64: 1>, scalar_prefetch = 0 : i64, scratch_operands = 0 : i64, tpu.core_type = #tpu.core_type<tc>, window_params = [{transform_indices = @transform_0, window_bounds = array<i64: 8, 512>}, {pipeline_mode = #tpu.pipeline_mode<synchronous>, transform_indices = @transform_1, window_bounds = array<i64: 8, 32>}, {pipeline_mode = #tpu.pipeline_mode<synchronous>, transform_indices = @transform_2, window_bounds = array<i64: 96, 64>}, {pipeline_mode = #tpu.pipeline_mode<synchronous>, transform_indices = @transform_3, window_bounds = array<i64: 192, 128>}, {pipeline_mode = #tpu.pipeline_mode<synchronous>, transform_indices = @transform_4, window_bounds = array<i64: 128, 512>}, {pipeline_mode = #tpu.pipeline_mode<synchronous>, transform_indices = @transform_5, window_bounds = array<i64: 512, 128>}, {pipeline_mode = #tpu.pipeline_mode<synchronous>, transform_indices = @transform_6, window_bounds = array<i64: 2, 384>}, {pipeline_mode = #tpu.pipeline_mode<synchronous>, transform_indices = @transform_7, window_bounds = array<i64: 1, 640>}, {transform_indices = @transform_8, window_bounds = array<i64: 8, 128>}]} {
    %c0 = arith.constant 0 : index
    %c0_0 = arith.constant 0 : index
    %0 = vector.load %arg7[%c0, %c0_0] : memref<2x384xf32, #tpu.memory_space<vmem>>, vector<1x32xf32>
    %c1 = arith.constant 1 : index
    %c0_1 = arith.constant 0 : index
    %1 = vector.load %arg7[%c1, %c0_1] : memref<2x384xf32, #tpu.memory_space<vmem>>, vector<1x32xf32>
    %c0_2 = arith.constant 0 : index
    %c128 = arith.constant 128 : index
    %2 = vector.load %arg7[%c0_2, %c128] : memref<2x384xf32, #tpu.memory_space<vmem>>, vector<1x64xf32>
    %c1_3 = arith.constant 1 : index
    %c128_4 = arith.constant 128 : index
    %3 = vector.load %arg7[%c1_3, %c128_4] : memref<2x384xf32, #tpu.memory_space<vmem>>, vector<1x64xf32>
    %c0_5 = arith.constant 0 : index
    %c256 = arith.constant 256 : index
    %4 = vector.load %arg7[%c0_5, %c256] : memref<2x384xf32, #tpu.memory_space<vmem>>, vector<1x128xf32>
    %c1_6 = arith.constant 1 : index
    %c256_7 = arith.constant 256 : index
    %5 = vector.load %arg7[%c1_6, %c256_7] : memref<2x384xf32, #tpu.memory_space<vmem>>, vector<1x128xf32>
    %c0_8 = arith.constant 0 : index
    %c0_9 = arith.constant 0 : index
    %6 = vector.load %arg8[%c0_8, %c0_9] : memref<1x640xf32, #tpu.memory_space<vmem>>, vector<1x512xf32>
    %c0_10 = arith.constant 0 : index
    %c512 = arith.constant 512 : index
    %7 = vector.load %arg8[%c0_10, %c512] : memref<1x640xf32, #tpu.memory_space<vmem>>, vector<1x128xf32>
    %8 = tpu.iota {dimensions = array<i32: 1>} : vector<8x64x1xi32>
    %9 = vector.shape_cast %8 : vector<8x64x1xi32> to vector<512x1xi32>
    %c0_i32 = arith.constant 0 : i32
    %10 = vector.broadcast %c0_i32 : i32 to vector<512x1xi32>
    %11 = arith.cmpi ne, %9, %10 : vector<512x1xi32>
    %c63_i32 = arith.constant 63 : i32
    %12 = vector.broadcast %c63_i32 : i32 to vector<512x1xi32>
    %13 = arith.cmpi ne, %9, %12 : vector<512x1xi32>
    %c0_11 = arith.constant 0 : index
    %c0_12 = arith.constant 0 : index
    %14 = vector.load %arg1[%c0_11, %c0_12] : memref<8x512xbf16, #tpu.memory_space<vmem>>, vector<8x512xbf16>
    %15 = arith.extf %14 : vector<8x512xbf16> to vector<8x512xf32>
    %c0_13 = arith.constant 0 : index
    %c0_14 = arith.constant 0 : index
    %16 = vector.load %arg2[%c0_13, %c0_14] : memref<8x32xf32, #tpu.memory_space<vmem>>, vector<8x32xf32>
    %cst = arith.constant dense<0.000000e+00> : vector<512x32xf32>
    %17 = tpu.matmul %15, %16, %cst {dimension_numbers = #tpu.dot_dimension_numbers<[0], [0], [1], [1], [0, 1, 1, 1], [], []>} : vector<8x512xf32>, vector<8x32xf32>, vector<512x32xf32> -> vector<512x32xf32>
    %18 = vector.broadcast %0 : vector<1x32xf32> to vector<512x32xf32>
    %19 = arith.mulf %17, %18 : vector<512x32xf32>
    %20 = vector.broadcast %1 : vector<1x32xf32> to vector<512x32xf32>
    %21 = arith.addf %19, %20 : vector<512x32xf32>
    %cst_15 = arith.constant 0.000000e+00 : f32
    %22 = vector.broadcast %cst_15 : f32 to vector<512x32xf32>
    %23 = arith.maximumf %21, %22 : vector<512x32xf32>
    %c1_i32 = arith.constant 1 : i32
    %24 = tpu.dynamic_rotate %23 by %c1_i32 dim 0 : vector<512x32xf32>, i32 -> vector<512x32xf32>
    %cst_16 = arith.constant 0.000000e+00 : f32
    %25 = vector.shape_cast %11 : vector<512x1xi1> to vector<512x1xi1>
    %26 = vector.broadcast %25 : vector<512x1xi1> to vector<512x32xi1>
    %27 = vector.broadcast %cst_16 : f32 to vector<512x32xf32>
    %28 = arith.select %26, %24, %27 : vector<512x32xi1>, vector<512x32xf32>
    %c511_i32 = arith.constant 511 : i32
    %29 = tpu.dynamic_rotate %23 by %c511_i32 dim 0 : vector<512x32xf32>, i32 -> vector<512x32xf32>
    %cst_17 = arith.constant 0.000000e+00 : f32
    %30 = vector.shape_cast %13 : vector<512x1xi1> to vector<512x1xi1>
    %31 = vector.broadcast %30 : vector<512x1xi1> to vector<512x32xi1>
    %32 = vector.broadcast %cst_17 : f32 to vector<512x32xf32>
    %33 = arith.select %31, %29, %32 : vector<512x32xi1>, vector<512x32xf32>
    %34 = tpu.concatenate %28, %23, %33 in 1 : vector<512x32xf32>, vector<512x32xf32>, vector<512x32xf32> -> vector<512x96xf32>
    %35 = arith.truncf %34 : vector<512x96xf32> to vector<512x96xbf16>
    %c0_18 = arith.constant 0 : index
    %c0_19 = arith.constant 0 : index
    %36 = vector.load %arg3[%c0_18, %c0_19] : memref<96x64xbf16, #tpu.memory_space<vmem>>, vector<96x64xbf16>
    %cst_20 = arith.constant dense<0.000000e+00> : vector<512x64xf32>
    %37 = tpu.matmul %35, %36, %cst_20 {dimension_numbers = #tpu.dot_dimension_numbers<[1], [0], [0], [1], [0, 0, 1, 1], [], []>} : vector<512x96xbf16>, vector<96x64xbf16>, vector<512x64xf32> -> vector<512x64xf32>
    %38 = vector.broadcast %2 : vector<1x64xf32> to vector<512x64xf32>
    %39 = arith.mulf %37, %38 : vector<512x64xf32>
    %40 = vector.broadcast %3 : vector<1x64xf32> to vector<512x64xf32>
    %41 = arith.addf %39, %40 : vector<512x64xf32>
    %cst_21 = arith.constant 0.000000e+00 : f32
    %42 = vector.broadcast %cst_21 : f32 to vector<512x64xf32>
    %43 = arith.maximumf %41, %42 : vector<512x64xf32>
    %c1_i32_22 = arith.constant 1 : i32
    %44 = tpu.dynamic_rotate %43 by %c1_i32_22 dim 0 : vector<512x64xf32>, i32 -> vector<512x64xf32>
    %cst_23 = arith.constant 0.000000e+00 : f32
    %45 = vector.shape_cast %11 : vector<512x1xi1> to vector<512x1xi1>
    %46 = vector.broadcast %45 : vector<512x1xi1> to vector<512x64xi1>
    %47 = vector.broadcast %cst_23 : f32 to vector<512x64xf32>
    %48 = arith.select %46, %44, %47 : vector<512x64xi1>, vector<512x64xf32>
    %c511_i32_24 = arith.constant 511 : i32
    %49 = tpu.dynamic_rotate %43 by %c511_i32_24 dim 0 : vector<512x64xf32>, i32 -> vector<512x64xf32>
    %cst_25 = arith.constant 0.000000e+00 : f32
    %50 = vector.shape_cast %13 : vector<512x1xi1> to vector<512x1xi1>
    %51 = vector.broadcast %50 : vector<512x1xi1> to vector<512x64xi1>
    %52 = vector.broadcast %cst_25 : f32 to vector<512x64xf32>
    %53 = arith.select %51, %49, %52 : vector<512x64xi1>, vector<512x64xf32>
    %54 = tpu.concatenate %48, %43, %53 in 1 : vector<512x64xf32>, vector<512x64xf32>, vector<512x64xf32> -> vector<512x192xf32>
    %55 = arith.truncf %54 : vector<512x192xf32> to vector<512x192xbf16>
    %c0_26 = arith.constant 0 : index
    %c0_27 = arith.constant 0 : index
    %56 = vector.load %arg4[%c0_26, %c0_27] : memref<192x128xbf16, #tpu.memory_space<vmem>>, vector<192x128xbf16>
    %cst_28 = arith.constant dense<0.000000e+00> : vector<512x128xf32>
    %57 = tpu.matmul %55, %56, %cst_28 {dimension_numbers = #tpu.dot_dimension_numbers<[1], [0], [0], [1], [0, 0, 1, 1], [], []>} : vector<512x192xbf16>, vector<192x128xbf16>, vector<512x128xf32> -> vector<512x128xf32>
    %58 = vector.broadcast %4 : vector<1x128xf32> to vector<512x128xf32>
    %59 = arith.mulf %57, %58 : vector<512x128xf32>
    %60 = vector.broadcast %5 : vector<1x128xf32> to vector<512x128xf32>
    %61 = arith.addf %59, %60 : vector<512x128xf32>
    %cst_29 = arith.constant 0.000000e+00 : f32
    %62 = vector.broadcast %cst_29 : f32 to vector<512x128xf32>
    %63 = arith.maximumf %61, %62 : vector<512x128xf32>
    %64 = vector.shape_cast %63 : vector<512x128xf32> to vector<8x64x128xf32>
    %cst_30 = arith.constant dense<0.000000e+00> : vector<8x128xf32>
    %65 = vector.multi_reduction <add>, %64, %cst_30 [1] : vector<8x64x128xf32> to vector<8x128xf32>
    %66 = arith.truncf %65 : vector<8x128xf32> to vector<8x128xbf16>
    %c0_31 = arith.constant 0 : index
    %c0_32 = arith.constant 0 : index
    %67 = vector.load %arg5[%c0_31, %c0_32] : memref<128x512xbf16, #tpu.memory_space<vmem>>, vector<128x512xbf16>
    %cst_33 = arith.constant dense<0.000000e+00> : vector<8x512xf32>
    %68 = tpu.matmul %66, %67, %cst_33 {dimension_numbers = #tpu.dot_dimension_numbers<[1], [0], [0], [1], [0, 0, 1, 1], [], []>} : vector<8x128xbf16>, vector<128x512xbf16>, vector<8x512xf32> -> vector<8x512xf32>
    %69 = vector.broadcast %6 : vector<1x512xf32> to vector<8x512xf32>
    %70 = arith.addf %68, %69 : vector<8x512xf32>
    %71 = arith.mulf %70, %70 : vector<8x512xf32>
    %cst_34 = arith.constant dense<0.000000e+00> : vector<8xf32>
    %72 = vector.multi_reduction <add>, %71, %cst_34 [1] : vector<8x512xf32> to vector<8xf32>
    %73 = vector.shape_cast %72 : vector<8xf32> to vector<8x1xf32>
    %cst_35 = arith.constant 1.000000e-24 : f32
    %74 = vector.broadcast %cst_35 : f32 to vector<8x1xf32>
    %75 = arith.maximumf %73, %74 : vector<8x1xf32>
    %76 = math.rsqrt %75 : vector<8x1xf32>
    %77 = vector.broadcast %76 : vector<8x1xf32> to vector<8x512xf32>
    %78 = arith.mulf %70, %77 : vector<8x512xf32>
    %79 = arith.truncf %78 : vector<8x512xf32> to vector<8x512xbf16>
    %c0_36 = arith.constant 0 : index
    %c0_37 = arith.constant 0 : index
    %80 = vector.load %arg6[%c0_36, %c0_37] : memref<512x128xbf16, #tpu.memory_space<vmem>>, vector<512x128xbf16>
    %cst_38 = arith.constant dense<0.000000e+00> : vector<8x128xf32>
    %81 = tpu.matmul %79, %80, %cst_38 {dimension_numbers = #tpu.dot_dimension_numbers<[1], [0], [0], [1], [0, 0, 1, 1], [], []>} : vector<8x512xbf16>, vector<512x128xbf16>, vector<8x128xf32> -> vector<8x128xf32>
    %82 = vector.broadcast %7 : vector<1x128xf32> to vector<8x128xf32>
    %83 = arith.addf %81, %82 : vector<8x128xf32>
    %c0_39 = arith.constant 0 : index
    %c0_40 = arith.constant 0 : index
    %84 = vector.load %arg9[%c0_39, %c0_40] : memref<8x128xf32, #tpu.memory_space<vmem>>, vector<8x128xf32>
    tpu.vector_store %arg9[%c0_39, %c0_40], %83 {strides = array<i32>} : memref<8x128xf32, #tpu.memory_space<vmem>>, vector<8x128xf32>,
    return
  }
  func.func @transform_0(%arg0: i32) -> (i32, i32) {
    %c0_i32 = arith.constant 0 : i32
    %c0_i32_0 = arith.constant 0 : i32
    return %c0_i32, %arg0 : i32, i32
  }
  func.func @transform_1(%arg0: i32) -> (i32, i32) {
    %c0_i32 = arith.constant 0 : i32
    %c0_i32_0 = arith.constant 0 : i32
    %c0_i32_1 = arith.constant 0 : i32
    return %c0_i32, %c0_i32_0 : i32, i32
  }
  func.func @transform_2(%arg0: i32) -> (i32, i32) {
    %c0_i32 = arith.constant 0 : i32
    %c0_i32_0 = arith.constant 0 : i32
    %c0_i32_1 = arith.constant 0 : i32
    return %c0_i32, %c0_i32_0 : i32, i32
  }
  func.func @transform_3(%arg0: i32) -> (i32, i32) {
    %c0_i32 = arith.constant 0 : i32
    %c0_i32_0 = arith.constant 0 : i32
    %c0_i32_1 = arith.constant 0 : i32
    return %c0_i32, %c0_i32_0 : i32, i32
  }
  func.func @transform_4(%arg0: i32) -> (i32, i32) {
    %c0_i32 = arith.constant 0 : i32
    %c0_i32_0 = arith.constant 0 : i32
    %c0_i32_1 = arith.constant 0 : i32
    return %c0_i32, %c0_i32_0 : i32, i32
  }
  func.func @transform_5(%arg0: i32) -> (i32, i32) {
    %c0_i32 = arith.constant 0 : i32
    %c0_i32_0 = arith.constant 0 : i32
    %c0_i32_1 = arith.constant 0 : i32
    return %c0_i32, %c0_i32_0 : i32, i32
  }
  func.func @transform_6(%arg0: i32) -> (i32, i32) {
    %c0_i32 = arith.constant 0 : i32
    %c0_i32_0 = arith.constant 0 : i32
    %c0_i32_1 = arith.constant 0 : i32
    return %c0_i32, %c0_i32_0 : i32, i32
  }
  func.func @transform_7(%arg0: i32) -> (i32, i32) {
    %c0_i32 = arith.constant 0 : i32
    %c0_i32_0 = arith.constant 0 : i32
    %c0_i32_1 = arith.constant 0 : i32
    return %c0_i32, %c0_i32_0 : i32, i32
  }
  func.func @transform_8(%arg0: i32) -> (i32, i32) {
    %c0_i32 = arith.constant 0 : i32
    %c0_i32_0 = arith.constant 0 : i32
    return %arg0, %c0_i32 : i32, i32
  }
}

</mosaic_0001>

<llo_original>
// kernel: model1_forward.1
$region0: #{model1_forward.1}
  #allocation0 [shape = 'u32[]', space=smem, size = 0x4, offset = 0x4, fixed_abs, tag = 'smem constant byte address 0x4 - core index']
  #allocation1 [shape = 'u32[144,128]{1,0:T(1,128)}', space=vmem, size = 0x12000, scoped, tag = 'internal scratch']
  %s0 = inlined_call_operand.vmem [shape: bf16[8,512], index: 0, kind: input, shape index: {}]
  %s1 = inlined_call_operand.vmem [shape: f32[8,32], index: 1, kind: input, shape index: {}]
  %s2 = inlined_call_operand.vmem [shape: bf16[96,64], index: 2, kind: input, shape index: {}]
  %s3 = inlined_call_operand.vmem [shape: bf16[192,128], index: 3, kind: input, shape index: {}]
  %s4 = inlined_call_operand.vmem [shape: bf16[128,512], index: 4, kind: input, shape index: {}]
  %s5 = inlined_call_operand.vmem [shape: bf16[512,128], index: 5, kind: input, shape index: {}]
  %s6 = inlined_call_operand.vmem [shape: f32[2,384], index: 6, kind: input, shape index: {}]
  %s7 = inlined_call_operand.vmem [shape: f32[1,640], index: 7, kind: input, shape index: {}]
  %s8 = inlined_call_operand.vmem [shape: f32[8,128], index: 8, kind: output, shape index: {}]
  %s9 = sld [smem:[#allocation0]]
  $region42: #{model1_forward.1} parent=0
    _
  %s11 = ssub.s32 1, %s9
  %s12 = scalar_select 0, %s11, %s9
  // Predicated region
  $region2: #{model1_forward.1} parent=0 // pred_check
    _
  $region3: #{model1_forward.1} parent=0 // pred_check_branch
    %14 = sbr.rel (0) target = $region5
  $region4: #{model1_forward.1} parent=0 // pred_region
    _
  $region5: #{model1_forward.1} parent=0 // pred_fallthru
    _
  // Predicated region
  $region6: #{model1_forward.1} parent=0 // pred_check
    _
  $region7: #{model1_forward.1} parent=0 // pred_check_branch
    %16 = sbr.rel (0) target = $region9
  $region8: #{model1_forward.1} parent=0 // pred_region
    _
  $region9: #{model1_forward.1} parent=0 // pred_fallthru
    _
  // Predicated region
  $region10: #{model1_forward.1} parent=0 // pred_check
    _
  $region11: #{model1_forward.1} parent=0 // pred_check_branch
    %18 = sbr.rel (0) target = $region13
  $region12: #{model1_forward.1} parent=0 // pred_region
    _
  $region13: #{model1_forward.1} parent=0 // pred_fallthru
    _
  // Predicated region
  $region14: #{model1_forward.1} parent=0 // pred_check
    _
  $region15: #{model1_forward.1} parent=0 // pred_check_branch
    %20 = sbr.rel (0) target = $region17
  $region16: #{model1_forward.1} parent=0 // pred_region
    _
  $region17: #{model1_forward.1} parent=0 // pred_fallthru
    _
  // Predicated region
  $region18: #{model1_forward.1} parent=0 // pred_check
    _
  $region19: #{model1_forward.1} parent=0 // pred_check_branch
    %22 = sbr.rel (0) target = $region21
  $region20: #{model1_forward.1} parent=0 // pred_region
    _
  $region21: #{model1_forward.1} parent=0 // pred_fallthru
    _
  // Predicated region
  $region22: #{model1_forward.1} parent=0 // pred_check
    _
  $region23: #{model1_forward.1} parent=0 // pred_check_branch
    %24 = sbr.rel (0) target = $region25
  $region24: #{model1_forward.1} parent=0 // pred_region
    _
  $region25: #{model1_forward.1} parent=0 // pred_fallthru
    _
  // Predicated region
  $region26: #{model1_forward.1} parent=0 // pred_check
    _
  $region27: #{model1_forward.1} parent=0 // pred_check_branch
    %26 = sbr.rel (0) target = $region29
  $region28: #{model1_forward.1} parent=0 // pred_region
    _
  $region29: #{model1_forward.1} parent=0 // pred_fallthru
    _
  // Predicated region
  $region30: #{model1_forward.1} parent=0 // pred_check
    _
  $region31: #{model1_forward.1} parent=0 // pred_check_branch
    %28 = sbr.rel (0) target = $region33
  $region32: #{model1_forward.1} parent=0 // pred_region
    _
  $region33: #{model1_forward.1} parent=0 // pred_fallthru
    _
  %v30 = vld [vmem:[%s6] sm:$0x1]
  %v31 = vld [vmem:[%s6 + $0x1] sm:$0x1]
  %v32 = vld [vmem:[%s6 + $0x2] sm:$0x1]
  %v33 = vld [vmem:[%s6 + $0x3] sm:$0x1]
  %v34 = vld [vmem:[%s6 + $0x4] sm:$0x1]
  %v35 = vld [vmem:[%s6 + $0x5] sm:$0x1]
  %v36 = vld [vmem:[%s7] sm:$0xf]
  %v37 = vld [vmem:[%s7 + $0x4] sm:$0x1]
  %v38 = vlaneseq
  %v39 = vshrl.u32 %v38, 7
  %v40 = vadd.s32 %v39, 8
  %v41 = vadd.s32 %v39, 16
  %v42 = vadd.s32 %v39, 24
  %v43 = vadd.s32 %v39, 32
  %v44 = vadd.s32 %v39, 40
  %v45 = vadd.s32 %v39, 48
  %v46 = vadd.s32 %v39, 56
  %vm47 = vcmp.ne.s32.totalorder %v39, 0
  %vm48 = vcmp.ne.s32.totalorder %v40, 0
  %vm49 = vcmp.ne.s32.totalorder %v41, 0
  %vm50 = vcmp.ne.s32.totalorder %v42, 0
  %vm51 = vcmp.ne.s32.totalorder %v43, 0
  %vm52 = vcmp.ne.s32.totalorder %v44, 0
  %vm53 = vcmp.ne.s32.totalorder %v45, 0
  %vm54 = vcmp.ne.s32.totalorder %v46, 0
  %vm55 = vcmp.ne.s32.totalorder %v39, 63
  %vm56 = vcmp.ne.s32.totalorder %v40, 63
  %vm57 = vcmp.ne.s32.totalorder %v41, 63
  %vm58 = vcmp.ne.s32.totalorder %v42, 63
  %vm59 = vcmp.ne.s32.totalorder %v43, 63
  %vm60 = vcmp.ne.s32.totalorder %v44, 63
  %vm61 = vcmp.ne.s32.totalorder %v45, 63
  %vm62 = vcmp.ne.s32.totalorder %v46, 63
  %v63 = vld [vmem:[%s0] sm:$0xff]
  %v64 = vld [vmem:[%s0 + $0x8] sm:$0xff]
  %v65 = vunpack.c.l.bf16 %v63
  %v66 = vunpack.c.h.bf16 %v63
  %v67 = vunpack.c.l.bf16 %v64
  %v68 = vunpack.c.h.bf16 %v64
  %v69 = vld [vmem:[%s1] sm:$0xff]
  %70 = vxpose.xlu0.b32.start [1/16] %v65, 128
  %71 = vxpose.xlu0.b32.cont [2/16] 0.0, 128
  %72 = vxpose.xlu0.b32.cont [3/16] 0.0, 128
  %73 = vxpose.xlu0.b32.cont [4/16] 0.0, 128
  %74 = vxpose.xlu0.b32.cont [5/16] 0.0, 128
  %75 = vxpose.xlu0.b32.cont [6/16] 0.0, 128
  %76 = vxpose.xlu0.b32.cont [7/16] 0.0, 128
  %77 = vxpose.xlu0.b32.cont [8/16] 0.0, 128
  %78 = vxpose.xlu0.b32.cont [9/16] 0.0, 128
  %79 = vxpose.xlu0.b32.cont [10/16] 0.0, 128
  %80 = vxpose.xlu0.b32.cont [11/16] 0.0, 128
  %81 = vxpose.xlu0.b32.cont [12/16] 0.0, 128
  %82 = vxpose.xlu0.b32.cont [13/16] 0.0, 128
  %83 = vxpose.xlu0.b32.cont [14/16] 0.0, 128
  %84 = vxpose.xlu0.b32.cont [15/16] 0.0, 128
  %85 = vxpose.xlu0.b32.end [16/16] 0.0, 128
  %v86 = vpop.trf.xlu0
  %v87 = vpop.trf.xlu0
  %v88 = vpop.trf.xlu0
  %v89 = vpop.trf.xlu0
  %v90 = vpop.trf.xlu0
  %v91 = vpop.trf.xlu0
  %v92 = vpop.trf.xlu0
  %v93 = vpop.trf.xlu0
  %v94 = vpop.trf.xlu0
  %v95 = vpop.trf.xlu0
  %v96 = vpop.trf.xlu0
  %v97 = vpop.trf.xlu0
  %v98 = vpop.trf.xlu0
  %v99 = vpop.trf.xlu0
  %v100 = vpop.trf.xlu0
  %v101 = vpop.trf.xlu0
  %102 = vxpose.xlu0.b32.start [1/16] %v66, 128
  %103 = vxpose.xlu0.b32.cont [2/16] 0.0, 128
  %104 = vxpose.xlu0.b32.cont [3/16] 0.0, 128
  %105 = vxpose.xlu0.b32.cont [4/16] 0.0, 128
  %106 = vxpose.xlu0.b32.cont [5/16] 0.0, 128
  %107 = vxpose.xlu0.b32.cont [6/16] 0.0, 128
  %108 = vxpose.xlu0.b32.cont [7/16] 0.0, 128
  %109 = vxpose.xlu0.b32.cont [8/16] 0.0, 128
  %110 = vxpose.xlu0.b32.cont [9/16] 0.0, 128
  %111 = vxpose.xlu0.b32.cont [10/16] 0.0, 128
  %112 = vxpose.xlu0.b32.cont [11/16] 0.0, 128
  %113 = vxpose.xlu0.b32.cont [12/16] 0.0, 128
  %114 = vxpose.xlu0.b32.cont [13/16] 0.0, 128
  %115 = vxpose.xlu0.b32.cont [14/16] 0.0, 128
  %116 = vxpose.xlu0.b32.cont [15/16] 0.0, 128
  %117 = vxpose.xlu0.b32.end [16/16] 0.0, 128
  %v118 = vpop.trf.xlu0
  %v119 = vpop.trf.xlu0
  %v120 = vpop.trf.xlu0
  %v121 = vpop.trf.xlu0
  %v122 = vpop.trf.xlu0
  %v123 = vpop.trf.xlu0
  %v124 = vpop.trf.xlu0
  %v125 = vpop.trf.xlu0
  %v126 = vpop.trf.xlu0
  %v127 = vpop.trf.xlu0
  %v128 = vpop.trf.xlu0
  %v129 = vpop.trf.xlu0
  %v130 = vpop.trf.xlu0
  %v131 = vpop.trf.xlu0
  %v132 = vpop.trf.xlu0
  %v133 = vpop.trf.xlu0
  %134 = vxpose.xlu0.b32.start [1/16] %v67, 128
  %135 = vxpose.xlu0.b32.cont [2/16] 0.0, 128
  %136 = vxpose.xlu0.b32.cont [3/16] 0.0, 128
  %137 = vxpose.xlu0.b32.cont [4/16] 0.0, 128
  %138 = vxpose.xlu0.b32.cont [5/16] 0.0, 128
  %139 = vxpose.xlu0.b32.cont [6/16] 0.0, 128
  %140 = vxpose.xlu0.b32.cont [7/16] 0.0, 128
  %141 = vxpose.xlu0.b32.cont [8/16] 0.0, 128
  %142 = vxpose.xlu0.b32.cont [9/16] 0.0, 128
  %143 = vxpose.xlu0.b32.cont [10/16] 0.0, 128
  %144 = vxpose.xlu0.b32.cont [11/16] 0.0, 128
  %145 = vxpose.xlu0.b32.cont [12/16] 0.0, 128
  %146 = vxpose.xlu0.b32.cont [13/16] 0.0, 128
  %147 = vxpose.xlu0.b32.cont [14/16] 0.0, 128
  %148 = vxpose.xlu0.b32.cont [15/16] 0.0, 128
  %149 = vxpose.xlu0.b32.end [16/16] 0.0, 128
  %v150 = vpop.trf.xlu0
  %v151 = vpop.trf.xlu0
  %v152 = vpop.trf.xlu0
  %v153 = vpop.trf.xlu0
  %v154 = vpop.trf.xlu0
  %v155 = vpop.trf.xlu0
  %v156 = vpop.trf.xlu0
  %v157 = vpop.trf.xlu0
  %v158 = vpop.trf.xlu0
  %v159 = vpop.trf.xlu0
  %v160 = vpop.trf.xlu0
  %v161 = vpop.trf.xlu0
  %v162 = vpop.trf.xlu0
  %v163 = vpop.trf.xlu0
  %v164 = vpop.trf.xlu0
  %v165 = vpop.trf.xlu0
  %166 = vxpose.xlu0.b32.start [1/16] %v68, 128
  %167 = vxpose.xlu0.b32.cont [2/16] 0.0, 128
  %168 = vxpose.xlu0.b32.cont [3/16] 0.0, 128
  %169 = vxpose.xlu0.b32.cont [4/16] 0.0, 128
  %170 = vxpose.xlu0.b32.cont [5/16] 0.0, 128
  %171 = vxpose.xlu0.b32.cont [6/16] 0.0, 128
  %172 = vxpose.xlu0.b32.cont [7/16] 0.0, 128
  %173 = vxpose.xlu0.b32.cont [8/16] 0.0, 128
  %174 = vxpose.xlu0.b32.cont [9/16] 0.0, 128
  %175 = vxpose.xlu0.b32.cont [10/16] 0.0, 128
  %176 = vxpose.xlu0.b32.cont [11/16] 0.0, 128
  %177 = vxpose.xlu0.b32.cont [12/16] 0.0, 128
  %178 = vxpose.xlu0.b32.cont [13/16] 0.0, 128
  %179 = vxpose.xlu0.b32.cont [14/16] 0.0, 128
  %180 = vxpose.xlu0.b32.cont [15/16] 0.0, 128
  %181 = vxpose.xlu0.b32.end [16/16] 0.0, 128
  %v182 = vpop.trf.xlu0
  %v183 = vpop.trf.xlu0
  %v184 = vpop.trf.xlu0
  %v185 = vpop.trf.xlu0
  %v186 = vpop.trf.xlu0
  %v187 = vpop.trf.xlu0
  %v188 = vpop.trf.xlu0
  %v189 = vpop.trf.xlu0
  %v190 = vpop.trf.xlu0
  %v191 = vpop.trf.xlu0
  %v192 = vpop.trf.xlu0
  %v193 = vpop.trf.xlu0
  %v194 = vpop.trf.xlu0
  %v195 = vpop.trf.xlu0
  %v196 = vpop.trf.xlu0
  %v197 = vpop.trf.xlu0
  %vm198 = vcmask 64512
  %v200 = vsel %vm198, %v86, 0
  %v203 = vsel %vm198, %v87, 0
  %v206 = vsel %vm198, %v88, 0
  %v209 = vsel %vm198, %v89, 0
  %v212 = vsel %vm198, %v90, 0
  %v215 = vsel %vm198, %v91, 0
  %v218 = vsel %vm198, %v92, 0
  %v221 = vsel %vm198, %v93, 0
  %v224 = vsel %vm198, %v94, 0
  %v227 = vsel %vm198, %v95, 0
  %v230 = vsel %vm198, %v96, 0
  %v233 = vsel %vm198, %v97, 0
  %v236 = vsel %vm198, %v98, 0
  %v239 = vsel %vm198, %v99, 0
  %v242 = vsel %vm198, %v100, 0
  %v245 = vsel %vm198, %v101, 0
  %v248 = vsel %vm198, %v118, 0
  %v251 = vsel %vm198, %v119, 0
  %v254 = vsel %vm198, %v120, 0
  %v257 = vsel %vm198, %v121, 0
  %v260 = vsel %vm198, %v122, 0
  %v263 = vsel %vm198, %v123, 0
  %v266 = vsel %vm198, %v124, 0
  %v269 = vsel %vm198, %v125, 0
  %v272 = vsel %vm198, %v126, 0
  %v275 = vsel %vm198, %v127, 0
  %v278 = vsel %vm198, %v128, 0
  %v281 = vsel %vm198, %v129, 0
  %v284 = vsel %vm198, %v130, 0
  %v287 = vsel %vm198, %v131, 0
  %v290 = vsel %vm198, %v132, 0
  %v293 = vsel %vm198, %v133, 0
  %v296 = vsel %vm198, %v150, 0
  %v299 = vsel %vm198, %v151, 0
  %v302 = vsel %vm198, %v152, 0
  %v305 = vsel %vm198, %v153, 0
  %v308 = vsel %vm198, %v154, 0
  %v311 = vsel %vm198, %v155, 0
  %v314 = vsel %vm198, %v156, 0
  %v317 = vsel %vm198, %v157, 0
  %v320 = vsel %vm198, %v158, 0
  %v323 = vsel %vm198, %v159, 0
  %v326 = vsel %vm198, %v160, 0
  %v329 = vsel %vm198, %v161, 0
  %v332 = vsel %vm198, %v162, 0
  %v335 = vsel %vm198, %v163, 0
  %v338 = vsel %vm198, %v164, 0
  %v341 = vsel %vm198, %v165, 0
  %v344 = vsel %vm198, %v182, 0
  %v347 = vsel %vm198, %v183, 0
  %v350 = vsel %vm198, %v184, 0
  %v353 = vsel %vm198, %v185, 0
  %v356 = vsel %vm198, %v186, 0
  %v359 = vsel %vm198, %v187, 0
  %v362 = vsel %vm198, %v188, 0
  %v365 = vsel %vm198, %v189, 0
  %v368 = vsel %vm198, %v190, 0
  %v371 = vsel %vm198, %v191, 0
  %v374 = vsel %vm198, %v192, 0
  %v377 = vsel %vm198, %v193, 0
  %v380 = vsel %vm198, %v194, 0
  %v383 = vsel %vm198, %v195, 0
  %v386 = vsel %vm198, %v196, 0
  %v389 = vsel %vm198, %v197, 0
  %391 = vmatprep.subr.mxu0 0.0
  %392 = vmatpush1.msra.mxu0 %v69
  %393 = vmatprep.subr.mxu0 0.0
  %394 = vmatpush1.msra.mxu0 0.0
  %395 = vmatprep.subr.mxu0 0.0
  %396 = vmatpush1.msra.mxu0 0.0
  %397 = vmatprep.subr.mxu0 0.0
  %398 = vmatpush1.msra.mxu0 0.0
  %399 = vmatprep.subr.mxu0 0.0
  %400 = vmatpush1.msra.mxu0 0.0
  %401 = vmatprep.subr.mxu0 0.0
  %402 = vmatpush1.msra.mxu0 0.0
  %403 = vmatprep.subr.mxu0 0.0
  %404 = vmatpush1.msra.mxu0 0.0
  %405 = vmatprep.subr.mxu0 0.0
  %406 = vmatpush1.msra.mxu0 0.0
  %407 = vmatprep.subr.mxu0 0.0
  %408 = vmatpush1.msra.mxu0 0.0
  %409 = vmatprep.subr.mxu0 0.0
  %410 = vmatpush1.msra.mxu0 0.0
  %411 = vmatprep.subr.mxu0 0.0
  %412 = vmatpush1.msra.mxu0 0.0
  %413 = vmatprep.subr.mxu0 0.0
  %414 = vmatpush1.msra.mxu0 0.0
  %415 = vmatprep.subr.mxu0 0.0
  %416 = vmatpush1.msra.mxu0 0.0
  %417 = vmatprep.subr.mxu0 0.0
  %418 = vmatpush1.msra.mxu0 0.0
  %419 = vmatprep.subr.mxu0 0.0
  %420 = vmatpush1.msra.mxu0 0.0
  %421 = vmatprep.subr.mxu0 0.0
  %422 = vmatpush1.msra.mxu0 0.0
  %423 = vmatprep.subr.mxu0 0.0
  %424 = vmatpush1.msra.mxu0 0.0
  %425 = vmatprep.subr.mxu0 0.0
  %426 = vmatpush1.msra.mxu0 0.0
  %427 = vmatprep.subr.mxu0 0.0
  %428 = vmatpush1.msra.mxu0 0.0
  %429 = vmatprep.subr.mxu0 0.0
  %430 = vmatpush1.msra.mxu0 0.0
  %431 = vmatprep.subr.mxu0 0.0
  %432 = vmatpush1.msra.mxu0 0.0
  %433 = vmatprep.subr.mxu0 0.0
  %434 = vmatpush1.msra.mxu0 0.0
  %435 = vmatprep.subr.mxu0 0.0
  %436 = vmatpush1.msra.mxu0 0.0
  %437 = vmatprep.subr.mxu0 0.0
  %438 = vmatpush1.msra.mxu0 0.0
  %439 = vmatprep.subr.mxu0 0.0
  %440 = vmatpush1.msra.mxu0 0.0
  %441 = vmatprep.subr.mxu0 0.0
  %442 = vmatpush1.msra.mxu0 0.0
  %443 = vmatprep.subr.mxu0 0.0
  %444 = vmatpush1.msra.mxu0 0.0
  %445 = vmatprep.subr.mxu0 0.0
  %446 = vmatpush1.msra.mxu0 0.0
  %447 = vmatprep.subr.mxu0 0.0
  %448 = vmatpush1.msra.mxu0 0.0
  %449 = vmatprep.subr.mxu0 0.0
  %450 = vmatpush1.msra.mxu0 0.0
  %451 = vmatprep.subr.mxu0 0.0
  %452 = vmatpush1.msra.mxu0 0.0
  %453 = vmatprep.subr.mxu0 0.0
  %454 = vmatpush1.msra.mxu0 0.0
  %455 = vmatprep.mubr.f32.mxu0 0.0
  %456 = vmatmul.mubr.f32.gmra.mrb[0].mxu0 %v200
  %v457 = vpop.f32.mrb[0].mxu0
  %v458 = vadd.f32 0.0, %v457
  %v459 = vpop.f32.mrb[0].mxu0
  %460 = vmatprep.mubr.f32.mxu0 0.0
  %461 = vmatmul.mubr.f32.gmra.mrb[0].mxu0 %v203
  %v462 = vpop.f32.mrb[0].mxu0
  %v463 = vadd.f32 0.0, %v462
  %v464 = vpop.f32.mrb[0].mxu0
  %465 = vmatprep.mubr.f32.mxu0 0.0
  %466 = vmatmul.mubr.f32.gmra.mrb[0].mxu0 %v206
  %v467 = vpop.f32.mrb[0].mxu0
  %v468 = vadd.f32 0.0, %v467
  %v469 = vpop.f32.mrb[0].mxu0
  %470 = vmatprep.mubr.f32.mxu0 0.0
  %471 = vmatmul.mubr.f32.gmra.mrb[0].mxu0 %v209
  %v472 = vpop.f32.mrb[0].mxu0
  %v473 = vadd.f32 0.0, %v472
  %v474 = vpop.f32.mrb[0].mxu0
  %475 = vmatprep.mubr.f32.mxu0 0.0
  %476 = vmatmul.mubr.f32.gmra.mrb[0].mxu0 %v212
  %v477 = vpop.f32.mrb[0].mxu0
  %v478 = vadd.f32 0.0, %v477
  %v479 = vpop.f32.mrb[0].mxu0
  %480 = vmatprep.mubr.f32.mxu0 0.0
  %481 = vmatmul.mubr.f32.gmra.mrb[0].mxu0 %v215
  %v482 = vpop.f32.mrb[0].mxu0
  %v483 = vadd.f32 0.0, %v482
  %v484 = vpop.f32.mrb[0].mxu0
  %485 = vmatprep.mubr.f32.mxu0 0.0
  %486 = vmatmul.mubr.f32.gmra.mrb[0].mxu0 %v218
  %v487 = vpop.f32.mrb[0].mxu0
  %v488 = vadd.f32 0.0, %v487
  %v489 = vpop.f32.mrb[0].mxu0
  %490 = vmatprep.mubr.f32.mxu0 0.0
  %491 = vmatmul.mubr.f32.gmra.mrb[0].mxu0 %v221
  %v492 = vpop.f32.mrb[0].mxu0
  %v493 = vadd.f32 0.0, %v492
  %v494 = vpop.f32.mrb[0].mxu0
  %495 = vmatprep.mubr.f32.mxu0 0.0
  %496 = vmatmul.mubr.f32.gmra.mrb[0].mxu0 %v224
  %v497 = vpop.f32.mrb[0].mxu0
  %v498 = vadd.f32 0.0, %v497
  %v499 = vpop.f32.mrb[0].mxu0
  %500 = vmatprep.mubr.f32.mxu0 0.0
  %501 = vmatmul.mubr.f32.gmra.mrb[0].mxu0 %v227
  %v502 = vpop.f32.mrb[0].mxu0
  %v503 = vadd.f32 0.0, %v502
  %v504 = vpop.f32.mrb[0].mxu0
  %505 = vmatprep.mubr.f32.mxu0 0.0
  %506 = vmatmul.mubr.f32.gmra.mrb[0].mxu0 %v230
  %v507 = vpop.f32.mrb[0].mxu0
  %v508 = vadd.f32 0.0, %v507
  %v509 = vpop.f32.mrb[0].mxu0
  %510 = vmatprep.mubr.f32.mxu0 0.0
  %511 = vmatmul.mubr.f32.gmra.mrb[0].mxu0 %v233
  %v512 = vpop.f32.mrb[0].mxu0
  %v513 = vadd.f32 0.0, %v512
  %v514 = vpop.f32.mrb[0].mxu0
  %515 = vmatprep.mubr.f32.mxu0 0.0
  %516 = vmatmul.mubr.f32.gmra.mrb[0].mxu0 %v236
  %v517 = vpop.f32.mrb[0].mxu0
  %v518 = vadd.f32 0.0, %v517
  %v519 = vpop.f32.mrb[0].mxu0
  %520 = vmatprep.mubr.f32.mxu0 0.0
  %521 = vmatmul.mubr.f32.gmra.mrb[0].mxu0 %v239
  %v522 = vpop.f32.mrb[0].mxu0
  %v523 = vadd.f32 0.0, %v522
  %v524 = vpop.f32.mrb[0].mxu0
  %525 = vmatprep.mubr.f32.mxu0 0.0
  %526 = vmatmul.mubr.f32.gmra.mrb[0].mxu0 %v242
  %v527 = vpop.f32.mrb[0].mxu0
  %v528 = vadd.f32 0.0, %v527
  %v529 = vpop.f32.mrb[0].mxu0
  %530 = vmatprep.mubr.f32.mxu0 0.0
  %531 = vmatmul.mubr.f32.gmra.mrb[0].mxu0 %v245
  %v532 = vpop.f32.mrb[0].mxu0
  %v533 = vadd.f32 0.0, %v532
  %v534 = vpop.f32.mrb[0].mxu0
  %535 = vmatprep.mubr.f32.mxu0 0.0
  %536 = vmatmul.mubr.f32.gmra.mrb[0].mxu0 %v248
  %v537 = vpop.f32.mrb[0].mxu0
  %v538 = vadd.f32 0.0, %v537
  %v539 = vpop.f32.mrb[0].mxu0
  %540 = vmatprep.mubr.f32.mxu0 0.0
  %541 = vmatmul.mubr.f32.gmra.mrb[0].mxu0 %v251
  %v542 = vpop.f32.mrb[0].mxu0
  %v543 = vadd.f32 0.0, %v542
  %v544 = vpop.f32.mrb[0].mxu0
  %545 = vmatprep.mubr.f32.mxu0 0.0
  %546 = vmatmul.mubr.f32.gmra.mrb[0].mxu0 %v254
  %v547 = vpop.f32.mrb[0].mxu0
  %v548 = vadd.f32 0.0, %v547
  %v549 = vpop.f32.mrb[0].mxu0
  %550 = vmatprep.mubr.f32.mxu0 0.0
  %551 = vmatmul.mubr.f32.gmra.mrb[0].mxu0 %v257
  %v552 = vpop.f32.mrb[0].mxu0
  %v553 = vadd.f32 0.0, %v552
  %v554 = vpop.f32.mrb[0].mxu0
  %555 = vmatprep.mubr.f32.mxu0 0.0
  %556 = vmatmul.mubr.f32.gmra.mrb[0].mxu0 %v260
  %v557 = vpop.f32.mrb[0].mxu0
  %v558 = vadd.f32 0.0, %v557
  %v559 = vpop.f32.mrb[0].mxu0
  %560 = vmatprep.mubr.f32.mxu0 0.0
  %561 = vmatmul.mubr.f32.gmra.mrb[0].mxu0 %v263
  %v562 = vpop.f32.mrb[0].mxu0
  %v563 = vadd.f32 0.0, %v562
  %v564 = vpop.f32.mrb[0].mxu0
  %565 = vmatprep.mubr.f32.mxu0 0.0
  %566 = vmatmul.mubr.f32.gmra.mrb[0].mxu0 %v266
  %v567 = vpop.f32.mrb[0].mxu0
  %v568 = vadd.f32 0.0, %v567
  %v569 = vpop.f32.mrb[0].mxu0
  %570 = vmatprep.mubr.f32.mxu0 0.0
  %571 = vmatmul.mubr.f32.gmra.mrb[0].mxu0 %v269
  %v572 = vpop.f32.mrb[0].mxu0
  %v573 = vadd.f32 0.0, %v572
  %v574 = vpop.f32.mrb[0].mxu0
  %575 = vmatprep.mubr.f32.mxu0 0.0
  %576 = vmatmul.mubr.f32.gmra.mrb[0].mxu0 %v272
  %v577 = vpop.f32.mrb[0].mxu0
  %v578 = vadd.f32 0.0, %v577
  %v579 = vpop.f32.mrb[0].mxu0
  %580 = vmatprep.mubr.f32.mxu0 0.0
  %581 = vmatmul.mubr.f32.gmra.mrb[0].mxu0 %v275
  %v582 = vpop.f32.mrb[0].mxu0
  %v583 = vadd.f32 0.0, %v582
  %v584 = vpop.f32.mrb[0].mxu0
  %585 = vmatprep.mubr.f32.mxu0 0.0
  %586 = vmatmul.mubr.f32.gmra.mrb[0].mxu0 %v278
  %v587 = vpop.f32.mrb[0].mxu0
  %v588 = vadd.f32 0.0, %v587
  %v589 = vpop.f32.mrb[0].mxu0
  %590 = vmatprep.mubr.f32.mxu0 0.0
  %591 = vmatmul.mubr.f32.gmra.mrb[0].mxu0 %v281
  %v592 = vpop.f32.mrb[0].mxu0
  %v593 = vadd.f32 0.0, %v592
  %v594 = vpop.f32.mrb[0].mxu0
  %595 = vmatprep.mubr.f32.mxu0 0.0
  %596 = vmatmul.mubr.f32.gmra.mrb[0].mxu0 %v284
  %v597 = vpop.f32.mrb[0].mxu0
  %v598 = vadd.f32 0.0, %v597
  %v599 = vpop.f32.mrb[0].mxu0
  %600 = vmatprep.mubr.f32.mxu0 0.0
  %601 = vmatmul.mubr.f32.gmra.mrb[0].mxu0 %v287
  %v602 = vpop.f32.mrb[0].mxu0
  %v603 = vadd.f32 0.0, %v602
  %v604 = vpop.f32.mrb[0].mxu0
  %605 = vmatprep.mubr.f32.mxu0 0.0
  %606 = vmatmul.mubr.f32.gmra.mrb[0].mxu0 %v290
  %v607 = vpop.f32.mrb[0].mxu0
  %v608 = vadd.f32 0.0, %v607
  %v609 = vpop.f32.mrb[0].mxu0
  %610 = vmatprep.mubr.f32.mxu0 0.0
  %611 = vmatmul.mubr.f32.gmra.mrb[0].mxu0 %v293
  %v612 = vpop.f32.mrb[0].mxu0
  %v613 = vadd.f32 0.0, %v612
  %v614 = vpop.f32.mrb[0].mxu0
  %615 = vmatprep.mubr.f32.mxu0 0.0
  %616 = vmatmul.mubr.f32.gmra.mrb[0].mxu0 %v296
  %v617 = vpop.f32.mrb[0].mxu0
  %v618 = vadd.f32 0.0, %v617
  %v619 = vpop.f32.mrb[0].mxu0
  %620 = vmatprep.mubr.f32.mxu0 0.0
  %621 = vmatmul.mubr.f32.gmra.mrb[0].mxu0 %v299
  %v622 = vpop.f32.mrb[0].mxu0
  %v623 = vadd.f32 0.0, %v622
  %v624 = vpop.f32.mrb[0].mxu0
  %625 = vmatprep.mubr.f32.mxu0 0.0
  %626 = vmatmul.mubr.f32.gmra.mrb[0].mxu0 %v302
  %v627 = vpop.f32.mrb[0].mxu0
  %v628 = vadd.f32 0.0, %v627
  %v629 = vpop.f32.mrb[0].mxu0
  %630 = vmatprep.mubr.f32.mxu0 0.0
  %631 = vmatmul.mubr.f32.gmra.mrb[0].mxu0 %v305
  %v632 = vpop.f32.mrb[0].mxu0
  %v633 = vadd.f32 0.0, %v632
  %v634 = vpop.f32.mrb[0].mxu0
  %635 = vmatprep.mubr.f32.mxu0 0.0
  %636 = vmatmul.mubr.f32.gmra.mrb[0].mxu0 %v308
  %v637 = vpop.f32.mrb[0].mxu0
  %v638 = vadd.f32 0.0, %v637
  %v639 = vpop.f32.mrb[0].mxu0
  %640 = vmatprep.mubr.f32.mxu0 0.0
  %641 = vmatmul.mubr.f32.gmra.mrb[0].mxu0 %v311
  %v642 = vpop.f32.mrb[0].mxu0
  %v643 = vadd.f32 0.0, %v642
  %v644 = vpop.f32.mrb[0].mxu0
  %645 = vmatprep.mubr.f32.mxu0 0.0
  %646 = vmatmul.mubr.f32.gmra.mrb[0].mxu0 %v314
  %v647 = vpop.f32.mrb[0].mxu0
  %v648 = vadd.f32 0.0, %v647
  %v649 = vpop.f32.mrb[0].mxu0
  %650 = vmatprep.mubr.f32.mxu0 0.0
  %651 = vmatmul.mubr.f32.gmra.mrb[0].mxu0 %v317
  %v652 = vpop.f32.mrb[0].mxu0
  %v653 = vadd.f32 0.0, %v652
  %v654 = vpop.f32.mrb[0].mxu0
  %655 = vmatprep.mubr.f32.mxu0 0.0
  %656 = vmatmul.mubr.f32.gmra.mrb[0].mxu0 %v320
  %v657 = vpop.f32.mrb[0].mxu0
  %v658 = vadd.f32 0.0, %v657
  %v659 = vpop.f32.mrb[0].mxu0
  %660 = vmatprep.mubr.f32.mxu0 0.0
  %661 = vmatmul.mubr.f32.gmra.mrb[0].mxu0 %v323
  %v662 = vpop.f32.mrb[0].mxu0
  %v663 = vadd.f32 0.0, %v662
  %v664 = vpop.f32.mrb[0].mxu0
  %665 = vmatprep.mubr.f32.mxu0 0.0
  %666 = vmatmul.mubr.f32.gmra.mrb[0].mxu0 %v326
  %v667 = vpop.f32.mrb[0].mxu0
  %v668 = vadd.f32 0.0, %v667
  %v669 = vpop.f32.mrb[0].mxu0
  %670 = vmatprep.mubr.f32.mxu0 0.0
  %671 = vmatmul.mubr.f32.gmra.mrb[0].mxu0 %v329
  %v672 = vpop.f32.mrb[0].mxu0
  %v673 = vadd.f32 0.0, %v672
  %v674 = vpop.f32.mrb[0].mxu0
  %675 = vmatprep.mubr.f32.mxu0 0.0
  %676 = vmatmul.mubr.f32.gmra.mrb[0].mxu0 %v332
  %v677 = vpop.f32.mrb[0].mxu0
  %v678 = vadd.f32 0.0, %v677
  %v679 = vpop.f32.mrb[0].mxu0
  %680 = vmatprep.mubr.f32.mxu0 0.0
  %681 = vmatmul.mubr.f32.gmra.mrb[0].mxu0 %v335
  %v682 = vpop.f32.mrb[0].mxu0
  %v683 = vadd.f32 0.0, %v682
  %v684 = vpop.f32.mrb[0].mxu0
  %685 = vmatprep.mubr.f32.mxu0 0.0
  %686 = vmatmul.mubr.f32.gmra.mrb[0].mxu0 %v338
  %v687 = vpop.f32.mrb[0].mxu0
  %v688 = vadd.f32 0.0, %v687
  %v689 = vpop.f32.mrb[0].mxu0
  %690 = vmatprep.mubr.f32.mxu0 0.0
  %691 = vmatmul.mubr.f32.gmra.mrb[0].mxu0 %v341
  %v692 = vpop.f32.mrb[0].mxu0
  %v693 = vadd.f32 0.0, %v692
  %v694 = vpop.f32.mrb[0].mxu0
  %695 = vmatprep.mubr.f32.mxu0 0.0
  %696 = vmatmul.mubr.f32.gmra.mrb[0].mxu0 %v344
  %v697 = vpop.f32.mrb[0].mxu0
  %v698 = vadd.f32 0.0, %v697
  %v699 = vpop.f32.mrb[0].mxu0
  %700 = vmatprep.mubr.f32.mxu0 0.0
  %701 = vmatmul.mubr.f32.gmra.mrb[0].mxu0 %v347
  %v702 = vpop.f32.mrb[0].mxu0
  %v703 = vadd.f32 0.0, %v702
  %v704 = vpop.f32.mrb[0].mxu0
  %705 = vmatprep.mubr.f32.mxu0 0.0
  %706 = vmatmul.mubr.f32.gmra.mrb[0].mxu0 %v350
  %v707 = vpop.f32.mrb[0].mxu0
  %v708 = vadd.f32 0.0, %v707
  %v709 = vpop.f32.mrb[0].mxu0
  %710 = vmatprep.mubr.f32.mxu0 0.0
  %711 = vmatmul.mubr.f32.gmra.mrb[0].mxu0 %v353
  %v712 = vpop.f32.mrb[0].mxu0
  %v713 = vadd.f32 0.0, %v712
  %v714 = vpop.f32.mrb[0].mxu0
  %715 = vmatprep.mubr.f32.mxu0 0.0
  %716 = vmatmul.mubr.f32.gmra.mrb[0].mxu0 %v356
  %v717 = vpop.f32.mrb[0].mxu0
  %v718 = vadd.f32 0.0, %v717
  %v719 = vpop.f32.mrb[0].mxu0
  %720 = vmatprep.mubr.f32.mxu0 0.0
  %721 = vmatmul.mubr.f32.gmra.mrb[0].mxu0 %v359
  %v722 = vpop.f32.mrb[0].mxu0
  %v723 = vadd.f32 0.0, %v722
  %v724 = vpop.f32.mrb[0].mxu0
  %725 = vmatprep.mubr.f32.mxu0 0.0
  %726 = vmatmul.mubr.f32.gmra.mrb[0].mxu0 %v362
  %v727 = vpop.f32.mrb[0].mxu0
  %v728 = vadd.f32 0.0, %v727
  %v729 = vpop.f32.mrb[0].mxu0
  %730 = vmatprep.mubr.f32.mxu0 0.0
  %731 = vmatmul.mubr.f32.gmra.mrb[0].mxu0 %v365
  %v732 = vpop.f32.mrb[0].mxu0
  %v733 = vadd.f32 0.0, %v732
  %v734 = vpop.f32.mrb[0].mxu0
  %735 = vmatprep.mubr.f32.mxu0 0.0
  %736 = vmatmul.mubr.f32.gmra.mrb[0].mxu0 %v368
  %v737 = vpop.f32.mrb[0].mxu0
  %v738 = vadd.f32 0.0, %v737
  %v739 = vpop.f32.mrb[0].mxu0
  %740 = vmatprep.mubr.f32.mxu0 0.0
  %741 = vmatmul.mubr.f32.gmra.mrb[0].mxu0 %v371
  %v742 = vpop.f32.mrb[0].mxu0
  %v743 = vadd.f32 0.0, %v742
  %v744 = vpop.f32.mrb[0].mxu0
  %745 = vmatprep.mubr.f32.mxu0 0.0
  %746 = vmatmul.mubr.f32.gmra.mrb[0].mxu0 %v374
  %v747 = vpop.f32.mrb[0].mxu0
  %v748 = vadd.f32 0.0, %v747
  %v749 = vpop.f32.mrb[0].mxu0
  %750 = vmatprep.mubr.f32.mxu0 0.0
  %751 = vmatmul.mubr.f32.gmra.mrb[0].mxu0 %v377
  %v752 = vpop.f32.mrb[0].mxu0
  %v753 = vadd.f32 0.0, %v752
  %v754 = vpop.f32.mrb[0].mxu0
  %755 = vmatprep.mubr.f32.mxu0 0.0
  %756 = vmatmul.mubr.f32.gmra.mrb[0].mxu0 %v380
  %v757 = vpop.f32.mrb[0].mxu0
  %v758 = vadd.f32 0.0, %v757
  %v759 = vpop.f32.mrb[0].mxu0
  %760 = vmatprep.mubr.f32.mxu0 0.0
  %761 = vmatmul.mubr.f32.gmra.mrb[0].mxu0 %v383
  %v762 = vpop.f32.mrb[0].mxu0
  %v763 = vadd.f32 0.0, %v762
  %v764 = vpop.f32.mrb[0].mxu0
  %765 = vmatprep.mubr.f32.mxu0 0.0
  %766 = vmatmul.mubr.f32.gmra.mrb[0].mxu0 %v386
  %v767 = vpop.f32.mrb[0].mxu0
  %v768 = vadd.f32 0.0, %v767
  %v769 = vpop.f32.mrb[0].mxu0
  %770 = vmatprep.mubr.f32.mxu0 0.0
  %771 = vmatmul.mubr.f32.gmra.mrb[0].mxu0 %v389
  %v772 = vpop.f32.mrb[0].mxu0
  %v773 = vadd.f32 0.0, %v772
  %v774 = vpop.f32.mrb[0].mxu0
  %775 = vdwg.mxu0
  %v776 = vlaneseq
  %v777 = vshrl.u32 %v776, 7
  %v778 = vsub.s32 0, %v777
  %v779 = vrot.slane %v30, %v778
  %v780 = vmul.f32 %v458, %v779
  %v781 = vmul.f32 %v463, %v779
  %v782 = vmul.f32 %v468, %v779
  %v783 = vmul.f32 %v473, %v779
  %v784 = vmul.f32 %v478, %v779
  %v785 = vmul.f32 %v483, %v779
  %v786 = vmul.f32 %v488, %v779
  %v787 = vmul.f32 %v493, %v779
  %v788 = vmul.f32 %v498, %v779
  %v789 = vmul.f32 %v503, %v779
  %v790 = vmul.f32 %v508, %v779
  %v791 = vmul.f32 %v513, %v779
  %v792 = vmul.f32 %v518, %v779
  %v793 = vmul.f32 %v523, %v779
  %v794 = vmul.f32 %v528, %v779
  %v795 = vmul.f32 %v533, %v779
  %v796 = vmul.f32 %v538, %v779
  %v797 = vmul.f32 %v543, %v779
  %v798 = vmul.f32 %v548, %v779
  %v799 = vmul.f32 %v553, %v779
  %v800 = vmul.f32 %v558, %v779
  %v801 = vmul.f32 %v563, %v779
  %v802 = vmul.f32 %v568, %v779
  %v803 = vmul.f32 %v573, %v779
  %v804 = vmul.f32 %v578, %v779
  %v805 = vmul.f32 %v583, %v779
  %v806 = vmul.f32 %v588, %v779
  %v807 = vmul.f32 %v593, %v779
  %v808 = vmul.f32 %v598, %v779
  %v809 = vmul.f32 %v603, %v779
  %v810 = vmul.f32 %v608, %v779
  %v811 = vmul.f32 %v613, %v779
  %v812 = vmul.f32 %v618, %v779
  %v813 = vmul.f32 %v623, %v779
  %v814 = vmul.f32 %v628, %v779
  %v815 = vmul.f32 %v633, %v779
  %v816 = vmul.f32 %v638, %v779
  %v817 = vmul.f32 %v643, %v779
  %v818 = vmul.f32 %v648, %v779
  %v819 = vmul.f32 %v653, %v779
  %v820 = vmul.f32 %v658, %v779
  %v821 = vmul.f32 %v663, %v779
  %v822 = vmul.f32 %v668, %v779
  %v823 = vmul.f32 %v673, %v779
  %v824 = vmul.f32 %v678, %v779
  %v825 = vmul.f32 %v683, %v779
  %v826 = vmul.f32 %v688, %v779
  %v827 = vmul.f32 %v693, %v779
  %v828 = vmul.f32 %v698, %v779
  %v829 = vmul.f32 %v703, %v779
  %v830 = vmul.f32 %v708, %v779
  %v831 = vmul.f32 %v713, %v779
  %v832 = vmul.f32 %v718, %v779
  %v833 = vmul.f32 %v723, %v779
  %v834 = vmul.f32 %v728, %v779
  %v835 = vmul.f32 %v733, %v779
  %v836 = vmul.f32 %v738, %v779
  %v837 = vmul.f32 %v743, %v779
  %v838 = vmul.f32 %v748, %v779
  %v839 = vmul.f32 %v753, %v779
  %v840 = vmul.f32 %v758, %v779
  %v841 = vmul.f32 %v763, %v779
  %v842 = vmul.f32 %v768, %v779
  %v843 = vmul.f32 %v773, %v779
  %v844 = vlaneseq
  %v845 = vshrl.u32 %v844, 7
  %v846 = vsub.s32 0, %v845
  %v847 = vrot.slane %v31, %v846
  %v848 = vadd.f32 %v780, %v847
  %v849 = vadd.f32 %v781, %v847
  %v850 = vadd.f32 %v782, %v847
  %v851 = vadd.f32 %v783, %v847
  %v852 = vadd.f32 %v784, %v847
  %v853 = vadd.f32 %v785, %v847
  %v854 = vadd.f32 %v786, %v847
  %v855 = vadd.f32 %v787, %v847
  %v856 = vadd.f32 %v788, %v847
  %v857 = vadd.f32 %v789, %v847
  %v858 = vadd.f32 %v790, %v847
  %v859 = vadd.f32 %v791, %v847
  %v860 = vadd.f32 %v792, %v847
  %v861 = vadd.f32 %v793, %v847
  %v862 = vadd.f32 %v794, %v847
  %v863 = vadd.f32 %v795, %v847
  %v864 = vadd.f32 %v796, %v847
  %v865 = vadd.f32 %v797, %v847
  %v866 = vadd.f32 %v798, %v847
  %v867 = vadd.f32 %v799, %v847
  %v868 = vadd.f32 %v800, %v847
  %v869 = vadd.f32 %v801, %v847
  %v870 = vadd.f32 %v802, %v847
  %v871 = vadd.f32 %v803, %v847
  %v872 = vadd.f32 %v804, %v847
  %v873 = vadd.f32 %v805, %v847
  %v874 = vadd.f32 %v806, %v847
  %v875 = vadd.f32 %v807, %v847
  %v876 = vadd.f32 %v808, %v847
  %v877 = vadd.f32 %v809, %v847
  %v878 = vadd.f32 %v810, %v847
  %v879 = vadd.f32 %v811, %v847
  %v880 = vadd.f32 %v812, %v847
  %v881 = vadd.f32 %v813, %v847
  %v882 = vadd.f32 %v814, %v847
  %v883 = vadd.f32 %v815, %v847
  %v884 = vadd.f32 %v816, %v847
  %v885 = vadd.f32 %v817, %v847
  %v886 = vadd.f32 %v818, %v847
  %v887 = vadd.f32 %v819, %v847
  %v888 = vadd.f32 %v820, %v847
  %v889 = vadd.f32 %v821, %v847
  %v890 = vadd.f32 %v822, %v847
  %v891 = vadd.f32 %v823, %v847
  %v892 = vadd.f32 %v824, %v847
  %v893 = vadd.f32 %v825, %v847
  %v894 = vadd.f32 %v826, %v847
  %v895 = vadd.f32 %v827, %v847
  %v896 = vadd.f32 %v828, %v847
  %v897 = vadd.f32 %v829, %v847
  %v898 = vadd.f32 %v830, %v847
  %v899 = vadd.f32 %v831, %v847
  %v900 = vadd.f32 %v832, %v847
  %v901 = vadd.f32 %v833, %v847
  %v902 = vadd.f32 %v834, %v847
  %v903 = vadd.f32 %v835, %v847
  %v904 = vadd.f32 %v836, %v847
  %v905 = vadd.f32 %v837, %v847
  %v906 = vadd.f32 %v838, %v847
  %v907 = vadd.f32 %v839, %v847
  %v908 = vadd.f32 %v840, %v847
  %v909 = vadd.f32 %v841, %v847
  %v910 = vadd.f32 %v842, %v847
  %v911 = vadd.f32 %v843, %v847
  %v912 = vmax.f32 %v848, 0.0
  %v913 = vmax.f32 %v849, 0.0
  %v914 = vmax.f32 %v850, 0.0
  %v915 = vmax.f32 %v851, 0.0
  %v916 = vmax.f32 %v852, 0.0
  %v917 = vmax.f32 %v853, 0.0
  %v918 = vmax.f32 %v854, 0.0
  %v919 = vmax.f32 %v855, 0.0
  %v920 = vmax.f32 %v856, 0.0
  %v921 = vmax.f32 %v857, 0.0
  %v922 = vmax.f32 %v858, 0.0
  %v923 = vmax.f32 %v859, 0.0
  %v924 = vmax.f32 %v860, 0.0
  %v925 = vmax.f32 %v861, 0.0
  %v926 = vmax.f32 %v862, 0.0
  %v927 = vmax.f32 %v863, 0.0
  %v928 = vmax.f32 %v864, 0.0
  %v929 = vmax.f32 %v865, 0.0
  %v930 = vmax.f32 %v866, 0.0
  %v931 = vmax.f32 %v867, 0.0
  %v932 = vmax.f32 %v868, 0.0
  %v933 = vmax.f32 %v869, 0.0
  %v934 = vmax.f32 %v870, 0.0
  %v935 = vmax.f32 %v871, 0.0
  %v936 = vmax.f32 %v872, 0.0
  %v937 = vmax.f32 %v873, 0.0
  %v938 = vmax.f32 %v874, 0.0
  %v939 = vmax.f32 %v875, 0.0
  %v940 = vmax.f32 %v876, 0.0
  %v941 = vmax.f32 %v877, 0.0
  %v942 = vmax.f32 %v878, 0.0
  %v943 = vmax.f32 %v879, 0.0
  %v944 = vmax.f32 %v880, 0.0
  %v945 = vmax.f32 %v881, 0.0
  %v946 = vmax.f32 %v882, 0.0
  %v947 = vmax.f32 %v883, 0.0
  %v948 = vmax.f32 %v884, 0.0
  %v949 = vmax.f32 %v885, 0.0
  %v950 = vmax.f32 %v886, 0.0
  %v951 = vmax.f32 %v887, 0.0
  %v952 = vmax.f32 %v888, 0.0
  %v953 = vmax.f32 %v889, 0.0
  %v954 = vmax.f32 %v890, 0.0
  %v955 = vmax.f32 %v891, 0.0
  %v956 = vmax.f32 %v892, 0.0
  %v957 = vmax.f32 %v893, 0.0
  %v958 = vmax.f32 %v894, 0.0
  %v959 = vmax.f32 %v895, 0.0
  %v960 = vmax.f32 %v896, 0.0
  %v961 = vmax.f32 %v897, 0.0
  %v962 = vmax.f32 %v898, 0.0
  %v963 = vmax.f32 %v899, 0.0
  %v964 = vmax.f32 %v900, 0.0
  %v965 = vmax.f32 %v901, 0.0
  %v966 = vmax.f32 %v902, 0.0
  %v967 = vmax.f32 %v903, 0.0
  %v968 = vmax.f32 %v904, 0.0
  %v969 = vmax.f32 %v905, 0.0
  %v970 = vmax.f32 %v906, 0.0
  %v971 = vmax.f32 %v907, 0.0
  %v972 = vmax.f32 %v908, 0.0
  %v973 = vmax.f32 %v909, 0.0
  %v974 = vmax.f32 %v910, 0.0
  %v975 = vmax.f32 %v911, 0.0
  %v976 = vrot.slane %v912, 7
  %v977 = vrot.slane %v913, 7
  %v978 = vrot.slane %v914, 7
  %v979 = vrot.slane %v915, 7
  %v980 = vrot.slane %v916, 7
  %v981 = vrot.slane %v917, 7
  %v982 = vrot.slane %v918, 7
  %v983 = vrot.slane %v919, 7
  %v984 = vrot.slane %v920, 7
  %v985 = vrot.slane %v921, 7
  %v986 = vrot.slane %v922, 7
  %v987 = vrot.slane %v923, 7
  %v988 = vrot.slane %v924, 7
  %v989 = vrot.slane %v925, 7
  %v990 = vrot.slane %v926, 7
  %v991 = vrot.slane %v927, 7
  %v992 = vrot.slane %v928, 7
  %v993 = vrot.slane %v929, 7
  %v994 = vrot.slane %v930, 7
  %v995 = vrot.slane %v931, 7
  %v996 = vrot.slane %v932, 7
  %v997 = vrot.slane %v933, 7
  %v998 = vrot.slane %v934, 7
  %v999 = vrot.slane %v935, 7
  %v1000 = vrot.slane %v936, 7
  %v1001 = vrot.slane %v937, 7
  %v1002 = vrot.slane %v938, 7
  %v1003 = vrot.slane %v939, 7
  %v1004 = vrot.slane %v940, 7
  %v1005 = vrot.slane %v941, 7
  %v1006 = vrot.slane %v942, 7
  %v1007 = vrot.slane %v943, 7
  %v1008 = vrot.slane %v944, 7
  %v1009 = vrot.slane %v945, 7
  %v1010 = vrot.slane %v946, 7
  %v1011 = vrot.slane %v947, 7
  %v1012 = vrot.slane %v948, 7
  %v1013 = vrot.slane %v949, 7
  %v1014 = vrot.slane %v950, 7
  %v1015 = vrot.slane %v951, 7
  %v1016 = vrot.slane %v952, 7
  %v1017 = vrot.slane %v953, 7
  %v1018 = vrot.slane %v954, 7
  %v1019 = vrot.slane %v955, 7
  %v1020 = vrot.slane %v956, 7
  %v1021 = vrot.slane %v957, 7
  %v1022 = vrot.slane %v958, 7
  %v1023 = vrot.slane %v959, 7
  %v1024 = vrot.slane %v960, 7
  %v1025 = vrot.slane %v961, 7
  %v1026 = vrot.slane %v962, 7
  %v1027 = vrot.slane %v963, 7
  %v1028 = vrot.slane %v964, 7
  %v1029 = vrot.slane %v965, 7
  %v1030 = vrot.slane %v966, 7
  %v1031 = vrot.slane %v967, 7
  %v1032 = vrot.slane %v968, 7
  %v1033 = vrot.slane %v969, 7
  %v1034 = vrot.slane %v970, 7
  %v1035 = vrot.slane %v971, 7
  %v1036 = vrot.slane %v972, 7
  %v1037 = vrot.slane %v973, 7
  %v1038 = vrot.slane %v974, 7
  %v1039 = vrot.slane %v975, 7
  %vm1040 = vcmp.lt.s32.totalorder %v39, 1
  %v1041 = vsel %vm1040, %v1038, %v1039
  %v1042 = vsel %vm1040, %v1037, %v1038
  %v1043 = vsel %vm1040, %v1036, %v1037
  %v1044 = vsel %vm1040, %v1035, %v1036
  %v1045 = vsel %vm1040, %v1034, %v1035
  %v1046 = vsel %vm1040, %v1033, %v1034
  %v1047 = vsel %vm1040, %v1032, %v1033
  %v1048 = vsel %vm1040, %v1031, %v1032
  %v1049 = vsel %vm1040, %v1030, %v1031
  %v1050 = vsel %vm1040, %v1029, %v1030
  %v1051 = vsel %vm1040, %v1028, %v1029
  %v1052 = vsel %vm1040, %v1027, %v1028
  %v1053 = vsel %vm1040, %v1026, %v1027
  %v1054 = vsel %vm1040, %v1025, %v1026
  %v1055 = vsel %vm1040, %v1024, %v1025
  %v1056 = vsel %vm1040, %v1023, %v1024
  %v1057 = vsel %vm1040, %v1022, %v1023
  %v1058 = vsel %vm1040, %v1021, %v1022
  %v1059 = vsel %vm1040, %v1020, %v1021
  %v1060 = vsel %vm1040, %v1019, %v1020
  %v1061 = vsel %vm1040, %v1018, %v1019
  %v1062 = vsel %vm1040, %v1017, %v1018
  %v1063 = vsel %vm1040, %v1016, %v1017
  %v1064 = vsel %vm1040, %v1015, %v1016
  %v1065 = vsel %vm1040, %v1014, %v1015
  %v1066 = vsel %vm1040, %v1013, %v1014
  %v1067 = vsel %vm1040, %v1012, %v1013
  %v1068 = vsel %vm1040, %v1011, %v1012
  %v1069 = vsel %vm1040, %v1010, %v1011
  %v1070 = vsel %vm1040, %v1009, %v1010
  %v1071 = vsel %vm1040, %v1008, %v1009
  %v1072 = vsel %vm1040, %v1007, %v1008
  %v1073 = vsel %vm1040, %v1006, %v1007
  %v1074 = vsel %vm1040, %v1005, %v1006
  %v1075 = vsel %vm1040, %v1004, %v1005
  %v1076 = vsel %vm1040, %v1003, %v1004
  %v1077 = vsel %vm1040, %v1002, %v1003
  %v1078 = vsel %vm1040, %v1001, %v1002
  %v1079 = vsel %vm1040, %v1000, %v1001
  %v1080 = vsel %vm1040, %v999, %v1000
  %v1081 = vsel %vm1040, %v998, %v999
  %v1082 = vsel %vm1040, %v997, %v998
  %v1083 = vsel %vm1040, %v996, %v997
  %v1084 = vsel %vm1040, %v995, %v996
  %v1085 = vsel %vm1040, %v994, %v995
  %v1086 = vsel %vm1040, %v993, %v994
  %v1087 = vsel %vm1040, %v992, %v993
  %v1088 = vsel %vm1040, %v991, %v992
  %v1089 = vsel %vm1040, %v990, %v991
  %v1090 = vsel %vm1040, %v989, %v990
  %v1091 = vsel %vm1040, %v988, %v989
  %v1092 = vsel %vm1040, %v987, %v988
  %v1093 = vsel %vm1040, %v986, %v987
  %v1094 = vsel %vm1040, %v985, %v986
  %v1095 = vsel %vm1040, %v984, %v985
  %v1096 = vsel %vm1040, %v983, %v984
  %v1097 = vsel %vm1040, %v982, %v983
  %v1098 = vsel %vm1040, %v981, %v982
  %v1099 = vsel %vm1040, %v980, %v981
  %v1100 = vsel %vm1040, %v979, %v980
  %v1101 = vsel %vm1040, %v978, %v979
  %v1102 = vsel %vm1040, %v977, %v978
  %v1103 = vsel %vm1040, %v976, %v977
  %v1104 = vsel %vm1040, %v1039, %v976
  %v1105 = vsel %vm47, 1, 0
  %v1106 = vsel %vm48, 1, 0
  %v1107 = vsel %vm49, 1, 0
  %v1108 = vsel %vm50, 1, 0
  %v1109 = vsel %vm51, 1, 0
  %v1110 = vsel %vm52, 1, 0
  %v1111 = vsel %vm53, 1, 0
  %v1112 = vsel %vm54, 1, 0
  %vm1113 = vcmp.eq.s32.totalorder %v1105, 1
  %vm1114 = vcmp.eq.s32.totalorder %v1106, 1
  %vm1115 = vcmp.eq.s32.totalorder %v1107, 1
  %vm1116 = vcmp.eq.s32.totalorder %v1108, 1
  %vm1117 = vcmp.eq.s32.totalorder %v1109, 1
  %vm1118 = vcmp.eq.s32.totalorder %v1110, 1
  %vm1119 = vcmp.eq.s32.totalorder %v1111, 1
  %vm1120 = vcmp.eq.s32.totalorder %v1112, 1
  %v1121 = vsel %vm1113, %v1104, 0.0
  %v1122 = vsel %vm1114, %v1103, 0.0
  %v1123 = vsel %vm1115, %v1102, 0.0
  %v1124 = vsel %vm1116, %v1101, 0.0
  %v1125 = vsel %vm1117, %v1100, 0.0
  %v1126 = vsel %vm1118, %v1099, 0.0
  %v1127 = vsel %vm1119, %v1098, 0.0
  %v1128 = vsel %vm1120, %v1097, 0.0
  %v1129 = vsel %vm1113, %v1096, 0.0
  %v1130 = vsel %vm1114, %v1095, 0.0
  %v1131 = vsel %vm1115, %v1094, 0.0
  %v1132 = vsel %vm1116, %v1093, 0.0
  %v1133 = vsel %vm1117, %v1092, 0.0
  %v1134 = vsel %vm1118, %v1091, 0.0
  %v1135 = vsel %vm1119, %v1090, 0.0
  %v1136 = vsel %vm1120, %v1089, 0.0
  %v1137 = vsel %vm1113, %v1088, 0.0
  %v1138 = vsel %vm1114, %v1087, 0.0
  %v1139 = vsel %vm1115, %v1086, 0.0
  %v1140 = vsel %vm1116, %v1085, 0.0
  %v1141 = vsel %vm1117, %v1084, 0.0
  %v1142 = vsel %vm1118, %v1083, 0.0
  %v1143 = vsel %vm1119, %v1082, 0.0
  %v1144 = vsel %vm1120, %v1081, 0.0
  %v1145 = vsel %vm1113, %v1080, 0.0
  %v1146 = vsel %vm1114, %v1079, 0.0
  %v1147 = vsel %vm1115, %v1078, 0.0
  %v1148 = vsel %vm1116, %v1077, 0.0
  %v1149 = vsel %vm1117, %v1076, 0.0
  %v1150 = vsel %vm1118, %v1075, 0.0
  %v1151 = vsel %vm1119, %v1074, 0.0
  %v1152 = vsel %vm1120, %v1073, 0.0
  %v1153 = vsel %vm1113, %v1072, 0.0
  %v1154 = vsel %vm1114, %v1071, 0.0
  %v1155 = vsel %vm1115, %v1070, 0.0
  %v1156 = vsel %vm1116, %v1069, 0.0
  %v1157 = vsel %vm1117, %v1068, 0.0
  %v1158 = vsel %vm1118, %v1067, 0.0
  %v1159 = vsel %vm1119, %v1066, 0.0
  %v1160 = vsel %vm1120, %v1065, 0.0
  %v1161 = vsel %vm1113, %v1064, 0.0
  %v1162 = vsel %vm1114, %v1063, 0.0
  %v1163 = vsel %vm1115, %v1062, 0.0
  %v1164 = vsel %vm1116, %v1061, 0.0
  %v1165 = vsel %vm1117, %v1060, 0.0
  %v1166 = vsel %vm1118, %v1059, 0.0
  %v1167 = vsel %vm1119, %v1058, 0.0
  %v1168 = vsel %vm1120, %v1057, 0.0
  %v1169 = vsel %vm1113, %v1056, 0.0
  %v1170 = vsel %vm1114, %v1055, 0.0
  %v1171 = vsel %vm1115, %v1054, 0.0
  %v1172 = vsel %vm1116, %v1053, 0.0
  %v1173 = vsel %vm1117, %v1052, 0.0
  %v1174 = vsel %vm1118, %v1051, 0.0
  %v1175 = vsel %vm1119, %v1050, 0.0
  %v1176 = vsel %vm1120, %v1049, 0.0
  %v1177 = vsel %vm1113, %v1048, 0.0
  %v1178 = vsel %vm1114, %v1047, 0.0
  %v1179 = vsel %vm1115, %v1046, 0.0
  %v1180 = vsel %vm1116, %v1045, 0.0
  %v1181 = vsel %vm1117, %v1044, 0.0
  %v1182 = vsel %vm1118, %v1043, 0.0
  %v1183 = vsel %vm1119, %v1042, 0.0
  %v1184 = vsel %vm1120, %v1041, 0.0
  %v1185 = vrot.slane %v912, 1
  %v1186 = vrot.slane %v913, 1
  %v1187 = vrot.slane %v914, 1
  %v1188 = vrot.slane %v915, 1
  %v1189 = vrot.slane %v916, 1
  %v1190 = vrot.slane %v917, 1
  %v1191 = vrot.slane %v918, 1
  %v1192 = vrot.slane %v919, 1
  %v1193 = vrot.slane %v920, 1
  %v1194 = vrot.slane %v921, 1
  %v1195 = vrot.slane %v922, 1
  %v1196 = vrot.slane %v923, 1
  %v1197 = vrot.slane %v924, 1
  %v1198 = vrot.slane %v925, 1
  %v1199 = vrot.slane %v926, 1
  %v1200 = vrot.slane %v927, 1
  %v1201 = vrot.slane %v928, 1
  %v1202 = vrot.slane %v929, 1
  %v1203 = vrot.slane %v930, 1
  %v1204 = vrot.slane %v931, 1
  %v1205 = vrot.slane %v932, 1
  %v1206 = vrot.slane %v933, 1
  %v1207 = vrot.slane %v934, 1
  %v1208 = vrot.slane %v935, 1
  %v1209 = vrot.slane %v936, 1
  %v1210 = vrot.slane %v937, 1
  %v1211 = vrot.slane %v938, 1
  %v1212 = vrot.slane %v939, 1
  %v1213 = vrot.slane %v940, 1
  %v1214 = vrot.slane %v941, 1
  %v1215 = vrot.slane %v942, 1
  %v1216 = vrot.slane %v943, 1
  %v1217 = vrot.slane %v944, 1
  %v1218 = vrot.slane %v945, 1
  %v1219 = vrot.slane %v946, 1
  %v1220 = vrot.slane %v947, 1
  %v1221 = vrot.slane %v948, 1
  %v1222 = vrot.slane %v949, 1
  %v1223 = vrot.slane %v950, 1
  %v1224 = vrot.slane %v951, 1
  %v1225 = vrot.slane %v952, 1
  %v1226 = vrot.slane %v953, 1
  %v1227 = vrot.slane %v954, 1
  %v1228 = vrot.slane %v955, 1
  %v1229 = vrot.slane %v956, 1
  %v1230 = vrot.slane %v957, 1
  %v1231 = vrot.slane %v958, 1
  %v1232 = vrot.slane %v959, 1
  %v1233 = vrot.slane %v960, 1
  %v1234 = vrot.slane %v961, 1
  %v1235 = vrot.slane %v962, 1
  %v1236 = vrot.slane %v963, 1
  %v1237 = vrot.slane %v964, 1
  %v1238 = vrot.slane %v965, 1
  %v1239 = vrot.slane %v966, 1
  %v1240 = vrot.slane %v967, 1
  %v1241 = vrot.slane %v968, 1
  %v1242 = vrot.slane %v969, 1
  %v1243 = vrot.slane %v970, 1
  %v1244 = vrot.slane %v971, 1
  %v1245 = vrot.slane %v972, 1
  %v1246 = vrot.slane %v973, 1
  %v1247 = vrot.slane %v974, 1
  %v1248 = vrot.slane %v975, 1
  %vm1249 = vcmp.lt.s32.totalorder %v39, 7
  %v1250 = vsel %vm1249, %v1247, %v1248
  %v1251 = vsel %vm1249, %v1246, %v1247
  %v1252 = vsel %vm1249, %v1245, %v1246
  %v1253 = vsel %vm1249, %v1244, %v1245
  %v1254 = vsel %vm1249, %v1243, %v1244
  %v1255 = vsel %vm1249, %v1242, %v1243
  %v1256 = vsel %vm1249, %v1241, %v1242
  %v1257 = vsel %vm1249, %v1240, %v1241
  %v1258 = vsel %vm1249, %v1239, %v1240
  %v1259 = vsel %vm1249, %v1238, %v1239
  %v1260 = vsel %vm1249, %v1237, %v1238
  %v1261 = vsel %vm1249, %v1236, %v1237
  %v1262 = vsel %vm1249, %v1235, %v1236
  %v1263 = vsel %vm1249, %v1234, %v1235
  %v1264 = vsel %vm1249, %v1233, %v1234
  %v1265 = vsel %vm1249, %v1232, %v1233
  %v1266 = vsel %vm1249, %v1231, %v1232
  %v1267 = vsel %vm1249, %v1230, %v1231
  %v1268 = vsel %vm1249, %v1229, %v1230
  %v1269 = vsel %vm1249, %v1228, %v1229
  %v1270 = vsel %vm1249, %v1227, %v1228
  %v1271 = vsel %vm1249, %v1226, %v1227
  %v1272 = vsel %vm1249, %v1225, %v1226
  %v1273 = vsel %vm1249, %v1224, %v1225
  %v1274 = vsel %vm1249, %v1223, %v1224
  %v1275 = vsel %vm1249, %v1222, %v1223
  %v1276 = vsel %vm1249, %v1221, %v1222
  %v1277 = vsel %vm1249, %v1220, %v1221
  %v1278 = vsel %vm1249, %v1219, %v1220
  %v1279 = vsel %vm1249, %v1218, %v1219
  %v1280 = vsel %vm1249, %v1217, %v1218
  %v1281 = vsel %vm1249, %v1216, %v1217
  %v1282 = vsel %vm1249, %v1215, %v1216
  %v1283 = vsel %vm1249, %v1214, %v1215
  %v1284 = vsel %vm1249, %v1213, %v1214
  %v1285 = vsel %vm1249, %v1212, %v1213
  %v1286 = vsel %vm1249, %v1211, %v1212
  %v1287 = vsel %vm1249, %v1210, %v1211
  %v1288 = vsel %vm1249, %v1209, %v1210
  %v1289 = vsel %vm1249, %v1208, %v1209
  %v1290 = vsel %vm1249, %v1207, %v1208
  %v1291 = vsel %vm1249, %v1206, %v1207
  %v1292 = vsel %vm1249, %v1205, %v1206
  %v1293 = vsel %vm1249, %v1204, %v1205
  %v1294 = vsel %vm1249, %v1203, %v1204
  %v1295 = vsel %vm1249, %v1202, %v1203
  %v1296 = vsel %vm1249, %v1201, %v1202
  %v1297 = vsel %vm1249, %v1200, %v1201
  %v1298 = vsel %vm1249, %v1199, %v1200
  %v1299 = vsel %vm1249, %v1198, %v1199
  %v1300 = vsel %vm1249, %v1197, %v1198
  %v1301 = vsel %vm1249, %v1196, %v1197
  %v1302 = vsel %vm1249, %v1195, %v1196
  %v1303 = vsel %vm1249, %v1194, %v1195
  %v1304 = vsel %vm1249, %v1193, %v1194
  %v1305 = vsel %vm1249, %v1192, %v1193
  %v1306 = vsel %vm1249, %v1191, %v1192
  %v1307 = vsel %vm1249, %v1190, %v1191
  %v1308 = vsel %vm1249, %v1189, %v1190
  %v1309 = vsel %vm1249, %v1188, %v1189
  %v1310 = vsel %vm1249, %v1187, %v1188
  %v1311 = vsel %vm1249, %v1186, %v1187
  %v1312 = vsel %vm1249, %v1185, %v1186
  %v1313 = vsel %vm1249, %v1248, %v1185
  %v1314 = vsel %vm55, 1, 0
  %v1315 = vsel %vm56, 1, 0
  %v1316 = vsel %vm57, 1, 0
  %v1317 = vsel %vm58, 1, 0
  %v1318 = vsel %vm59, 1, 0
  %v1319 = vsel %vm60, 1, 0
  %v1320 = vsel %vm61, 1, 0
  %v1321 = vsel %vm62, 1, 0
  %vm1322 = vcmp.eq.s32.totalorder %v1314, 1
  %vm1323 = vcmp.eq.s32.totalorder %v1315, 1
  %vm1324 = vcmp.eq.s32.totalorder %v1316, 1
  %vm1325 = vcmp.eq.s32.totalorder %v1317, 1
  %vm1326 = vcmp.eq.s32.totalorder %v1318, 1
  %vm1327 = vcmp.eq.s32.totalorder %v1319, 1
  %vm1328 = vcmp.eq.s32.totalorder %v1320, 1
  %vm1329 = vcmp.eq.s32.totalorder %v1321, 1
  %v1330 = vsel %vm1322, %v1312, 0.0
  %v1331 = vsel %vm1323, %v1311, 0.0
  %v1332 = vsel %vm1324, %v1310, 0.0
  %v1333 = vsel %vm1325, %v1309, 0.0
  %v1334 = vsel %vm1326, %v1308, 0.0
  %v1335 = vsel %vm1327, %v1307, 0.0
  %v1336 = vsel %vm1328, %v1306, 0.0
  %v1337 = vsel %vm1329, %v1305, 0.0
  %v1338 = vsel %vm1322, %v1304, 0.0
  %v1339 = vsel %vm1323, %v1303, 0.0
  %v1340 = vsel %vm1324, %v1302, 0.0
  %v1341 = vsel %vm1325, %v1301, 0.0
  %v1342 = vsel %vm1326, %v1300, 0.0
  %v1343 = vsel %vm1327, %v1299, 0.0
  %v1344 = vsel %vm1328, %v1298, 0.0
  %v1345 = vsel %vm1329, %v1297, 0.0
  %v1346 = vsel %vm1322, %v1296, 0.0
  %v1347 = vsel %vm1323, %v1295, 0.0
  %v1348 = vsel %vm1324, %v1294, 0.0
  %v1349 = vsel %vm1325, %v1293, 0.0
  %v1350 = vsel %vm1326, %v1292, 0.0
  %v1351 = vsel %vm1327, %v1291, 0.0
  %v1352 = vsel %vm1328, %v1290, 0.0
  %v1353 = vsel %vm1329, %v1289, 0.0
  %v1354 = vsel %vm1322, %v1288, 0.0
  %v1355 = vsel %vm1323, %v1287, 0.0
  %v1356 = vsel %vm1324, %v1286, 0.0
  %v1357 = vsel %vm1325, %v1285, 0.0
  %v1358 = vsel %vm1326, %v1284, 0.0
  %v1359 = vsel %vm1327, %v1283, 0.0
  %v1360 = vsel %vm1328, %v1282, 0.0
  %v1361 = vsel %vm1329, %v1281, 0.0
  %v1362 = vsel %vm1322, %v1280, 0.0
  %v1363 = vsel %vm1323, %v1279, 0.0
  %v1364 = vsel %vm1324, %v1278, 0.0
  %v1365 = vsel %vm1325, %v1277, 0.0
  %v1366 = vsel %vm1326, %v1276, 0.0
  %v1367 = vsel %vm1327, %v1275, 0.0
  %v1368 = vsel %vm1328, %v1274, 0.0
  %v1369 = vsel %vm1329, %v1273, 0.0
  %v1370 = vsel %vm1322, %v1272, 0.0
  %v1371 = vsel %vm1323, %v1271, 0.0
  %v1372 = vsel %vm1324, %v1270, 0.0
  %v1373 = vsel %vm1325, %v1269, 0.0
  %v1374 = vsel %vm1326, %v1268, 0.0
  %v1375 = vsel %vm1327, %v1267, 0.0
  %v1376 = vsel %vm1328, %v1266, 0.0
  %v1377 = vsel %vm1329, %v1265, 0.0
  %v1378 = vsel %vm1322, %v1264, 0.0
  %v1379 = vsel %vm1323, %v1263, 0.0
  %v1380 = vsel %vm1324, %v1262, 0.0
  %v1381 = vsel %vm1325, %v1261, 0.0
  %v1382 = vsel %vm1326, %v1260, 0.0
  %v1383 = vsel %vm1327, %v1259, 0.0
  %v1384 = vsel %vm1328, %v1258, 0.0
  %v1385 = vsel %vm1329, %v1257, 0.0
  %v1386 = vsel %vm1322, %v1256, 0.0
  %v1387 = vsel %vm1323, %v1255, 0.0
  %v1388 = vsel %vm1324, %v1254, 0.0
  %v1389 = vsel %vm1325, %v1253, 0.0
  %v1390 = vsel %vm1326, %v1252, 0.0
  %v1391 = vsel %vm1327, %v1251, 0.0
  %v1392 = vsel %vm1328, %v1250, 0.0
  %v1393 = vsel %vm1329, %v1313, 0.0
  %1458 = vrot.lane.b32.xlu0 %v912, 32
  %v1459 = vpop.permute.xlu0 %1458
  %1460 = vrot.lane.b32.xlu0 %v913, 32
  %v1461 = vpop.permute.xlu0 %1460
  %1462 = vrot.lane.b32.xlu0 %v914, 32
  %v1463 = vpop.permute.xlu0 %1462
  %1464 = vrot.lane.b32.xlu0 %v915, 32
  %v1465 = vpop.permute.xlu0 %1464
  %1466 = vrot.lane.b32.xlu0 %v916, 32
  %v1467 = vpop.permute.xlu0 %1466
  %1468 = vrot.lane.b32.xlu0 %v917, 32
  %v1469 = vpop.permute.xlu0 %1468
  %1470 = vrot.lane.b32.xlu0 %v918, 32
  %v1471 = vpop.permute.xlu0 %1470
  %1472 = vrot.lane.b32.xlu0 %v919, 32
  %v1473 = vpop.permute.xlu0 %1472
  %1474 = vrot.lane.b32.xlu0 %v920, 32
  %v1475 = vpop.permute.xlu0 %1474
  %1476 = vrot.lane.b32.xlu0 %v921, 32
  %v1477 = vpop.permute.xlu0 %1476
  %1478 = vrot.lane.b32.xlu0 %v922, 32
  %v1479 = vpop.permute.xlu0 %1478
  %1480 = vrot.lane.b32.xlu0 %v923, 32
  %v1481 = vpop.permute.xlu0 %1480
  %1482 = vrot.lane.b32.xlu0 %v924, 32
  %v1483 = vpop.permute.xlu0 %1482
  %1484 = vrot.lane.b32.xlu0 %v925, 32
  %v1485 = vpop.permute.xlu0 %1484
  %1486 = vrot.lane.b32.xlu0 %v926, 32
  %v1487 = vpop.permute.xlu0 %1486
  %1488 = vrot.lane.b32.xlu0 %v927, 32
  %v1489 = vpop.permute.xlu0 %1488
  %1490 = vrot.lane.b32.xlu0 %v928, 32
  %v1491 = vpop.permute.xlu0 %1490
  %1492 = vrot.lane.b32.xlu0 %v929, 32
  %v1493 = vpop.permute.xlu0 %1492
  %1494 = vrot.lane.b32.xlu0 %v930, 32
  %v1495 = vpop.permute.xlu0 %1494
  %1496 = vrot.lane.b32.xlu0 %v931, 32
  %v1497 = vpop.permute.xlu0 %1496
  %1498 = vrot.lane.b32.xlu0 %v932, 32
  %v1499 = vpop.permute.xlu0 %1498
  %1500 = vrot.lane.b32.xlu0 %v933, 32
  %v1501 = vpop.permute.xlu0 %1500
  %1502 = vrot.lane.b32.xlu0 %v934, 32
  %v1503 = vpop.permute.xlu0 %1502
  %1504 = vrot.lane.b32.xlu0 %v935, 32
  %v1505 = vpop.permute.xlu0 %1504
  %1506 = vrot.lane.b32.xlu0 %v936, 32
  %v1507 = vpop.permute.xlu0 %1506
  %1508 = vrot.lane.b32.xlu0 %v937, 32
  %v1509 = vpop.permute.xlu0 %1508
  %1510 = vrot.lane.b32.xlu0 %v938, 32
  %v1511 = vpop.permute.xlu0 %1510
  %1512 = vrot.lane.b32.xlu0 %v939, 32
  %v1513 = vpop.permute.xlu0 %1512
  %1514 = vrot.lane.b32.xlu0 %v940, 32
  %v1515 = vpop.permute.xlu0 %1514
  %1516 = vrot.lane.b32.xlu0 %v941, 32
  %v1517 = vpop.permute.xlu0 %1516
  %1518 = vrot.lane.b32.xlu0 %v942, 32
  %v1519 = vpop.permute.xlu0 %1518
  %1520 = vrot.lane.b32.xlu0 %v943, 32
  %v1521 = vpop.permute.xlu0 %1520
  %1522 = vrot.lane.b32.xlu0 %v944, 32
  %v1523 = vpop.permute.xlu0 %1522
  %1524 = vrot.lane.b32.xlu0 %v945, 32
  %v1525 = vpop.permute.xlu0 %1524
  %1526 = vrot.lane.b32.xlu0 %v946, 32
  %v1527 = vpop.permute.xlu0 %1526
  %1528 = vrot.lane.b32.xlu0 %v947, 32
  %v1529 = vpop.permute.xlu0 %1528
  %1530 = vrot.lane.b32.xlu0 %v948, 32
  %v1531 = vpop.permute.xlu0 %1530
  %1532 = vrot.lane.b32.xlu0 %v949, 32
  %v1533 = vpop.permute.xlu0 %1532
  %1534 = vrot.lane.b32.xlu0 %v950, 32
  %v1535 = vpop.permute.xlu0 %1534
  %1536 = vrot.lane.b32.xlu0 %v951, 32
  %v1537 = vpop.permute.xlu0 %1536
  %1538 = vrot.lane.b32.xlu0 %v952, 32
  %v1539 = vpop.permute.xlu0 %1538
  %1540 = vrot.lane.b32.xlu0 %v953, 32
  %v1541 = vpop.permute.xlu0 %1540
  %1542 = vrot.lane.b32.xlu0 %v954, 32
  %v1543 = vpop.permute.xlu0 %1542
  %1544 = vrot.lane.b32.xlu0 %v955, 32
  %v1545 = vpop.permute.xlu0 %1544
  %1546 = vrot.lane.b32.xlu0 %v956, 32
  %v1547 = vpop.permute.xlu0 %1546
  %1548 = vrot.lane.b32.xlu0 %v957, 32
  %v1549 = vpop.permute.xlu0 %1548
  %1550 = vrot.lane.b32.xlu0 %v958, 32
  %v1551 = vpop.permute.xlu0 %1550
  %1552 = vrot.lane.b32.xlu0 %v959, 32
  %v1553 = vpop.permute.xlu0 %1552
  %1554 = vrot.lane.b32.xlu0 %v960, 32
  %v1555 = vpop.permute.xlu0 %1554
  %1556 = vrot.lane.b32.xlu0 %v961, 32
  %v1557 = vpop.permute.xlu0 %1556
  %1558 = vrot.lane.b32.xlu0 %v962, 32
  %v1559 = vpop.permute.xlu0 %1558
  %1560 = vrot.lane.b32.xlu0 %v963, 32
  %v1561 = vpop.permute.xlu0 %1560
  %1562 = vrot.lane.b32.xlu0 %v964, 32
  %v1563 = vpop.permute.xlu0 %1562
  %1564 = vrot.lane.b32.xlu0 %v965, 32
  %v1565 = vpop.permute.xlu0 %1564
  %1566 = vrot.lane.b32.xlu0 %v966, 32
  %v1567 = vpop.permute.xlu0 %1566
  %1568 = vrot.lane.b32.xlu0 %v967, 32
  %v1569 = vpop.permute.xlu0 %1568
  %1570 = vrot.lane.b32.xlu0 %v968, 32
  %v1571 = vpop.permute.xlu0 %1570
  %1572 = vrot.lane.b32.xlu0 %v969, 32
  %v1573 = vpop.permute.xlu0 %1572
  %1574 = vrot.lane.b32.xlu0 %v970, 32
  %v1575 = vpop.permute.xlu0 %1574
  %1576 = vrot.lane.b32.xlu0 %v971, 32
  %v1577 = vpop.permute.xlu0 %1576
  %1578 = vrot.lane.b32.xlu0 %v972, 32
  %v1579 = vpop.permute.xlu0 %1578
  %1580 = vrot.lane.b32.xlu0 %v973, 32
  %v1581 = vpop.permute.xlu0 %1580
  %1582 = vrot.lane.b32.xlu0 %v974, 32
  %v1583 = vpop.permute.xlu0 %1582
  %1584 = vrot.lane.b32.xlu0 %v975, 32
  %v1585 = vpop.permute.xlu0 %1584
  %1714 = vrot.lane.b32.xlu0 %v1330, 64
  %v1715 = vpop.permute.xlu0 %1714
  %1716 = vrot.lane.b32.xlu0 %v1331, 64
  %v1717 = vpop.permute.xlu0 %1716
  %1718 = vrot.lane.b32.xlu0 %v1332, 64
  %v1719 = vpop.permute.xlu0 %1718
  %1720 = vrot.lane.b32.xlu0 %v1333, 64
  %v1721 = vpop.permute.xlu0 %1720
  %1722 = vrot.lane.b32.xlu0 %v1334, 64
  %v1723 = vpop.permute.xlu0 %1722
  %1724 = vrot.lane.b32.xlu0 %v1335, 64
  %v1725 = vpop.permute.xlu0 %1724
  %1726 = vrot.lane.b32.xlu0 %v1336, 64
  %v1727 = vpop.permute.xlu0 %1726
  %1728 = vrot.lane.b32.xlu0 %v1337, 64
  %v1729 = vpop.permute.xlu0 %1728
  %1730 = vrot.lane.b32.xlu0 %v1338, 64
  %v1731 = vpop.permute.xlu0 %1730
  %1732 = vrot.lane.b32.xlu0 %v1339, 64
  %v1733 = vpop.permute.xlu0 %1732
  %1734 = vrot.lane.b32.xlu0 %v1340, 64
  %v1735 = vpop.permute.xlu0 %1734
  %1736 = vrot.lane.b32.xlu0 %v1341, 64
  %v1737 = vpop.permute.xlu0 %1736
  %1738 = vrot.lane.b32.xlu0 %v1342, 64
  %v1739 = vpop.permute.xlu0 %1738
  %1740 = vrot.lane.b32.xlu0 %v1343, 64
  %v1741 = vpop.permute.xlu0 %1740
  %1742 = vrot.lane.b32.xlu0 %v1344, 64
  %v1743 = vpop.permute.xlu0 %1742
  %1744 = vrot.lane.b32.xlu0 %v1345, 64
  %v1745 = vpop.permute.xlu0 %1744
  %1746 = vrot.lane.b32.xlu0 %v1346, 64
  %v1747 = vpop.permute.xlu0 %1746
  %1748 = vrot.lane.b32.xlu0 %v1347, 64
  %v1749 = vpop.permute.xlu0 %1748
  %1750 = vrot.lane.b32.xlu0 %v1348, 64
  %v1751 = vpop.permute.xlu0 %1750
  %1752 = vrot.lane.b32.xlu0 %v1349, 64
  %v1753 = vpop.permute.xlu0 %1752
  %1754 = vrot.lane.b32.xlu0 %v1350, 64
  %v1755 = vpop.permute.xlu0 %1754
  %1756 = vrot.lane.b32.xlu0 %v1351, 64
  %v1757 = vpop.permute.xlu0 %1756
  %1758 = vrot.lane.b32.xlu0 %v1352, 64
  %v1759 = vpop.permute.xlu0 %1758
  %1760 = vrot.lane.b32.xlu0 %v1353, 64
  %v1761 = vpop.permute.xlu0 %1760
  %1762 = vrot.lane.b32.xlu0 %v1354, 64
  %v1763 = vpop.permute.xlu0 %1762
  %1764 = vrot.lane.b32.xlu0 %v1355, 64
  %v1765 = vpop.permute.xlu0 %1764
  %1766 = vrot.lane.b32.xlu0 %v1356, 64
  %v1767 = vpop.permute.xlu0 %1766
  %1768 = vrot.lane.b32.xlu0 %v1357, 64
  %v1769 = vpop.permute.xlu0 %1768
  %1770 = vrot.lane.b32.xlu0 %v1358, 64
  %v1771 = vpop.permute.xlu0 %1770
  %1772 = vrot.lane.b32.xlu0 %v1359, 64
  %v1773 = vpop.permute.xlu0 %1772
  %1774 = vrot.lane.b32.xlu0 %v1360, 64
  %v1775 = vpop.permute.xlu0 %1774
  %1776 = vrot.lane.b32.xlu0 %v1361, 64
  %v1777 = vpop.permute.xlu0 %1776
  %1778 = vrot.lane.b32.xlu0 %v1362, 64
  %v1779 = vpop.permute.xlu0 %1778
  %1780 = vrot.lane.b32.xlu0 %v1363, 64
  %v1781 = vpop.permute.xlu0 %1780
  %1782 = vrot.lane.b32.xlu0 %v1364, 64
  %v1783 = vpop.permute.xlu0 %1782
  %1784 = vrot.lane.b32.xlu0 %v1365, 64
  %v1785 = vpop.permute.xlu0 %1784
  %1786 = vrot.lane.b32.xlu0 %v1366, 64
  %v1787 = vpop.permute.xlu0 %1786
  %1788 = vrot.lane.b32.xlu0 %v1367, 64
  %v1789 = vpop.permute.xlu0 %1788
  %1790 = vrot.lane.b32.xlu0 %v1368, 64
  %v1791 = vpop.permute.xlu0 %1790
  %1792 = vrot.lane.b32.xlu0 %v1369, 64
  %v1793 = vpop.permute.xlu0 %1792
  %1794 = vrot.lane.b32.xlu0 %v1370, 64
  %v1795 = vpop.permute.xlu0 %1794
  %1796 = vrot.lane.b32.xlu0 %v1371, 64
  %v1797 = vpop.permute.xlu0 %1796
  %1798 = vrot.lane.b32.xlu0 %v1372, 64
  %v1799 = vpop.permute.xlu0 %1798
  %1800 = vrot.lane.b32.xlu0 %v1373, 64
  %v1801 = vpop.permute.xlu0 %1800
  %1802 = vrot.lane.b32.xlu0 %v1374, 64
  %v1803 = vpop.permute.xlu0 %1802
  %1804 = vrot.lane.b32.xlu0 %v1375, 64
  %v1805 = vpop.permute.xlu0 %1804
  %1806 = vrot.lane.b32.xlu0 %v1376, 64
  %v1807 = vpop.permute.xlu0 %1806
  %1808 = vrot.lane.b32.xlu0 %v1377, 64
  %v1809 = vpop.permute.xlu0 %1808
  %1810 = vrot.lane.b32.xlu0 %v1378, 64
  %v1811 = vpop.permute.xlu0 %1810
  %1812 = vrot.lane.b32.xlu0 %v1379, 64
  %v1813 = vpop.permute.xlu0 %1812
  %1814 = vrot.lane.b32.xlu0 %v1380, 64
  %v1815 = vpop.permute.xlu0 %1814
  %1816 = vrot.lane.b32.xlu0 %v1381, 64
  %v1817 = vpop.permute.xlu0 %1816
  %1818 = vrot.lane.b32.xlu0 %v1382, 64
  %v1819 = vpop.permute.xlu0 %1818
  %1820 = vrot.lane.b32.xlu0 %v1383, 64
  %v1821 = vpop.permute.xlu0 %1820
  %1822 = vrot.lane.b32.xlu0 %v1384, 64
  %v1823 = vpop.permute.xlu0 %1822
  %1824 = vrot.lane.b32.xlu0 %v1385, 64
  %v1825 = vpop.permute.xlu0 %1824
  %1826 = vrot.lane.b32.xlu0 %v1386, 64
  %v1827 = vpop.permute.xlu0 %1826
  %1828 = vrot.lane.b32.xlu0 %v1387, 64
  %v1829 = vpop.permute.xlu0 %1828
  %1830 = vrot.lane.b32.xlu0 %v1388, 64
  %v1831 = vpop.permute.xlu0 %1830
  %1832 = vrot.lane.b32.xlu0 %v1389, 64
  %v1833 = vpop.permute.xlu0 %1832
  %1834 = vrot.lane.b32.xlu0 %v1390, 64
  %v1835 = vpop.permute.xlu0 %1834
  %1836 = vrot.lane.b32.xlu0 %v1391, 64
  %v1837 = vpop.permute.xlu0 %1836
  %1838 = vrot.lane.b32.xlu0 %v1392, 64
  %v1839 = vpop.permute.xlu0 %1838
  %1840 = vrot.lane.b32.xlu0 %v1393, 64
  %v1841 = vpop.permute.xlu0 %1840
  %vm1906 = vcmask 261120
  %v1907 = vsel %vm1906, %v1121, %v1459
  %v1908 = vsel %vm1906, %v1122, %v1461
  %v1909 = vsel %vm1906, %v1123, %v1463
  %v1910 = vsel %vm1906, %v1124, %v1465
  %v1911 = vsel %vm1906, %v1125, %v1467
  %v1912 = vsel %vm1906, %v1126, %v1469
  %v1913 = vsel %vm1906, %v1127, %v1471
  %v1914 = vsel %vm1906, %v1128, %v1473
  %v1915 = vsel %vm1906, %v1129, %v1475
  %v1916 = vsel %vm1906, %v1130, %v1477
  %v1917 = vsel %vm1906, %v1131, %v1479
  %v1918 = vsel %vm1906, %v1132, %v1481
  %v1919 = vsel %vm1906, %v1133, %v1483
  %v1920 = vsel %vm1906, %v1134, %v1485
  %v1921 = vsel %vm1906, %v1135, %v1487
  %v1922 = vsel %vm1906, %v1136, %v1489
  %v1923 = vsel %vm1906, %v1137, %v1491
  %v1924 = vsel %vm1906, %v1138, %v1493
  %v1925 = vsel %vm1906, %v1139, %v1495
  %v1926 = vsel %vm1906, %v1140, %v1497
  %v1927 = vsel %vm1906, %v1141, %v1499
  %v1928 = vsel %vm1906, %v1142, %v1501
  %v1929 = vsel %vm1906, %v1143, %v1503
  %v1930 = vsel %vm1906, %v1144, %v1505
  %v1931 = vsel %vm1906, %v1145, %v1507
  %v1932 = vsel %vm1906, %v1146, %v1509
  %v1933 = vsel %vm1906, %v1147, %v1511
  %v1934 = vsel %vm1906, %v1148, %v1513
  %v1935 = vsel %vm1906, %v1149, %v1515
  %v1936 = vsel %vm1906, %v1150, %v1517
  %v1937 = vsel %vm1906, %v1151, %v1519
  %v1938 = vsel %vm1906, %v1152, %v1521
  %v1939 = vsel %vm1906, %v1153, %v1523
  %v1940 = vsel %vm1906, %v1154, %v1525
  %v1941 = vsel %vm1906, %v1155, %v1527
  %v1942 = vsel %vm1906, %v1156, %v1529
  %v1943 = vsel %vm1906, %v1157, %v1531
  %v1944 = vsel %vm1906, %v1158, %v1533
  %v1945 = vsel %vm1906, %v1159, %v1535
  %v1946 = vsel %vm1906, %v1160, %v1537
  %v1947 = vsel %vm1906, %v1161, %v1539
  %v1948 = vsel %vm1906, %v1162, %v1541
  %v1949 = vsel %vm1906, %v1163, %v1543
  %v1950 = vsel %vm1906, %v1164, %v1545
  %v1951 = vsel %vm1906, %v1165, %v1547
  %v1952 = vsel %vm1906, %v1166, %v1549
  %v1953 = vsel %vm1906, %v1167, %v1551
  %v1954 = vsel %vm1906, %v1168, %v1553
  %v1955 = vsel %vm1906, %v1169, %v1555
  %v1956 = vsel %vm1906, %v1170, %v1557
  %v1957 = vsel %vm1906, %v1171, %v1559
  %v1958 = vsel %vm1906, %v1172, %v1561
  %v1959 = vsel %vm1906, %v1173, %v1563
  %v1960 = vsel %vm1906, %v1174, %v1565
  %v1961 = vsel %vm1906, %v1175, %v1567
  %v1962 = vsel %vm1906, %v1176, %v1569
  %v1963 = vsel %vm1906, %v1177, %v1571
  %v1964 = vsel %vm1906, %v1178, %v1573
  %v1965 = vsel %vm1906, %v1179, %v1575
  %v1966 = vsel %vm1906, %v1180, %v1577
  %v1967 = vsel %vm1906, %v1181, %v1579
  %v1968 = vsel %vm1906, %v1182, %v1581
  %v1969 = vsel %vm1906, %v1183, %v1583
  %v1970 = vsel %vm1906, %v1184, %v1585
  %vm1971 = vcmask 523264
  %v1972 = vsel %vm1971, %v1907, %v1715
  %v1973 = vsel %vm1971, %v1908, %v1717
  %v1974 = vsel %vm1971, %v1909, %v1719
  %v1975 = vsel %vm1971, %v1910, %v1721
  %v1976 = vsel %vm1971, %v1911, %v1723
  %v1977 = vsel %vm1971, %v1912, %v1725
  %v1978 = vsel %vm1971, %v1913, %v1727
  %v1979 = vsel %vm1971, %v1914, %v1729
  %v1980 = vsel %vm1971, %v1915, %v1731
  %v1981 = vsel %vm1971, %v1916, %v1733
  %v1982 = vsel %vm1971, %v1917, %v1735
  %v1983 = vsel %vm1971, %v1918, %v1737
  %v1984 = vsel %vm1971, %v1919, %v1739
  %v1985 = vsel %vm1971, %v1920, %v1741
  %v1986 = vsel %vm1971, %v1921, %v1743
  %v1987 = vsel %vm1971, %v1922, %v1745
  %v1988 = vsel %vm1971, %v1923, %v1747
  %v1989 = vsel %vm1971, %v1924, %v1749
  %v1990 = vsel %vm1971, %v1925, %v1751
  %v1991 = vsel %vm1971, %v1926, %v1753
  %v1992 = vsel %vm1971, %v1927, %v1755
  %v1993 = vsel %vm1971, %v1928, %v1757
  %v1994 = vsel %vm1971, %v1929, %v1759
  %v1995 = vsel %vm1971, %v1930, %v1761
  %v1996 = vsel %vm1971, %v1931, %v1763
  %v1997 = vsel %vm1971, %v1932, %v1765
  %v1998 = vsel %vm1971, %v1933, %v1767
  %v1999 = vsel %vm1971, %v1934, %v1769
  %v2000 = vsel %vm1971, %v1935, %v1771
  %v2001 = vsel %vm1971, %v1936, %v1773
  %v2002 = vsel %vm1971, %v1937, %v1775
  %v2003 = vsel %vm1971, %v1938, %v1777
  %v2004 = vsel %vm1971, %v1939, %v1779
  %v2005 = vsel %vm1971, %v1940, %v1781
  %v2006 = vsel %vm1971, %v1941, %v1783
  %v2007 = vsel %vm1971, %v1942, %v1785
  %v2008 = vsel %vm1971, %v1943, %v1787
  %v2009 = vsel %vm1971, %v1944, %v1789
  %v2010 = vsel %vm1971, %v1945, %v1791
  %v2011 = vsel %vm1971, %v1946, %v1793
  %v2012 = vsel %vm1971, %v1947, %v1795
  %v2013 = vsel %vm1971, %v1948, %v1797
  %v2014 = vsel %vm1971, %v1949, %v1799
  %v2015 = vsel %vm1971, %v1950, %v1801
  %v2016 = vsel %vm1971, %v1951, %v1803
  %v2017 = vsel %vm1971, %v1952, %v1805
  %v2018 = vsel %vm1971, %v1953, %v1807
  %v2019 = vsel %vm1971, %v1954, %v1809
  %v2020 = vsel %vm1971, %v1955, %v1811
  %v2021 = vsel %vm1971, %v1956, %v1813
  %v2022 = vsel %vm1971, %v1957, %v1815
  %v2023 = vsel %vm1971, %v1958, %v1817
  %v2024 = vsel %vm1971, %v1959, %v1819
  %v2025 = vsel %vm1971, %v1960, %v1821
  %v2026 = vsel %vm1971, %v1961, %v1823
  %v2027 = vsel %vm1971, %v1962, %v1825
  %v2028 = vsel %vm1971, %v1963, %v1827
  %v2029 = vsel %vm1971, %v1964, %v1829
  %v2030 = vsel %vm1971, %v1965, %v1831
  %v2031 = vsel %vm1971, %v1966, %v1833
  %v2032 = vsel %vm1971, %v1967, %v1835
  %v2033 = vsel %vm1971, %v1968, %v1837
  %v2034 = vsel %vm1971, %v1969, %v1839
  %v2035 = vsel %vm1971, %v1970, %v1841
  %v2036 = vpack.c.bf16 %v1973, %v1972
  %v2037 = vpack.c.bf16 %v1975, %v1974
  %v2038 = vpack.c.bf16 %v1977, %v1976
  %v2039 = vpack.c.bf16 %v1979, %v1978
  %v2040 = vpack.c.bf16 %v1981, %v1980
  %v2041 = vpack.c.bf16 %v1983, %v1982
  %v2042 = vpack.c.bf16 %v1985, %v1984
  %v2043 = vpack.c.bf16 %v1987, %v1986
  %v2044 = vpack.c.bf16 %v1989, %v1988
  %v2045 = vpack.c.bf16 %v1991, %v1990
  %v2046 = vpack.c.bf16 %v1993, %v1992
  %v2047 = vpack.c.bf16 %v1995, %v1994
  %v2048 = vpack.c.bf16 %v1997, %v1996
  %v2049 = vpack.c.bf16 %v1999, %v1998
  %v2050 = vpack.c.bf16 %v2001, %v2000
  %v2051 = vpack.c.bf16 %v2003, %v2002
  %v2052 = vpack.c.bf16 %v2005, %v2004
  %v2053 = vpack.c.bf16 %v2007, %v2006
  %v2054 = vpack.c.bf16 %v2009, %v2008
  %v2055 = vpack.c.bf16 %v2011, %v2010
  %v2056 = vpack.c.bf16 %v2013, %v2012
  %v2057 = vpack.c.bf16 %v2015, %v2014
  %v2058 = vpack.c.bf16 %v2017, %v2016
  %v2059 = vpack.c.bf16 %v2019, %v2018
  %v2060 = vpack.c.bf16 %v2021, %v2020
  %v2061 = vpack.c.bf16 %v2023, %v2022
  %v2062 = vpack.c.bf16 %v2025, %v2024
  %v2063 = vpack.c.bf16 %v2027, %v2026
  %v2064 = vpack.c.bf16 %v2029, %v2028
  %v2065 = vpack.c.bf16 %v2031, %v2030
  %v2066 = vpack.c.bf16 %v2033, %v2032
  %v2067 = vpack.c.bf16 %v2035, %v2034
  %v2068 = vld [vmem:[%s2] sm:$0xf]
  %v2069 = vld [vmem:[%s2 + $0x4] sm:$0xf]
  %v2070 = vld [vmem:[%s2 + $0x8] sm:$0xf]
  %v2071 = vld [vmem:[%s2 + $0xc] sm:$0xf]
  %v2072 = vld [vmem:[%s2 + $0x10] sm:$0xf]
  %v2073 = vld [vmem:[%s2 + $0x14] sm:$0xf]
  %v2074 = vld [vmem:[%s2 + $0x18] sm:$0xf]
  %v2075 = vld [vmem:[%s2 + $0x1c] sm:$0xf]
  %v2076 = vld [vmem:[%s2 + $0x20] sm:$0xf]
  %v2077 = vld [vmem:[%s2 + $0x24] sm:$0xf]
  %v2078 = vld [vmem:[%s2 + $0x28] sm:$0xf]
  %v2079 = vld [vmem:[%s2 + $0x2c] sm:$0xf]
  %v2092 = vunpack.c.l.b16 %v2068
  %v2093 = vunpack.c.l.b16 %v2069
  %v2094 = vunpack.c.l.b16 %v2070
  %v2095 = vunpack.c.l.b16 %v2071
  %v2096 = vunpack.c.l.b16 %v2072
  %v2097 = vunpack.c.l.b16 %v2073
  %v2098 = vunpack.c.l.b16 %v2074
  %v2099 = vunpack.c.l.b16 %v2075
  %v2100 = vunpack.c.l.b16 %v2076
  %v2101 = vunpack.c.l.b16 %v2077
  %v2102 = vunpack.c.l.b16 %v2078
  %v2103 = vunpack.c.l.b16 %v2079
  %v2104 = vpack.c.b16 %v2093, %v2092
  %v2105 = vpack.c.b16 %v2095, %v2094
  %v2106 = vpack.c.b16 %v2097, %v2096
  %v2107 = vpack.c.b16 %v2099, %v2098
  %v2108 = vpack.c.b16 %v2101, %v2100
  %v2109 = vpack.c.b16 %v2103, %v2102
  %vm2116 = vcmask 785408
  %v2118 = vsel %vm2116, %v2036, 0
  %v2121 = vsel %vm2116, %v2037, 0
  %v2124 = vsel %vm2116, %v2038, 0
  %v2127 = vsel %vm2116, %v2039, 0
  %v2130 = vsel %vm2116, %v2040, 0
  %v2133 = vsel %vm2116, %v2041, 0
  %v2136 = vsel %vm2116, %v2042, 0
  %v2139 = vsel %vm2116, %v2043, 0
  %v2142 = vsel %vm2116, %v2044, 0
  %v2145 = vsel %vm2116, %v2045, 0
  %v2148 = vsel %vm2116, %v2046, 0
  %v2151 = vsel %vm2116, %v2047, 0
  %v2154 = vsel %vm2116, %v2048, 0
  %v2157 = vsel %vm2116, %v2049, 0
  %v2160 = vsel %vm2116, %v2050, 0
  %v2163 = vsel %vm2116, %v2051, 0
  %v2166 = vsel %vm2116, %v2052, 0
  %v2169 = vsel %vm2116, %v2053, 0
  %v2172 = vsel %vm2116, %v2054, 0
  %v2175 = vsel %vm2116, %v2055, 0
  %v2178 = vsel %vm2116, %v2056, 0
  %v2181 = vsel %vm2116, %v2057, 0
  %v2184 = vsel %vm2116, %v2058, 0
  %v2187 = vsel %vm2116, %v2059, 0
  %v2190 = vsel %vm2116, %v2060, 0
  %v2193 = vsel %vm2116, %v2061, 0
  %v2196 = vsel %vm2116, %v2062, 0
  %v2199 = vsel %vm2116, %v2063, 0
  %v2202 = vsel %vm2116, %v2064, 0
  %v2205 = vsel %vm2116, %v2065, 0
  %v2208 = vsel %vm2116, %v2066, 0
  %v2211 = vsel %vm2116, %v2067, 0
  %2213 = vmatprep.subr.bf16.mxu0 0
  %2214 = vmatpush1.bf16.msra.mxu0 %v2104
  %2215 = vmatprep.subr.bf16.mxu0 0
  %2216 = vmatpush1.bf16.msra.mxu0 %v2105
  %2217 = vmatprep.subr.bf16.mxu0 0
  %2218 = vmatpush1.bf16.msra.mxu0 %v2106
  %2219 = vmatprep.subr.bf16.mxu0 0
  %2220 = vmatpush1.bf16.msra.mxu0 %v2107
  %2221 = vmatprep.subr.bf16.mxu0 0
  %2222 = vmatpush1.bf16.msra.mxu0 %v2108
  %2223 = vmatprep.subr.bf16.mxu0 0
  %2224 = vmatpush1.bf16.msra.mxu0 %v2109
  %2225 = vmatprep.subr.bf16.mxu0 0
  %2226 = vmatpush1.bf16.msra.mxu0 0
  %2227 = vmatprep.subr.bf16.mxu0 0
  %2228 = vmatpush1.bf16.msra.mxu0 0
  %2229 = vmatprep.subr.bf16.mxu0 0
  %2230 = vmatpush1.bf16.msra.mxu0 0
  %2231 = vmatprep.subr.bf16.mxu0 0
  %2232 = vmatpush1.bf16.msra.mxu0 0
  %2233 = vmatprep.subr.bf16.mxu0 0
  %2234 = vmatpush1.bf16.msra.mxu0 0
  %2235 = vmatprep.subr.bf16.mxu0 0
  %2236 = vmatpush1.bf16.msra.mxu0 0
  %2237 = vmatprep.subr.bf16.mxu0 0
  %2238 = vmatpush1.bf16.msra.mxu0 0
  %2239 = vmatprep.subr.bf16.mxu0 0
  %2240 = vmatpush1.bf16.msra.mxu0 0
  %2241 = vmatprep.subr.bf16.mxu0 0
  %2242 = vmatpush1.bf16.msra.mxu0 0
  %2243 = vmatprep.subr.bf16.mxu0 0
  %2244 = vmatpush1.bf16.msra.mxu0 0
  %2245 = vmatprep.mubr.bf16.mxu0 0
  %2246 = vmatmul.mubr.bf16.gmra.mrb[0].mxu0 %v2118
  %v2247 = vpop.f32.mrb[0].mxu0
  %v2248 = vadd.f32 0.0, %v2247
  %v2249 = vpop.f32.mrb[0].mxu0
  %v2250 = vpop.f32.mrb[0].mxu0
  %v2251 = vadd.f32 0.0, %v2250
  %v2252 = vpop.f32.mrb[0].mxu0
  %2253 = vmatprep.mubr.bf16.mxu0 0
  %2254 = vmatmul.mubr.bf16.gmra.mrb[0].mxu0 %v2121
  %v2255 = vpop.f32.mrb[0].mxu0
  %v2256 = vadd.f32 0.0, %v2255
  %v2257 = vpop.f32.mrb[0].mxu0
  %v2258 = vpop.f32.mrb[0].mxu0
  %v2259 = vadd.f32 0.0, %v2258
  %v2260 = vpop.f32.mrb[0].mxu0
  %2261 = vmatprep.mubr.bf16.mxu0 0
  %2262 = vmatmul.mubr.bf16.gmra.mrb[0].mxu0 %v2124
  %v2263 = vpop.f32.mrb[0].mxu0
  %v2264 = vadd.f32 0.0, %v2263
  %v2265 = vpop.f32.mrb[0].mxu0
  %v2266 = vpop.f32.mrb[0].mxu0
  %v2267 = vadd.f32 0.0, %v2266
  %v2268 = vpop.f32.mrb[0].mxu0
  %2269 = vmatprep.mubr.bf16.mxu0 0
  %2270 = vmatmul.mubr.bf16.gmra.mrb[0].mxu0 %v2127
  %v2271 = vpop.f32.mrb[0].mxu0
  %v2272 = vadd.f32 0.0, %v2271
  %v2273 = vpop.f32.mrb[0].mxu0
  %v2274 = vpop.f32.mrb[0].mxu0
  %v2275 = vadd.f32 0.0, %v2274
  %v2276 = vpop.f32.mrb[0].mxu0
  %2277 = vmatprep.mubr.bf16.mxu0 0
  %2278 = vmatmul.mubr.bf16.gmra.mrb[0].mxu0 %v2130
  %v2279 = vpop.f32.mrb[0].mxu0
  %v2280 = vadd.f32 0.0, %v2279
  %v2281 = vpop.f32.mrb[0].mxu0
  %v2282 = vpop.f32.mrb[0].mxu0
  %v2283 = vadd.f32 0.0, %v2282
  %v2284 = vpop.f32.mrb[0].mxu0
  %2285 = vmatprep.mubr.bf16.mxu0 0
  %2286 = vmatmul.mubr.bf16.gmra.mrb[0].mxu0 %v2133
  %v2287 = vpop.f32.mrb[0].mxu0
  %v2288 = vadd.f32 0.0, %v2287
  %v2289 = vpop.f32.mrb[0].mxu0
  %v2290 = vpop.f32.mrb[0].mxu0
  %v2291 = vadd.f32 0.0, %v2290
  %v2292 = vpop.f32.mrb[0].mxu0
  %2293 = vmatprep.mubr.bf16.mxu0 0
  %2294 = vmatmul.mubr.bf16.gmra.mrb[0].mxu0 %v2136
  %v2295 = vpop.f32.mrb[0].mxu0
  %v2296 = vadd.f32 0.0, %v2295
  %v2297 = vpop.f32.mrb[0].mxu0
  %v2298 = vpop.f32.mrb[0].mxu0
  %v2299 = vadd.f32 0.0, %v2298
  %v2300 = vpop.f32.mrb[0].mxu0
  %2301 = vmatprep.mubr.bf16.mxu0 0
  %2302 = vmatmul.mubr.bf16.gmra.mrb[0].mxu0 %v2139
  %v2303 = vpop.f32.mrb[0].mxu0
  %v2304 = vadd.f32 0.0, %v2303
  %v2305 = vpop.f32.mrb[0].mxu0
  %v2306 = vpop.f32.mrb[0].mxu0
  %v2307 = vadd.f32 0.0, %v2306
  %v2308 = vpop.f32.mrb[0].mxu0
  %2309 = vmatprep.mubr.bf16.mxu0 0
  %2310 = vmatmul.mubr.bf16.gmra.mrb[0].mxu0 %v2142
  %v2311 = vpop.f32.mrb[0].mxu0
  %v2312 = vadd.f32 0.0, %v2311
  %v2313 = vpop.f32.mrb[0].mxu0
  %v2314 = vpop.f32.mrb[0].mxu0
  %v2315 = vadd.f32 0.0, %v2314
  %v2316 = vpop.f32.mrb[0].mxu0
  %2317 = vmatprep.mubr.bf16.mxu0 0
  %2318 = vmatmul.mubr.bf16.gmra.mrb[0].mxu0 %v2145
  %v2319 = vpop.f32.mrb[0].mxu0
  %v2320 = vadd.f32 0.0, %v2319
  %v2321 = vpop.f32.mrb[0].mxu0
  %v2322 = vpop.f32.mrb[0].mxu0
  %v2323 = vadd.f32 0.0, %v2322
  %v2324 = vpop.f32.mrb[0].mxu0
  %2325 = vmatprep.mubr.bf16.mxu0 0
  %2326 = vmatmul.mubr.bf16.gmra.mrb[0].mxu0 %v2148
  %v2327 = vpop.f32.mrb[0].mxu0
  %v2328 = vadd.f32 0.0, %v2327
  %v2329 = vpop.f32.mrb[0].mxu0
  %v2330 = vpop.f32.mrb[0].mxu0
  %v2331 = vadd.f32 0.0, %v2330
  %v2332 = vpop.f32.mrb[0].mxu0
  %2333 = vmatprep.mubr.bf16.mxu0 0
  %2334 = vmatmul.mubr.bf16.gmra.mrb[0].mxu0 %v2151
  %v2335 = vpop.f32.mrb[0].mxu0
  %v2336 = vadd.f32 0.0, %v2335
  %v2337 = vpop.f32.mrb[0].mxu0
  %v2338 = vpop.f32.mrb[0].mxu0
  %v2339 = vadd.f32 0.0, %v2338
  %v2340 = vpop.f32.mrb[0].mxu0
  %2341 = vmatprep.mubr.bf16.mxu0 0
  %2342 = vmatmul.mubr.bf16.gmra.mrb[0].mxu0 %v2154
  %v2343 = vpop.f32.mrb[0].mxu0
  %v2344 = vadd.f32 0.0, %v2343
  %v2345 = vpop.f32.mrb[0].mxu0
  %v2346 = vpop.f32.mrb[0].mxu0
  %v2347 = vadd.f32 0.0, %v2346
  %v2348 = vpop.f32.mrb[0].mxu0
  %2349 = vmatprep.mubr.bf16.mxu0 0
  %2350 = vmatmul.mubr.bf16.gmra.mrb[0].mxu0 %v2157
  %v2351 = vpop.f32.mrb[0].mxu0
  %v2352 = vadd.f32 0.0, %v2351
  %v2353 = vpop.f32.mrb[0].mxu0
  %v2354 = vpop.f32.mrb[0].mxu0
  %v2355 = vadd.f32 0.0, %v2354
  %v2356 = vpop.f32.mrb[0].mxu0
  %2357 = vmatprep.mubr.bf16.mxu0 0
  %2358 = vmatmul.mubr.bf16.gmra.mrb[0].mxu0 %v2160
  %v2359 = vpop.f32.mrb[0].mxu0
  %v2360 = vadd.f32 0.0, %v2359
  %v2361 = vpop.f32.mrb[0].mxu0
  %v2362 = vpop.f32.mrb[0].mxu0
  %v2363 = vadd.f32 0.0, %v2362
  %v2364 = vpop.f32.mrb[0].mxu0
  %2365 = vmatprep.mubr.bf16.mxu0 0
  %2366 = vmatmul.mubr.bf16.gmra.mrb[0].mxu0 %v2163
  %v2367 = vpop.f32.mrb[0].mxu0
  %v2368 = vadd.f32 0.0, %v2367
  %v2369 = vpop.f32.mrb[0].mxu0
  %v2370 = vpop.f32.mrb[0].mxu0
  %v2371 = vadd.f32 0.0, %v2370
  %v2372 = vpop.f32.mrb[0].mxu0
  %2373 = vmatprep.mubr.bf16.mxu0 0
  %2374 = vmatmul.mubr.bf16.gmra.mrb[0].mxu0 %v2166
  %v2375 = vpop.f32.mrb[0].mxu0
  %v2376 = vadd.f32 0.0, %v2375
  %v2377 = vpop.f32.mrb[0].mxu0
  %v2378 = vpop.f32.mrb[0].mxu0
  %v2379 = vadd.f32 0.0, %v2378
  %v2380 = vpop.f32.mrb[0].mxu0
  %2381 = vmatprep.mubr.bf16.mxu0 0
  %2382 = vmatmul.mubr.bf16.gmra.mrb[0].mxu0 %v2169
  %v2383 = vpop.f32.mrb[0].mxu0
  %v2384 = vadd.f32 0.0, %v2383
  %v2385 = vpop.f32.mrb[0].mxu0
  %v2386 = vpop.f32.mrb[0].mxu0
  %v2387 = vadd.f32 0.0, %v2386
  %v2388 = vpop.f32.mrb[0].mxu0
  %2389 = vmatprep.mubr.bf16.mxu0 0
  %2390 = vmatmul.mubr.bf16.gmra.mrb[0].mxu0 %v2172
  %v2391 = vpop.f32.mrb[0].mxu0
  %v2392 = vadd.f32 0.0, %v2391
  %v2393 = vpop.f32.mrb[0].mxu0
  %v2394 = vpop.f32.mrb[0].mxu0
  %v2395 = vadd.f32 0.0, %v2394
  %v2396 = vpop.f32.mrb[0].mxu0
  %2397 = vmatprep.mubr.bf16.mxu0 0
  %2398 = vmatmul.mubr.bf16.gmra.mrb[0].mxu0 %v2175
  %v2399 = vpop.f32.mrb[0].mxu0
  %v2400 = vadd.f32 0.0, %v2399
  %v2401 = vpop.f32.mrb[0].mxu0
  %v2402 = vpop.f32.mrb[0].mxu0
  %v2403 = vadd.f32 0.0, %v2402
  %v2404 = vpop.f32.mrb[0].mxu0
  %2405 = vmatprep.mubr.bf16.mxu0 0
  %2406 = vmatmul.mubr.bf16.gmra.mrb[0].mxu0 %v2178
  %v2407 = vpop.f32.mrb[0].mxu0
  %v2408 = vadd.f32 0.0, %v2407
  %v2409 = vpop.f32.mrb[0].mxu0
  %v2410 = vpop.f32.mrb[0].mxu0
  %v2411 = vadd.f32 0.0, %v2410
  %v2412 = vpop.f32.mrb[0].mxu0
  %2413 = vmatprep.mubr.bf16.mxu0 0
  %2414 = vmatmul.mubr.bf16.gmra.mrb[0].mxu0 %v2181
  %v2415 = vpop.f32.mrb[0].mxu0
  %v2416 = vadd.f32 0.0, %v2415
  %v2417 = vpop.f32.mrb[0].mxu0
  %v2418 = vpop.f32.mrb[0].mxu0
  %v2419 = vadd.f32 0.0, %v2418
  %v2420 = vpop.f32.mrb[0].mxu0
  %2421 = vmatprep.mubr.bf16.mxu0 0
  %2422 = vmatmul.mubr.bf16.gmra.mrb[0].mxu0 %v2184
  %v2423 = vpop.f32.mrb[0].mxu0
  %v2424 = vadd.f32 0.0, %v2423
  %v2425 = vpop.f32.mrb[0].mxu0
  %v2426 = vpop.f32.mrb[0].mxu0
  %v2427 = vadd.f32 0.0, %v2426
  %v2428 = vpop.f32.mrb[0].mxu0
  %2429 = vmatprep.mubr.bf16.mxu0 0
  %2430 = vmatmul.mubr.bf16.gmra.mrb[0].mxu0 %v2187
  %v2431 = vpop.f32.mrb[0].mxu0
  %v2432 = vadd.f32 0.0, %v2431
  %v2433 = vpop.f32.mrb[0].mxu0
  %v2434 = vpop.f32.mrb[0].mxu0
  %v2435 = vadd.f32 0.0, %v2434
  %v2436 = vpop.f32.mrb[0].mxu0
  %2437 = vmatprep.mubr.bf16.mxu0 0
  %2438 = vmatmul.mubr.bf16.gmra.mrb[0].mxu0 %v2190
  %v2439 = vpop.f32.mrb[0].mxu0
  %v2440 = vadd.f32 0.0, %v2439
  %v2441 = vpop.f32.mrb[0].mxu0
  %v2442 = vpop.f32.mrb[0].mxu0
  %v2443 = vadd.f32 0.0, %v2442
  %v2444 = vpop.f32.mrb[0].mxu0
  %2445 = vmatprep.mubr.bf16.mxu0 0
  %2446 = vmatmul.mubr.bf16.gmra.mrb[0].mxu0 %v2193
  %v2447 = vpop.f32.mrb[0].mxu0
  %v2448 = vadd.f32 0.0, %v2447
  %v2449 = vpop.f32.mrb[0].mxu0
  %v2450 = vpop.f32.mrb[0].mxu0
  %v2451 = vadd.f32 0.0, %v2450
  %v2452 = vpop.f32.mrb[0].mxu0
  %2453 = vmatprep.mubr.bf16.mxu0 0
  %2454 = vmatmul.mubr.bf16.gmra.mrb[0].mxu0 %v2196
  %v2455 = vpop.f32.mrb[0].mxu0
  %v2456 = vadd.f32 0.0, %v2455
  %v2457 = vpop.f32.mrb[0].mxu0
  %v2458 = vpop.f32.mrb[0].mxu0
  %v2459 = vadd.f32 0.0, %v2458
  %v2460 = vpop.f32.mrb[0].mxu0
  %2461 = vmatprep.mubr.bf16.mxu0 0
  %2462 = vmatmul.mubr.bf16.gmra.mrb[0].mxu0 %v2199
  %v2463 = vpop.f32.mrb[0].mxu0
  %v2464 = vadd.f32 0.0, %v2463
  %v2465 = vpop.f32.mrb[0].mxu0
  %v2466 = vpop.f32.mrb[0].mxu0
  %v2467 = vadd.f32 0.0, %v2466
  %v2468 = vpop.f32.mrb[0].mxu0
  %2469 = vmatprep.mubr.bf16.mxu0 0
  %2470 = vmatmul.mubr.bf16.gmra.mrb[0].mxu0 %v2202
  %v2471 = vpop.f32.mrb[0].mxu0
  %v2472 = vadd.f32 0.0, %v2471
  %v2473 = vpop.f32.mrb[0].mxu0
  %v2474 = vpop.f32.mrb[0].mxu0
  %v2475 = vadd.f32 0.0, %v2474
  %v2476 = vpop.f32.mrb[0].mxu0
  %2477 = vmatprep.mubr.bf16.mxu0 0
  %2478 = vmatmul.mubr.bf16.gmra.mrb[0].mxu0 %v2205
  %v2479 = vpop.f32.mrb[0].mxu0
  %v2480 = vadd.f32 0.0, %v2479
  %v2481 = vpop.f32.mrb[0].mxu0
  %v2482 = vpop.f32.mrb[0].mxu0
  %v2483 = vadd.f32 0.0, %v2482
  %v2484 = vpop.f32.mrb[0].mxu0
  %2485 = vmatprep.mubr.bf16.mxu0 0
  %2486 = vmatmul.mubr.bf16.gmra.mrb[0].mxu0 %v2208
  %v2487 = vpop.f32.mrb[0].mxu0
  %v2488 = vadd.f32 0.0, %v2487
  %v2489 = vpop.f32.mrb[0].mxu0
  %v2490 = vpop.f32.mrb[0].mxu0
  %v2491 = vadd.f32 0.0, %v2490
  %v2492 = vpop.f32.mrb[0].mxu0
  %2493 = vmatprep.mubr.bf16.mxu0 0
  %2494 = vmatmul.mubr.bf16.gmra.mrb[0].mxu0 %v2211
  %v2495 = vpop.f32.mrb[0].mxu0
  %v2496 = vadd.f32 0.0, %v2495
  %v2497 = vpop.f32.mrb[0].mxu0
  %v2498 = vpop.f32.mrb[0].mxu0
  %v2499 = vadd.f32 0.0, %v2498
  %v2500 = vpop.f32.mrb[0].mxu0
  %2501 = vdwg.mxu0
  %v2502 = vlaneseq
  %v2503 = vshrl.u32 %v2502, 7
  %v2504 = vsub.s32 0, %v2503
  %v2505 = vrot.slane %v32, %v2504
  %v2506 = vmul.f32 %v2248, %v2505
  %v2507 = vmul.f32 %v2251, %v2505
  %v2508 = vmul.f32 %v2256, %v2505
  %v2509 = vmul.f32 %v2259, %v2505
  %v2510 = vmul.f32 %v2264, %v2505
  %v2511 = vmul.f32 %v2267, %v2505
  %v2512 = vmul.f32 %v2272, %v2505
  %v2513 = vmul.f32 %v2275, %v2505
  %v2514 = vmul.f32 %v2280, %v2505
  %v2515 = vmul.f32 %v2283, %v2505
  %v2516 = vmul.f32 %v2288, %v2505
  %v2517 = vmul.f32 %v2291, %v2505
  %v2518 = vmul.f32 %v2296, %v2505
  %v2519 = vmul.f32 %v2299, %v2505
  %v2520 = vmul.f32 %v2304, %v2505
  %v2521 = vmul.f32 %v2307, %v2505
  %v2522 = vmul.f32 %v2312, %v2505
  %v2523 = vmul.f32 %v2315, %v2505
  %v2524 = vmul.f32 %v2320, %v2505
  %v2525 = vmul.f32 %v2323, %v2505
  %v2526 = vmul.f32 %v2328, %v2505
  %v2527 = vmul.f32 %v2331, %v2505
  %v2528 = vmul.f32 %v2336, %v2505
  %v2529 = vmul.f32 %v2339, %v2505
  %v2530 = vmul.f32 %v2344, %v2505
  %v2531 = vmul.f32 %v2347, %v2505
  %v2532 = vmul.f32 %v2352, %v2505
  %v2533 = vmul.f32 %v2355, %v2505
  %v2534 = vmul.f32 %v2360, %v2505
  %v2535 = vmul.f32 %v2363, %v2505
  %v2536 = vmul.f32 %v2368, %v2505
  %v2537 = vmul.f32 %v2371, %v2505
  %v2538 = vmul.f32 %v2376, %v2505
  %v2539 = vmul.f32 %v2379, %v2505
  %v2540 = vmul.f32 %v2384, %v2505
  %v2541 = vmul.f32 %v2387, %v2505
  %v2542 = vmul.f32 %v2392, %v2505
  %v2543 = vmul.f32 %v2395, %v2505
  %v2544 = vmul.f32 %v2400, %v2505
  %v2545 = vmul.f32 %v2403, %v2505
  %v2546 = vmul.f32 %v2408, %v2505
  %v2547 = vmul.f32 %v2411, %v2505
  %v2548 = vmul.f32 %v2416, %v2505
  %v2549 = vmul.f32 %v2419, %v2505
  %v2550 = vmul.f32 %v2424, %v2505
  %v2551 = vmul.f32 %v2427, %v2505
  %v2552 = vmul.f32 %v2432, %v2505
  %v2553 = vmul.f32 %v2435, %v2505
  %v2554 = vmul.f32 %v2440, %v2505
  %v2555 = vmul.f32 %v2443, %v2505
  %v2556 = vmul.f32 %v2448, %v2505
  %v2557 = vmul.f32 %v2451, %v2505
  %v2558 = vmul.f32 %v2456, %v2505
  %v2559 = vmul.f32 %v2459, %v2505
  %v2560 = vmul.f32 %v2464, %v2505
  %v2561 = vmul.f32 %v2467, %v2505
  %v2562 = vmul.f32 %v2472, %v2505
  %v2563 = vmul.f32 %v2475, %v2505
  %v2564 = vmul.f32 %v2480, %v2505
  %v2565 = vmul.f32 %v2483, %v2505
  %v2566 = vmul.f32 %v2488, %v2505
  %v2567 = vmul.f32 %v2491, %v2505
  %v2568 = vmul.f32 %v2496, %v2505
  %v2569 = vmul.f32 %v2499, %v2505
  %v2570 = vlaneseq
  %v2571 = vshrl.u32 %v2570, 7
  %v2572 = vsub.s32 0, %v2571
  %v2573 = vrot.slane %v33, %v2572
  %v2574 = vadd.f32 %v2506, %v2573
  %v2575 = vadd.f32 %v2507, %v2573
  %v2576 = vadd.f32 %v2508, %v2573
  %v2577 = vadd.f32 %v2509, %v2573
  %v2578 = vadd.f32 %v2510, %v2573
  %v2579 = vadd.f32 %v2511, %v2573
  %v2580 = vadd.f32 %v2512, %v2573
  %v2581 = vadd.f32 %v2513, %v2573
  %v2582 = vadd.f32 %v2514, %v2573
  %v2583 = vadd.f32 %v2515, %v2573
  %v2584 = vadd.f32 %v2516, %v2573
  %v2585 = vadd.f32 %v2517, %v2573
  %v2586 = vadd.f32 %v2518, %v2573
  %v2587 = vadd.f32 %v2519, %v2573
  %v2588 = vadd.f32 %v2520, %v2573
  %v2589 = vadd.f32 %v2521, %v2573
  %v2590 = vadd.f32 %v2522, %v2573
  %v2591 = vadd.f32 %v2523, %v2573
  %v2592 = vadd.f32 %v2524, %v2573
  %v2593 = vadd.f32 %v2525, %v2573
  %v2594 = vadd.f32 %v2526, %v2573
  %v2595 = vadd.f32 %v2527, %v2573
  %v2596 = vadd.f32 %v2528, %v2573
  %v2597 = vadd.f32 %v2529, %v2573
  %v2598 = vadd.f32 %v2530, %v2573
  %v2599 = vadd.f32 %v2531, %v2573
  %v2600 = vadd.f32 %v2532, %v2573
  %v2601 = vadd.f32 %v2533, %v2573
  %v2602 = vadd.f32 %v2534, %v2573
  %v2603 = vadd.f32 %v2535, %v2573
  %v2604 = vadd.f32 %v2536, %v2573
  %v2605 = vadd.f32 %v2537, %v2573
  %v2606 = vadd.f32 %v2538, %v2573
  %v2607 = vadd.f32 %v2539, %v2573
  %v2608 = vadd.f32 %v2540, %v2573
  %v2609 = vadd.f32 %v2541, %v2573
  %v2610 = vadd.f32 %v2542, %v2573
  %v2611 = vadd.f32 %v2543, %v2573
  %v2612 = vadd.f32 %v2544, %v2573
  %v2613 = vadd.f32 %v2545, %v2573
  %v2614 = vadd.f32 %v2546, %v2573
  %v2615 = vadd.f32 %v2547, %v2573
  %v2616 = vadd.f32 %v2548, %v2573
  %v2617 = vadd.f32 %v2549, %v2573
  %v2618 = vadd.f32 %v2550, %v2573
  %v2619 = vadd.f32 %v2551, %v2573
  %v2620 = vadd.f32 %v2552, %v2573
  %v2621 = vadd.f32 %v2553, %v2573
  %v2622 = vadd.f32 %v2554, %v2573
  %v2623 = vadd.f32 %v2555, %v2573
  %v2624 = vadd.f32 %v2556, %v2573
  %v2625 = vadd.f32 %v2557, %v2573
  %v2626 = vadd.f32 %v2558, %v2573
  %v2627 = vadd.f32 %v2559, %v2573
  %v2628 = vadd.f32 %v2560, %v2573
  %v2629 = vadd.f32 %v2561, %v2573
  %v2630 = vadd.f32 %v2562, %v2573
  %v2631 = vadd.f32 %v2563, %v2573
  %v2632 = vadd.f32 %v2564, %v2573
  %v2633 = vadd.f32 %v2565, %v2573
  %v2634 = vadd.f32 %v2566, %v2573
  %v2635 = vadd.f32 %v2567, %v2573
  %v2636 = vadd.f32 %v2568, %v2573
  %v2637 = vadd.f32 %v2569, %v2573
  %v2638 = vmax.f32 %v2574, 0.0
  %v2639 = vmax.f32 %v2575, 0.0
  %v2640 = vmax.f32 %v2576, 0.0
  %v2641 = vmax.f32 %v2577, 0.0
  %v2642 = vmax.f32 %v2578, 0.0
  %v2643 = vmax.f32 %v2579, 0.0
  %v2644 = vmax.f32 %v2580, 0.0
  %v2645 = vmax.f32 %v2581, 0.0
  %v2646 = vmax.f32 %v2582, 0.0
  %v2647 = vmax.f32 %v2583, 0.0
  %v2648 = vmax.f32 %v2584, 0.0
  %v2649 = vmax.f32 %v2585, 0.0
  %v2650 = vmax.f32 %v2586, 0.0
  %v2651 = vmax.f32 %v2587, 0.0
  %v2652 = vmax.f32 %v2588, 0.0
  %v2653 = vmax.f32 %v2589, 0.0
  %v2654 = vmax.f32 %v2590, 0.0
  %v2655 = vmax.f32 %v2591, 0.0
  %v2656 = vmax.f32 %v2592, 0.0
  %v2657 = vmax.f32 %v2593, 0.0
  %v2658 = vmax.f32 %v2594, 0.0
  %v2659 = vmax.f32 %v2595, 0.0
  %v2660 = vmax.f32 %v2596, 0.0
  %v2661 = vmax.f32 %v2597, 0.0
  %v2662 = vmax.f32 %v2598, 0.0
  %v2663 = vmax.f32 %v2599, 0.0
  %v2664 = vmax.f32 %v2600, 0.0
  %v2665 = vmax.f32 %v2601, 0.0
  %v2666 = vmax.f32 %v2602, 0.0
  %v2667 = vmax.f32 %v2603, 0.0
  %v2668 = vmax.f32 %v2604, 0.0
  %v2669 = vmax.f32 %v2605, 0.0
  %v2670 = vmax.f32 %v2606, 0.0
  %v2671 = vmax.f32 %v2607, 0.0
  %v2672 = vmax.f32 %v2608, 0.0
  %v2673 = vmax.f32 %v2609, 0.0
  %v2674 = vmax.f32 %v2610, 0.0
  %v2675 = vmax.f32 %v2611, 0.0
  %v2676 = vmax.f32 %v2612, 0.0
  %v2677 = vmax.f32 %v2613, 0.0
  %v2678 = vmax.f32 %v2614, 0.0
  %v2679 = vmax.f32 %v2615, 0.0
  %v2680 = vmax.f32 %v2616, 0.0
  %v2681 = vmax.f32 %v2617, 0.0
  %v2682 = vmax.f32 %v2618, 0.0
  %v2683 = vmax.f32 %v2619, 0.0
  %v2684 = vmax.f32 %v2620, 0.0
  %v2685 = vmax.f32 %v2621, 0.0
  %v2686 = vmax.f32 %v2622, 0.0
  %v2687 = vmax.f32 %v2623, 0.0
  %v2688 = vmax.f32 %v2624, 0.0
  %v2689 = vmax.f32 %v2625, 0.0
  %v2690 = vmax.f32 %v2626, 0.0
  %v2691 = vmax.f32 %v2627, 0.0
  %v2692 = vmax.f32 %v2628, 0.0
  %v2693 = vmax.f32 %v2629, 0.0
  %v2694 = vmax.f32 %v2630, 0.0
  %v2695 = vmax.f32 %v2631, 0.0
  %v2696 = vmax.f32 %v2632, 0.0
  %v2697 = vmax.f32 %v2633, 0.0
  %v2698 = vmax.f32 %v2634, 0.0
  %v2699 = vmax.f32 %v2635, 0.0
  %v2700 = vmax.f32 %v2636, 0.0
  %v2701 = vmax.f32 %v2637, 0.0
  %v2702 = vrot.slane %v2638, 7
  %v2703 = vrot.slane %v2639, 7
  %v2704 = vrot.slane %v2640, 7
  %v2705 = vrot.slane %v2641, 7
  %v2706 = vrot.slane %v2642, 7
  %v2707 = vrot.slane %v2643, 7
  %v2708 = vrot.slane %v2644, 7
  %v2709 = vrot.slane %v2645, 7
  %v2710 = vrot.slane %v2646, 7
  %v2711 = vrot.slane %v2647, 7
  %v2712 = vrot.slane %v2648, 7
  %v2713 = vrot.slane %v2649, 7
  %v2714 = vrot.slane %v2650, 7
  %v2715 = vrot.slane %v2651, 7
  %v2716 = vrot.slane %v2652, 7
  %v2717 = vrot.slane %v2653, 7
  %v2718 = vrot.slane %v2654, 7
  %v2719 = vrot.slane %v2655, 7
  %v2720 = vrot.slane %v2656, 7
  %v2721 = vrot.slane %v2657, 7
  %v2722 = vrot.slane %v2658, 7
  %v2723 = vrot.slane %v2659, 7
  %v2724 = vrot.slane %v2660, 7
  %v2725 = vrot.slane %v2661, 7
  %v2726 = vrot.slane %v2662, 7
  %v2727 = vrot.slane %v2663, 7
  %v2728 = vrot.slane %v2664, 7
  %v2729 = vrot.slane %v2665, 7
  %v2730 = vrot.slane %v2666, 7
  %v2731 = vrot.slane %v2667, 7
  %v2732 = vrot.slane %v2668, 7
  %v2733 = vrot.slane %v2669, 7
  %v2734 = vrot.slane %v2670, 7
  %v2735 = vrot.slane %v2671, 7
  %v2736 = vrot.slane %v2672, 7
  %v2737 = vrot.slane %v2673, 7
  %v2738 = vrot.slane %v2674, 7
  %v2739 = vrot.slane %v2675, 7
  %v2740 = vrot.slane %v2676, 7
  %v2741 = vrot.slane %v2677, 7
  %v2742 = vrot.slane %v2678, 7
  %v2743 = vrot.slane %v2679, 7
  %v2744 = vrot.slane %v2680, 7
  %v2745 = vrot.slane %v2681, 7
  %v2746 = vrot.slane %v2682, 7
  %v2747 = vrot.slane %v2683, 7
  %v2748 = vrot.slane %v2684, 7
  %v2749 = vrot.slane %v2685, 7
  %v2750 = vrot.slane %v2686, 7
  %v2751 = vrot.slane %v2687, 7
  %v2752 = vrot.slane %v2688, 7
  %v2753 = vrot.slane %v2689, 7
  %v2754 = vrot.slane %v2690, 7
  %v2755 = vrot.slane %v2691, 7
  %v2756 = vrot.slane %v2692, 7
  %v2757 = vrot.slane %v2693, 7
  %v2758 = vrot.slane %v2694, 7
  %v2759 = vrot.slane %v2695, 7
  %v2760 = vrot.slane %v2696, 7
  %v2761 = vrot.slane %v2697, 7
  %v2762 = vrot.slane %v2698, 7
  %v2763 = vrot.slane %v2699, 7
  %v2764 = vrot.slane %v2700, 7
  %v2765 = vrot.slane %v2701, 7
  %v2766 = vsel %vm1040, %v2764, %v2765
  %v2767 = vsel %vm1040, %v2763, %v2764
  %v2768 = vsel %vm1040, %v2762, %v2763
  %v2769 = vsel %vm1040, %v2761, %v2762
  %v2770 = vsel %vm1040, %v2760, %v2761
  %v2771 = vsel %vm1040, %v2759, %v2760
  %v2772 = vsel %vm1040, %v2758, %v2759
  %v2773 = vsel %vm1040, %v2757, %v2758
  %v2774 = vsel %vm1040, %v2756, %v2757
  %v2775 = vsel %vm1040, %v2755, %v2756
  %v2776 = vsel %vm1040, %v2754, %v2755
  %v2777 = vsel %vm1040, %v2753, %v2754
  %v2778 = vsel %vm1040, %v2752, %v2753
  %v2779 = vsel %vm1040, %v2751, %v2752
  %v2780 = vsel %vm1040, %v2750, %v2751
  %v2781 = vsel %vm1040, %v2749, %v2750
  %v2782 = vsel %vm1040, %v2748, %v2749
  %v2783 = vsel %vm1040, %v2747, %v2748
  %v2784 = vsel %vm1040, %v2746, %v2747
  %v2785 = vsel %vm1040, %v2745, %v2746
  %v2786 = vsel %vm1040, %v2744, %v2745
  %v2787 = vsel %vm1040, %v2743, %v2744
  %v2788 = vsel %vm1040, %v2742, %v2743
  %v2789 = vsel %vm1040, %v2741, %v2742
  %v2790 = vsel %vm1040, %v2740, %v2741
  %v2791 = vsel %vm1040, %v2739, %v2740
  %v2792 = vsel %vm1040, %v2738, %v2739
  %v2793 = vsel %vm1040, %v2737, %v2738
  %v2794 = vsel %vm1040, %v2736, %v2737
  %v2795 = vsel %vm1040, %v2735, %v2736
  %v2796 = vsel %vm1040, %v2734, %v2735
  %v2797 = vsel %vm1040, %v2733, %v2734
  %v2798 = vsel %vm1040, %v2732, %v2733
  %v2799 = vsel %vm1040, %v2731, %v2732
  %v2800 = vsel %vm1040, %v2730, %v2731
  %v2801 = vsel %vm1040, %v2729, %v2730
  %v2802 = vsel %vm1040, %v2728, %v2729
  %v2803 = vsel %vm1040, %v2727, %v2728
  %v2804 = vsel %vm1040, %v2726, %v2727
  %v2805 = vsel %vm1040, %v2725, %v2726
  %v2806 = vsel %vm1040, %v2724, %v2725
  %v2807 = vsel %vm1040, %v2723, %v2724
  %v2808 = vsel %vm1040, %v2722, %v2723
  %v2809 = vsel %vm1040, %v2721, %v2722
  %v2810 = vsel %vm1040, %v2720, %v2721
  %v2811 = vsel %vm1040, %v2719, %v2720
  %v2812 = vsel %vm1040, %v2718, %v2719
  %v2813 = vsel %vm1040, %v2717, %v2718
  %v2814 = vsel %vm1040, %v2716, %v2717
  %v2815 = vsel %vm1040, %v2715, %v2716
  %v2816 = vsel %vm1040, %v2714, %v2715
  %v2817 = vsel %vm1040, %v2713, %v2714
  %v2818 = vsel %vm1040, %v2712, %v2713
  %v2819 = vsel %vm1040, %v2711, %v2712
  %v2820 = vsel %vm1040, %v2710, %v2711
  %v2821 = vsel %vm1040, %v2709, %v2710
  %v2822 = vsel %vm1040, %v2708, %v2709
  %v2823 = vsel %vm1040, %v2707, %v2708
  %v2824 = vsel %vm1040, %v2706, %v2707
  %v2825 = vsel %vm1040, %v2705, %v2706
  %v2826 = vsel %vm1040, %v2704, %v2705
  %v2827 = vsel %vm1040, %v2703, %v2704
  %v2828 = vsel %vm1040, %v2702, %v2703
  %v2829 = vsel %vm1040, %v2765, %v2702
  %v2830 = vsel %vm1113, %v2829, 0.0
  %v2831 = vsel %vm1114, %v2828, 0.0
  %v2832 = vsel %vm1115, %v2827, 0.0
  %v2833 = vsel %vm1116, %v2826, 0.0
  %v2834 = vsel %vm1117, %v2825, 0.0
  %v2835 = vsel %vm1118, %v2824, 0.0
  %v2836 = vsel %vm1119, %v2823, 0.0
  %v2837 = vsel %vm1120, %v2822, 0.0
  %v2838 = vsel %vm1113, %v2821, 0.0
  %v2839 = vsel %vm1114, %v2820, 0.0
  %v2840 = vsel %vm1115, %v2819, 0.0
  %v2841 = vsel %vm1116, %v2818, 0.0
  %v2842 = vsel %vm1117, %v2817, 0.0
  %v2843 = vsel %vm1118, %v2816, 0.0
  %v2844 = vsel %vm1119, %v2815, 0.0
  %v2845 = vsel %vm1120, %v2814, 0.0
  %v2846 = vsel %vm1113, %v2813, 0.0
  %v2847 = vsel %vm1114, %v2812, 0.0
  %v2848 = vsel %vm1115, %v2811, 0.0
  %v2849 = vsel %vm1116, %v2810, 0.0
  %v2850 = vsel %vm1117, %v2809, 0.0
  %v2851 = vsel %vm1118, %v2808, 0.0
  %v2852 = vsel %vm1119, %v2807, 0.0
  %v2853 = vsel %vm1120, %v2806, 0.0
  %v2854 = vsel %vm1113, %v2805, 0.0
  %v2855 = vsel %vm1114, %v2804, 0.0
  %v2856 = vsel %vm1115, %v2803, 0.0
  %v2857 = vsel %vm1116, %v2802, 0.0
  %v2858 = vsel %vm1117, %v2801, 0.0
  %v2859 = vsel %vm1118, %v2800, 0.0
  %v2860 = vsel %vm1119, %v2799, 0.0
  %v2861 = vsel %vm1120, %v2798, 0.0
  %v2862 = vsel %vm1113, %v2797, 0.0
  %v2863 = vsel %vm1114, %v2796, 0.0
  %v2864 = vsel %vm1115, %v2795, 0.0
  %v2865 = vsel %vm1116, %v2794, 0.0
  %v2866 = vsel %vm1117, %v2793, 0.0
  %v2867 = vsel %vm1118, %v2792, 0.0
  %v2868 = vsel %vm1119, %v2791, 0.0
  %v2869 = vsel %vm1120, %v2790, 0.0
  %v2870 = vsel %vm1113, %v2789, 0.0
  %v2871 = vsel %vm1114, %v2788, 0.0
  %v2872 = vsel %vm1115, %v2787, 0.0
  %v2873 = vsel %vm1116, %v2786, 0.0
  %v2874 = vsel %vm1117, %v2785, 0.0
  %v2875 = vsel %vm1118, %v2784, 0.0
  %v2876 = vsel %vm1119, %v2783, 0.0
  %v2877 = vsel %vm1120, %v2782, 0.0
  %v2878 = vsel %vm1113, %v2781, 0.0
  %v2879 = vsel %vm1114, %v2780, 0.0
  %v2880 = vsel %vm1115, %v2779, 0.0
  %v2881 = vsel %vm1116, %v2778, 0.0
  %v2882 = vsel %vm1117, %v2777, 0.0
  %v2883 = vsel %vm1118, %v2776, 0.0
  %v2884 = vsel %vm1119, %v2775, 0.0
  %v2885 = vsel %vm1120, %v2774, 0.0
  %v2886 = vsel %vm1113, %v2773, 0.0
  %v2887 = vsel %vm1114, %v2772, 0.0
  %v2888 = vsel %vm1115, %v2771, 0.0
  %v2889 = vsel %vm1116, %v2770, 0.0
  %v2890 = vsel %vm1117, %v2769, 0.0
  %v2891 = vsel %vm1118, %v2768, 0.0
  %v2892 = vsel %vm1119, %v2767, 0.0
  %v2893 = vsel %vm1120, %v2766, 0.0
  %v2894 = vrot.slane %v2638, 1
  %v2895 = vrot.slane %v2639, 1
  %v2896 = vrot.slane %v2640, 1
  %v2897 = vrot.slane %v2641, 1
  %v2898 = vrot.slane %v2642, 1
  %v2899 = vrot.slane %v2643, 1
  %v2900 = vrot.slane %v2644, 1
  %v2901 = vrot.slane %v2645, 1
  %v2902 = vrot.slane %v2646, 1
  %v2903 = vrot.slane %v2647, 1
  %v2904 = vrot.slane %v2648, 1
  %v2905 = vrot.slane %v2649, 1
  %v2906 = vrot.slane %v2650, 1
  %v2907 = vrot.slane %v2651, 1
  %v2908 = vrot.slane %v2652, 1
  %v2909 = vrot.slane %v2653, 1
  %v2910 = vrot.slane %v2654, 1
  %v2911 = vrot.slane %v2655, 1
  %v2912 = vrot.slane %v2656, 1
  %v2913 = vrot.slane %v2657, 1
  %v2914 = vrot.slane %v2658, 1
  %v2915 = vrot.slane %v2659, 1
  %v2916 = vrot.slane %v2660, 1
  %v2917 = vrot.slane %v2661, 1
  %v2918 = vrot.slane %v2662, 1
  %v2919 = vrot.slane %v2663, 1
  %v2920 = vrot.slane %v2664, 1
  %v2921 = vrot.slane %v2665, 1
  %v2922 = vrot.slane %v2666, 1
  %v2923 = vrot.slane %v2667, 1
  %v2924 = vrot.slane %v2668, 1
  %v2925 = vrot.slane %v2669, 1
  %v2926 = vrot.slane %v2670, 1
  %v2927 = vrot.slane %v2671, 1
  %v2928 = vrot.slane %v2672, 1
  %v2929 = vrot.slane %v2673, 1
  %v2930 = vrot.slane %v2674, 1
  %v2931 = vrot.slane %v2675, 1
  %v2932 = vrot.slane %v2676, 1
  %v2933 = vrot.slane %v2677, 1
  %v2934 = vrot.slane %v2678, 1
  %v2935 = vrot.slane %v2679, 1
  %v2936 = vrot.slane %v2680, 1
  %v2937 = vrot.slane %v2681, 1
  %v2938 = vrot.slane %v2682, 1
  %v2939 = vrot.slane %v2683, 1
  %v2940 = vrot.slane %v2684, 1
  %v2941 = vrot.slane %v2685, 1
  %v2942 = vrot.slane %v2686, 1
  %v2943 = vrot.slane %v2687, 1
  %v2944 = vrot.slane %v2688, 1
  %v2945 = vrot.slane %v2689, 1
  %v2946 = vrot.slane %v2690, 1
  %v2947 = vrot.slane %v2691, 1
  %v2948 = vrot.slane %v2692, 1
  %v2949 = vrot.slane %v2693, 1
  %v2950 = vrot.slane %v2694, 1
  %v2951 = vrot.slane %v2695, 1
  %v2952 = vrot.slane %v2696, 1
  %v2953 = vrot.slane %v2697, 1
  %v2954 = vrot.slane %v2698, 1
  %v2955 = vrot.slane %v2699, 1
  %v2956 = vrot.slane %v2700, 1
  %v2957 = vrot.slane %v2701, 1
  %v2958 = vsel %vm1249, %v2956, %v2957
  %v2959 = vsel %vm1249, %v2955, %v2956
  %v2960 = vsel %vm1249, %v2954, %v2955
  %v2961 = vsel %vm1249, %v2953, %v2954
  %v2962 = vsel %vm1249, %v2952, %v2953
  %v2963 = vsel %vm1249, %v2951, %v2952
  %v2964 = vsel %vm1249, %v2950, %v2951
  %v2965 = vsel %vm1249, %v2949, %v2950
  %v2966 = vsel %vm1249, %v2948, %v2949
  %v2967 = vsel %vm1249, %v2947, %v2948
  %v2968 = vsel %vm1249, %v2946, %v2947
  %v2969 = vsel %vm1249, %v2945, %v2946
  %v2970 = vsel %vm1249, %v2944, %v2945
  %v2971 = vsel %vm1249, %v2943, %v2944
  %v2972 = vsel %vm1249, %v2942, %v2943
  %v2973 = vsel %vm1249, %v2941, %v2942
  %v2974 = vsel %vm1249, %v2940, %v2941
  %v2975 = vsel %vm1249, %v2939, %v2940
  %v2976 = vsel %vm1249, %v2938, %v2939
  %v2977 = vsel %vm1249, %v2937, %v2938
  %v2978 = vsel %vm1249, %v2936, %v2937
  %v2979 = vsel %vm1249, %v2935, %v2936
  %v2980 = vsel %vm1249, %v2934, %v2935
  %v2981 = vsel %vm1249, %v2933, %v2934
  %v2982 = vsel %vm1249, %v2932, %v2933
  %v2983 = vsel %vm1249, %v2931, %v2932
  %v2984 = vsel %vm1249, %v2930, %v2931
  %v2985 = vsel %vm1249, %v2929, %v2930
  %v2986 = vsel %vm1249, %v2928, %v2929
  %v2987 = vsel %vm1249, %v2927, %v2928
  %v2988 = vsel %vm1249, %v2926, %v2927
  %v2989 = vsel %vm1249, %v2925, %v2926
  %v2990 = vsel %vm1249, %v2924, %v2925
  %v2991 = vsel %vm1249, %v2923, %v2924
  %v2992 = vsel %vm1249, %v2922, %v2923
  %v2993 = vsel %vm1249, %v2921, %v2922
  %v2994 = vsel %vm1249, %v2920, %v2921
  %v2995 = vsel %vm1249, %v2919, %v2920
  %v2996 = vsel %vm1249, %v2918, %v2919
  %v2997 = vsel %vm1249, %v2917, %v2918
  %v2998 = vsel %vm1249, %v2916, %v2917
  %v2999 = vsel %vm1249, %v2915, %v2916
  %v3000 = vsel %vm1249, %v2914, %v2915
  %v3001 = vsel %vm1249, %v2913, %v2914
  %v3002 = vsel %vm1249, %v2912, %v2913
  %v3003 = vsel %vm1249, %v2911, %v2912
  %v3004 = vsel %vm1249, %v2910, %v2911
  %v3005 = vsel %vm1249, %v2909, %v2910
  %v3006 = vsel %vm1249, %v2908, %v2909
  %v3007 = vsel %vm1249, %v2907, %v2908
  %v3008 = vsel %vm1249, %v2906, %v2907
  %v3009 = vsel %vm1249, %v2905, %v2906
  %v3010 = vsel %vm1249, %v2904, %v2905
  %v3011 = vsel %vm1249, %v2903, %v2904
  %v3012 = vsel %vm1249, %v2902, %v2903
  %v3013 = vsel %vm1249, %v2901, %v2902
  %v3014 = vsel %vm1249, %v2900, %v2901
  %v3015 = vsel %vm1249, %v2899, %v2900
  %v3016 = vsel %vm1249, %v2898, %v2899
  %v3017 = vsel %vm1249, %v2897, %v2898
  %v3018 = vsel %vm1249, %v2896, %v2897
  %v3019 = vsel %vm1249, %v2895, %v2896
  %v3020 = vsel %vm1249, %v2894, %v2895
  %v3021 = vsel %vm1249, %v2957, %v2894
  %v3022 = vsel %vm1322, %v3020, 0.0
  %v3023 = vsel %vm1323, %v3019, 0.0
  %v3024 = vsel %vm1324, %v3018, 0.0
  %v3025 = vsel %vm1325, %v3017, 0.0
  %v3026 = vsel %vm1326, %v3016, 0.0
  %v3027 = vsel %vm1327, %v3015, 0.0
  %v3028 = vsel %vm1328, %v3014, 0.0
  %v3029 = vsel %vm1329, %v3013, 0.0
  %v3030 = vsel %vm1322, %v3012, 0.0
  %v3031 = vsel %vm1323, %v3011, 0.0
  %v3032 = vsel %vm1324, %v3010, 0.0
  %v3033 = vsel %vm1325, %v3009, 0.0
  %v3034 = vsel %vm1326, %v3008, 0.0
  %v3035 = vsel %vm1327, %v3007, 0.0
  %v3036 = vsel %vm1328, %v3006, 0.0
  %v3037 = vsel %vm1329, %v3005, 0.0
  %v3038 = vsel %vm1322, %v3004, 0.0
  %v3039 = vsel %vm1323, %v3003, 0.0
  %v3040 = vsel %vm1324, %v3002, 0.0
  %v3041 = vsel %vm1325, %v3001, 0.0
  %v3042 = vsel %vm1326, %v3000, 0.0
  %v3043 = vsel %vm1327, %v2999, 0.0
  %v3044 = vsel %vm1328, %v2998, 0.0
  %v3045 = vsel %vm1329, %v2997, 0.0
  %v3046 = vsel %vm1322, %v2996, 0.0
  %v3047 = vsel %vm1323, %v2995, 0.0
  %v3048 = vsel %vm1324, %v2994, 0.0
  %v3049 = vsel %vm1325, %v2993, 0.0
  %v3050 = vsel %vm1326, %v2992, 0.0
  %v3051 = vsel %vm1327, %v2991, 0.0
  %v3052 = vsel %vm1328, %v2990, 0.0
  %v3053 = vsel %vm1329, %v2989, 0.0
  %v3054 = vsel %vm1322, %v2988, 0.0
  %v3055 = vsel %vm1323, %v2987, 0.0
  %v3056 = vsel %vm1324, %v2986, 0.0
  %v3057 = vsel %vm1325, %v2985, 0.0
  %v3058 = vsel %vm1326, %v2984, 0.0
  %v3059 = vsel %vm1327, %v2983, 0.0
  %v3060 = vsel %vm1328, %v2982, 0.0
  %v3061 = vsel %vm1329, %v2981, 0.0
  %v3062 = vsel %vm1322, %v2980, 0.0
  %v3063 = vsel %vm1323, %v2979, 0.0
  %v3064 = vsel %vm1324, %v2978, 0.0
  %v3065 = vsel %vm1325, %v2977, 0.0
  %v3066 = vsel %vm1326, %v2976, 0.0
  %v3067 = vsel %vm1327, %v2975, 0.0
  %v3068 = vsel %vm1328, %v2974, 0.0
  %v3069 = vsel %vm1329, %v2973, 0.0
  %v3070 = vsel %vm1322, %v2972, 0.0
  %v3071 = vsel %vm1323, %v2971, 0.0
  %v3072 = vsel %vm1324, %v2970, 0.0
  %v3073 = vsel %vm1325, %v2969, 0.0
  %v3074 = vsel %vm1326, %v2968, 0.0
  %v3075 = vsel %vm1327, %v2967, 0.0
  %v3076 = vsel %vm1328, %v2966, 0.0
  %v3077 = vsel %vm1329, %v2965, 0.0
  %v3078 = vsel %vm1322, %v2964, 0.0
  %v3079 = vsel %vm1323, %v2963, 0.0
  %v3080 = vsel %vm1324, %v2962, 0.0
  %v3081 = vsel %vm1325, %v2961, 0.0
  %v3082 = vsel %vm1326, %v2960, 0.0
  %v3083 = vsel %vm1327, %v2959, 0.0
  %v3084 = vsel %vm1328, %v2958, 0.0
  %v3085 = vsel %vm1329, %v3021, 0.0
  %3150 = vrot.lane.b32.xlu0 %v2638, 64
  %v3151 = vpop.permute.xlu0 %3150
  %3152 = vrot.lane.b32.xlu0 %v2639, 64
  %v3153 = vpop.permute.xlu0 %3152
  %3154 = vrot.lane.b32.xlu0 %v2640, 64
  %v3155 = vpop.permute.xlu0 %3154
  %3156 = vrot.lane.b32.xlu0 %v2641, 64
  %v3157 = vpop.permute.xlu0 %3156
  %3158 = vrot.lane.b32.xlu0 %v2642, 64
  %v3159 = vpop.permute.xlu0 %3158
  %3160 = vrot.lane.b32.xlu0 %v2643, 64
  %v3161 = vpop.permute.xlu0 %3160
  %3162 = vrot.lane.b32.xlu0 %v2644, 64
  %v3163 = vpop.permute.xlu0 %3162
  %3164 = vrot.lane.b32.xlu0 %v2645, 64
  %v3165 = vpop.permute.xlu0 %3164
  %3166 = vrot.lane.b32.xlu0 %v2646, 64
  %v3167 = vpop.permute.xlu0 %3166
  %3168 = vrot.lane.b32.xlu0 %v2647, 64
  %v3169 = vpop.permute.xlu0 %3168
  %3170 = vrot.lane.b32.xlu0 %v2648, 64
  %v3171 = vpop.permute.xlu0 %3170
  %3172 = vrot.lane.b32.xlu0 %v2649, 64
  %v3173 = vpop.permute.xlu0 %3172
  %3174 = vrot.lane.b32.xlu0 %v2650, 64
  %v3175 = vpop.permute.xlu0 %3174
  %3176 = vrot.lane.b32.xlu0 %v2651, 64
  %v3177 = vpop.permute.xlu0 %3176
  %3178 = vrot.lane.b32.xlu0 %v2652, 64
  %v3179 = vpop.permute.xlu0 %3178
  %3180 = vrot.lane.b32.xlu0 %v2653, 64
  %v3181 = vpop.permute.xlu0 %3180
  %3182 = vrot.lane.b32.xlu0 %v2654, 64
  %v3183 = vpop.permute.xlu0 %3182
  %3184 = vrot.lane.b32.xlu0 %v2655, 64
  %v3185 = vpop.permute.xlu0 %3184
  %3186 = vrot.lane.b32.xlu0 %v2656, 64
  %v3187 = vpop.permute.xlu0 %3186
  %3188 = vrot.lane.b32.xlu0 %v2657, 64
  %v3189 = vpop.permute.xlu0 %3188
  %3190 = vrot.lane.b32.xlu0 %v2658, 64
  %v3191 = vpop.permute.xlu0 %3190
  %3192 = vrot.lane.b32.xlu0 %v2659, 64
  %v3193 = vpop.permute.xlu0 %3192
  %3194 = vrot.lane.b32.xlu0 %v2660, 64
  %v3195 = vpop.permute.xlu0 %3194
  %3196 = vrot.lane.b32.xlu0 %v2661, 64
  %v3197 = vpop.permute.xlu0 %3196
  %3198 = vrot.lane.b32.xlu0 %v2662, 64
  %v3199 = vpop.permute.xlu0 %3198
  %3200 = vrot.lane.b32.xlu0 %v2663, 64
  %v3201 = vpop.permute.xlu0 %3200
  %3202 = vrot.lane.b32.xlu0 %v2664, 64
  %v3203 = vpop.permute.xlu0 %3202
  %3204 = vrot.lane.b32.xlu0 %v2665, 64
  %v3205 = vpop.permute.xlu0 %3204
  %3206 = vrot.lane.b32.xlu0 %v2666, 64
  %v3207 = vpop.permute.xlu0 %3206
  %3208 = vrot.lane.b32.xlu0 %v2667, 64
  %v3209 = vpop.permute.xlu0 %3208
  %3210 = vrot.lane.b32.xlu0 %v2668, 64
  %v3211 = vpop.permute.xlu0 %3210
  %3212 = vrot.lane.b32.xlu0 %v2669, 64
  %v3213 = vpop.permute.xlu0 %3212
  %3214 = vrot.lane.b32.xlu0 %v2670, 64
  %v3215 = vpop.permute.xlu0 %3214
  %3216 = vrot.lane.b32.xlu0 %v2671, 64
  %v3217 = vpop.permute.xlu0 %3216
  %3218 = vrot.lane.b32.xlu0 %v2672, 64
  %v3219 = vpop.permute.xlu0 %3218
  %3220 = vrot.lane.b32.xlu0 %v2673, 64
  %v3221 = vpop.permute.xlu0 %3220
  %3222 = vrot.lane.b32.xlu0 %v2674, 64
  %v3223 = vpop.permute.xlu0 %3222
  %3224 = vrot.lane.b32.xlu0 %v2675, 64
  %v3225 = vpop.permute.xlu0 %3224
  %3226 = vrot.lane.b32.xlu0 %v2676, 64
  %v3227 = vpop.permute.xlu0 %3226
  %3228 = vrot.lane.b32.xlu0 %v2677, 64
  %v3229 = vpop.permute.xlu0 %3228
  %3230 = vrot.lane.b32.xlu0 %v2678, 64
  %v3231 = vpop.permute.xlu0 %3230
  %3232 = vrot.lane.b32.xlu0 %v2679, 64
  %v3233 = vpop.permute.xlu0 %3232
  %3234 = vrot.lane.b32.xlu0 %v2680, 64
  %v3235 = vpop.permute.xlu0 %3234
  %3236 = vrot.lane.b32.xlu0 %v2681, 64
  %v3237 = vpop.permute.xlu0 %3236
  %3238 = vrot.lane.b32.xlu0 %v2682, 64
  %v3239 = vpop.permute.xlu0 %3238
  %3240 = vrot.lane.b32.xlu0 %v2683, 64
  %v3241 = vpop.permute.xlu0 %3240
  %3242 = vrot.lane.b32.xlu0 %v2684, 64
  %v3243 = vpop.permute.xlu0 %3242
  %3244 = vrot.lane.b32.xlu0 %v2685, 64
  %v3245 = vpop.permute.xlu0 %3244
  %3246 = vrot.lane.b32.xlu0 %v2686, 64
  %v3247 = vpop.permute.xlu0 %3246
  %3248 = vrot.lane.b32.xlu0 %v2687, 64
  %v3249 = vpop.permute.xlu0 %3248
  %3250 = vrot.lane.b32.xlu0 %v2688, 64
  %v3251 = vpop.permute.xlu0 %3250
  %3252 = vrot.lane.b32.xlu0 %v2689, 64
  %v3253 = vpop.permute.xlu0 %3252
  %3254 = vrot.lane.b32.xlu0 %v2690, 64
  %v3255 = vpop.permute.xlu0 %3254
  %3256 = vrot.lane.b32.xlu0 %v2691, 64
  %v3257 = vpop.permute.xlu0 %3256
  %3258 = vrot.lane.b32.xlu0 %v2692, 64
  %v3259 = vpop.permute.xlu0 %3258
  %3260 = vrot.lane.b32.xlu0 %v2693, 64
  %v3261 = vpop.permute.xlu0 %3260
  %3262 = vrot.lane.b32.xlu0 %v2694, 64
  %v3263 = vpop.permute.xlu0 %3262
  %3264 = vrot.lane.b32.xlu0 %v2695, 64
  %v3265 = vpop.permute.xlu0 %3264
  %3266 = vrot.lane.b32.xlu0 %v2696, 64
  %v3267 = vpop.permute.xlu0 %3266
  %3268 = vrot.lane.b32.xlu0 %v2697, 64
  %v3269 = vpop.permute.xlu0 %3268
  %3270 = vrot.lane.b32.xlu0 %v2698, 64
  %v3271 = vpop.permute.xlu0 %3270
  %3272 = vrot.lane.b32.xlu0 %v2699, 64
  %v3273 = vpop.permute.xlu0 %3272
  %3274 = vrot.lane.b32.xlu0 %v2700, 64
  %v3275 = vpop.permute.xlu0 %3274
  %3276 = vrot.lane.b32.xlu0 %v2701, 64
  %v3277 = vpop.permute.xlu0 %3276
  %v3342 = vsel %vm1971, %v2830, %v3151
  %v3343 = vsel %vm1971, %v2831, %v3153
  %v3344 = vsel %vm1971, %v2832, %v3155
  %v3345 = vsel %vm1971, %v2833, %v3157
  %v3346 = vsel %vm1971, %v2834, %v3159
  %v3347 = vsel %vm1971, %v2835, %v3161
  %v3348 = vsel %vm1971, %v2836, %v3163
  %v3349 = vsel %vm1971, %v2837, %v3165
  %v3350 = vsel %vm1971, %v2838, %v3167
  %v3351 = vsel %vm1971, %v2839, %v3169
  %v3352 = vsel %vm1971, %v2840, %v3171
  %v3353 = vsel %vm1971, %v2841, %v3173
  %v3354 = vsel %vm1971, %v2842, %v3175
  %v3355 = vsel %vm1971, %v2843, %v3177
  %v3356 = vsel %vm1971, %v2844, %v3179
  %v3357 = vsel %vm1971, %v2845, %v3181
  %v3358 = vsel %vm1971, %v2846, %v3183
  %v3359 = vsel %vm1971, %v2847, %v3185
  %v3360 = vsel %vm1971, %v2848, %v3187
  %v3361 = vsel %vm1971, %v2849, %v3189
  %v3362 = vsel %vm1971, %v2850, %v3191
  %v3363 = vsel %vm1971, %v2851, %v3193
  %v3364 = vsel %vm1971, %v2852, %v3195
  %v3365 = vsel %vm1971, %v2853, %v3197
  %v3366 = vsel %vm1971, %v2854, %v3199
  %v3367 = vsel %vm1971, %v2855, %v3201
  %v3368 = vsel %vm1971, %v2856, %v3203
  %v3369 = vsel %vm1971, %v2857, %v3205
  %v3370 = vsel %vm1971, %v2858, %v3207
  %v3371 = vsel %vm1971, %v2859, %v3209
  %v3372 = vsel %vm1971, %v2860, %v3211
  %v3373 = vsel %vm1971, %v2861, %v3213
  %v3374 = vsel %vm1971, %v2862, %v3215
  %v3375 = vsel %vm1971, %v2863, %v3217
  %v3376 = vsel %vm1971, %v2864, %v3219
  %v3377 = vsel %vm1971, %v2865, %v3221
  %v3378 = vsel %vm1971, %v2866, %v3223
  %v3379 = vsel %vm1971, %v2867, %v3225
  %v3380 = vsel %vm1971, %v2868, %v3227
  %v3381 = vsel %vm1971, %v2869, %v3229
  %v3382 = vsel %vm1971, %v2870, %v3231
  %v3383 = vsel %vm1971, %v2871, %v3233
  %v3384 = vsel %vm1971, %v2872, %v3235
  %v3385 = vsel %vm1971, %v2873, %v3237
  %v3386 = vsel %vm1971, %v2874, %v3239
  %v3387 = vsel %vm1971, %v2875, %v3241
  %v3388 = vsel %vm1971, %v2876, %v3243
  %v3389 = vsel %vm1971, %v2877, %v3245
  %v3390 = vsel %vm1971, %v2878, %v3247
  %v3391 = vsel %vm1971, %v2879, %v3249
  %v3392 = vsel %vm1971, %v2880, %v3251
  %v3393 = vsel %vm1971, %v2881, %v3253
  %v3394 = vsel %vm1971, %v2882, %v3255
  %v3395 = vsel %vm1971, %v2883, %v3257
  %v3396 = vsel %vm1971, %v2884, %v3259
  %v3397 = vsel %vm1971, %v2885, %v3261
  %v3398 = vsel %vm1971, %v2886, %v3263
  %v3399 = vsel %vm1971, %v2887, %v3265
  %v3400 = vsel %vm1971, %v2888, %v3267
  %v3401 = vsel %vm1971, %v2889, %v3269
  %v3402 = vsel %vm1971, %v2890, %v3271
  %v3403 = vsel %vm1971, %v2891, %v3273
  %v3404 = vsel %vm1971, %v2892, %v3275
  %v3405 = vsel %vm1971, %v2893, %v3277
  %v3406 = vpack.c.bf16 %v3343, %v3342
  %v3407 = vpack.c.bf16 %v3023, %v3022
  %v3408 = vpack.c.bf16 %v3345, %v3344
  %v3409 = vpack.c.bf16 %v3025, %v3024
  %v3410 = vpack.c.bf16 %v3347, %v3346
  %v3411 = vpack.c.bf16 %v3027, %v3026
  %v3412 = vpack.c.bf16 %v3349, %v3348
  %v3413 = vpack.c.bf16 %v3029, %v3028
  %v3414 = vpack.c.bf16 %v3351, %v3350
  %v3415 = vpack.c.bf16 %v3031, %v3030
  %v3416 = vpack.c.bf16 %v3353, %v3352
  %v3417 = vpack.c.bf16 %v3033, %v3032
  %v3418 = vpack.c.bf16 %v3355, %v3354
  %v3419 = vpack.c.bf16 %v3035, %v3034
  %v3420 = vpack.c.bf16 %v3357, %v3356
  %v3421 = vpack.c.bf16 %v3037, %v3036
  %v3422 = vpack.c.bf16 %v3359, %v3358
  %v3423 = vpack.c.bf16 %v3039, %v3038
  %v3424 = vpack.c.bf16 %v3361, %v3360
  %v3425 = vpack.c.bf16 %v3041, %v3040
  %v3426 = vpack.c.bf16 %v3363, %v3362
  %v3427 = vpack.c.bf16 %v3043, %v3042
  %v3428 = vpack.c.bf16 %v3365, %v3364
  %v3429 = vpack.c.bf16 %v3045, %v3044
  %v3430 = vpack.c.bf16 %v3367, %v3366
  %v3431 = vpack.c.bf16 %v3047, %v3046
  %v3432 = vpack.c.bf16 %v3369, %v3368
  %v3433 = vpack.c.bf16 %v3049, %v3048
  %v3434 = vpack.c.bf16 %v3371, %v3370
  %v3435 = vpack.c.bf16 %v3051, %v3050
  %v3436 = vpack.c.bf16 %v3373, %v3372
  %v3437 = vpack.c.bf16 %v3053, %v3052
  %v3438 = vpack.c.bf16 %v3375, %v3374
  %v3439 = vpack.c.bf16 %v3055, %v3054
  %v3440 = vpack.c.bf16 %v3377, %v3376
  %v3441 = vpack.c.bf16 %v3057, %v3056
  %v3442 = vpack.c.bf16 %v3379, %v3378
  %v3443 = vpack.c.bf16 %v3059, %v3058
  %v3444 = vpack.c.bf16 %v3381, %v3380
  %v3445 = vpack.c.bf16 %v3061, %v3060
  %v3446 = vpack.c.bf16 %v3383, %v3382
  %v3447 = vpack.c.bf16 %v3063, %v3062
  %v3448 = vpack.c.bf16 %v3385, %v3384
  %v3449 = vpack.c.bf16 %v3065, %v3064
  %v3450 = vpack.c.bf16 %v3387, %v3386
  %v3451 = vpack.c.bf16 %v3067, %v3066
  %v3452 = vpack.c.bf16 %v3389, %v3388
  %v3453 = vpack.c.bf16 %v3069, %v3068
  %v3454 = vpack.c.bf16 %v3391, %v3390
  %v3455 = vpack.c.bf16 %v3071, %v3070
  %v3456 = vpack.c.bf16 %v3393, %v3392
  %v3457 = vpack.c.bf16 %v3073, %v3072
  %v3458 = vpack.c.bf16 %v3395, %v3394
  %v3459 = vpack.c.bf16 %v3075, %v3074
  %v3460 = vpack.c.bf16 %v3397, %v3396
  %v3461 = vpack.c.bf16 %v3077, %v3076
  %v3462 = vpack.c.bf16 %v3399, %v3398
  %v3463 = vpack.c.bf16 %v3079, %v3078
  %v3464 = vpack.c.bf16 %v3401, %v3400
  %v3465 = vpack.c.bf16 %v3081, %v3080
  %v3466 = vpack.c.bf16 %v3403, %v3402
  %v3467 = vpack.c.bf16 %v3083, %v3082
  %v3468 = vpack.c.bf16 %v3405, %v3404
  %v3469 = vpack.c.bf16 %v3085, %v3084
  %v3470 = vld [vmem:[%s3] sm:$0xf]
  %v3471 = vld [vmem:[%s3 + $0x4] sm:$0xf]
  %v3472 = vld [vmem:[%s3 + $0x8] sm:$0xf]
  %v3473 = vld [vmem:[%s3 + $0xc] sm:$0xf]
  %v3474 = vld [vmem:[%s3 + $0x10] sm:$0xf]
  %v3475 = vld [vmem:[%s3 + $0x14] sm:$0xf]
  %v3476 = vld [vmem:[%s3 + $0x18] sm:$0xf]
  %v3477 = vld [vmem:[%s3 + $0x1c] sm:$0xf]
  %v3478 = vld [vmem:[%s3 + $0x20] sm:$0xf]
  %v3479 = vld [vmem:[%s3 + $0x24] sm:$0xf]
  %v3480 = vld [vmem:[%s3 + $0x28] sm:$0xf]
  %v3481 = vld [vmem:[%s3 + $0x2c] sm:$0xf]
  %v3482 = vld [vmem:[%s3 + $0x30] sm:$0xf]
  %v3483 = vld [vmem:[%s3 + $0x34] sm:$0xf]
  %v3484 = vld [vmem:[%s3 + $0x38] sm:$0xf]
  %v3485 = vld [vmem:[%s3 + $0x3c] sm:$0xf]
  %v3486 = vld [vmem:[%s3 + $0x40] sm:$0xf]
  %v3487 = vld [vmem:[%s3 + $0x44] sm:$0xf]
  %v3488 = vld [vmem:[%s3 + $0x48] sm:$0xf]
  %v3489 = vld [vmem:[%s3 + $0x4c] sm:$0xf]
  %v3490 = vld [vmem:[%s3 + $0x50] sm:$0xf]
  %v3491 = vld [vmem:[%s3 + $0x54] sm:$0xf]
  %v3492 = vld [vmem:[%s3 + $0x58] sm:$0xf]
  %v3493 = vld [vmem:[%s3 + $0x5c] sm:$0xf]
  %v3518 = vunpack.c.l.b16 %v3470
  %v3519 = vunpack.c.l.b16 %v3471
  %v3520 = vunpack.c.l.b16 %v3472
  %v3521 = vunpack.c.l.b16 %v3473
  %v3522 = vunpack.c.l.b16 %v3474
  %v3523 = vunpack.c.l.b16 %v3475
  %v3524 = vunpack.c.l.b16 %v3476
  %v3525 = vunpack.c.l.b16 %v3477
  %v3526 = vunpack.c.l.b16 %v3478
  %v3527 = vunpack.c.l.b16 %v3479
  %v3528 = vunpack.c.l.b16 %v3480
  %v3529 = vunpack.c.l.b16 %v3481
  %v3530 = vunpack.c.l.b16 %v3482
  %v3531 = vunpack.c.l.b16 %v3483
  %v3532 = vunpack.c.l.b16 %v3484
  %v3533 = vunpack.c.l.b16 %v3485
  %v3534 = vunpack.c.l.b16 %v3486
  %v3535 = vunpack.c.l.b16 %v3487
  %v3536 = vunpack.c.l.b16 %v3488
  %v3537 = vunpack.c.l.b16 %v3489
  %v3538 = vunpack.c.l.b16 %v3490
  %v3539 = vunpack.c.l.b16 %v3491
  %v3540 = vunpack.c.l.b16 %v3492
  %v3541 = vunpack.c.l.b16 %v3493
  %v3542 = vpack.c.b16 %v3519, %v3518
  %v3543 = vpack.c.b16 %v3521, %v3520
  %v3544 = vpack.c.b16 %v3523, %v3522
  %v3545 = vpack.c.b16 %v3525, %v3524
  %v3546 = vpack.c.b16 %v3527, %v3526
  %v3547 = vpack.c.b16 %v3529, %v3528
  %v3548 = vpack.c.b16 %v3531, %v3530
  %v3549 = vpack.c.b16 %v3533, %v3532
  %v3550 = vpack.c.b16 %v3535, %v3534
  %v3551 = vpack.c.b16 %v3537, %v3536
  %v3552 = vpack.c.b16 %v3539, %v3538
  %v3553 = vpack.c.b16 %v3541, %v3540
  %v3567 = vsel %vm1971, %v3407, 0
  %v3570 = vsel %vm1971, %v3409, 0
  %v3573 = vsel %vm1971, %v3411, 0
  %v3576 = vsel %vm1971, %v3413, 0
  %v3579 = vsel %vm1971, %v3415, 0
  %v3582 = vsel %vm1971, %v3417, 0
  %v3585 = vsel %vm1971, %v3419, 0
  %v3588 = vsel %vm1971, %v3421, 0
  %v3591 = vsel %vm1971, %v3423, 0
  %v3594 = vsel %vm1971, %v3425, 0
  %v3597 = vsel %vm1971, %v3427, 0
  %v3600 = vsel %vm1971, %v3429, 0
  %v3603 = vsel %vm1971, %v3431, 0
  %v3606 = vsel %vm1971, %v3433, 0
  %v3609 = vsel %vm1971, %v3435, 0
  %v3612 = vsel %vm1971, %v3437, 0
  %v3615 = vsel %vm1971, %v3439, 0
  %v3618 = vsel %vm1971, %v3441, 0
  %v3621 = vsel %vm1971, %v3443, 0
  %v3624 = vsel %vm1971, %v3445, 0
  %v3627 = vsel %vm1971, %v3447, 0
  %v3630 = vsel %vm1971, %v3449, 0
  %v3633 = vsel %vm1971, %v3451, 0
  %v3636 = vsel %vm1971, %v3453, 0
  %v3639 = vsel %vm1971, %v3455, 0
  %v3642 = vsel %vm1971, %v3457, 0
  %v3645 = vsel %vm1971, %v3459, 0
  %v3648 = vsel %vm1971, %v3461, 0
  %v3651 = vsel %vm1971, %v3463, 0
  %v3654 = vsel %vm1971, %v3465, 0
  %v3657 = vsel %vm1971, %v3467, 0
  %v3660 = vsel %vm1971, %v3469, 0
  %3662 = vmatprep.subr.bf16.mxu0 0
  %3663 = vmatpush1.bf16.msra.mxu0 %v3542
  %3664 = vmatprep.subr.bf16.mxu0 0
  %3665 = vmatpush1.bf16.msra.mxu0 %v3543
  %3666 = vmatprep.subr.bf16.mxu0 0
  %3667 = vmatpush1.bf16.msra.mxu0 %v3544
  %3668 = vmatprep.subr.bf16.mxu0 0
  %3669 = vmatpush1.bf16.msra.mxu0 %v3545
  %3670 = vmatprep.subr.bf16.mxu0 0
  %3671 = vmatpush1.bf16.msra.mxu0 %v3546
  %3672 = vmatprep.subr.bf16.mxu0 0
  %3673 = vmatpush1.bf16.msra.mxu0 %v3547
  %3674 = vmatprep.subr.bf16.mxu0 0
  %3675 = vmatpush1.bf16.msra.mxu0 %v3548
  %3676 = vmatprep.subr.bf16.mxu0 0
  %3677 = vmatpush1.bf16.msra.mxu0 %v3549
  %3678 = vmatprep.subr.bf16.mxu0 0
  %3679 = vmatpush1.bf16.msra.mxu0 %v3550
  %3680 = vmatprep.subr.bf16.mxu0 0
  %3681 = vmatpush1.bf16.msra.mxu0 %v3551
  %3682 = vmatprep.subr.bf16.mxu0 0
  %3683 = vmatpush1.bf16.msra.mxu0 %v3552
  %3684 = vmatprep.subr.bf16.mxu0 0
  %3685 = vmatpush1.bf16.msra.mxu0 %v3553
  %3686 = vmatprep.subr.bf16.mxu0 0
  %3687 = vmatpush1.bf16.msra.mxu0 0
  %3688 = vmatprep.subr.bf16.mxu0 0
  %3689 = vmatpush1.bf16.msra.mxu0 0
  %3690 = vmatprep.subr.bf16.mxu0 0
  %3691 = vmatpush1.bf16.msra.mxu0 0
  %3692 = vmatprep.subr.bf16.mxu0 0
  %3693 = vmatpush1.bf16.msra.mxu0 0
  %3694 = vmatprep.mubr.bf16.mxu0 %v3567
  %3695 = vmatmul.mubr.bf16.gmra.mrb[0].mxu0 %v3406
  %v3696 = vpop.f32.mrb[0].mxu0
  %v3697 = vadd.f32 0.0, %v3696
  %v3698 = vpop.f32.mrb[0].mxu0
  %v3699 = vpop.f32.mrb[0].mxu0
  %v3700 = vadd.f32 0.0, %v3699
  %v3701 = vpop.f32.mrb[0].mxu0
  %3702 = vmatprep.mubr.bf16.mxu0 %v3570
  %3703 = vmatmul.mubr.bf16.gmra.mrb[0].mxu0 %v3408
  %v3704 = vpop.f32.mrb[0].mxu0
  %v3705 = vadd.f32 0.0, %v3704
  %v3706 = vpop.f32.mrb[0].mxu0
  %v3707 = vpop.f32.mrb[0].mxu0
  %v3708 = vadd.f32 0.0, %v3707
  %v3709 = vpop.f32.mrb[0].mxu0
  %3710 = vmatprep.mubr.bf16.mxu0 %v3573
  %3711 = vmatmul.mubr.bf16.gmra.mrb[0].mxu0 %v3410
  %v3712 = vpop.f32.mrb[0].mxu0
  %v3713 = vadd.f32 0.0, %v3712
  %v3714 = vpop.f32.mrb[0].mxu0
  %v3715 = vpop.f32.mrb[0].mxu0
  %v3716 = vadd.f32 0.0, %v3715
  %v3717 = vpop.f32.mrb[0].mxu0
  %3718 = vmatprep.mubr.bf16.mxu0 %v3576
  %3719 = vmatmul.mubr.bf16.gmra.mrb[0].mxu0 %v3412
  %v3720 = vpop.f32.mrb[0].mxu0
  %v3721 = vadd.f32 0.0, %v3720
  %v3722 = vpop.f32.mrb[0].mxu0
  %v3723 = vpop.f32.mrb[0].mxu0
  %v3724 = vadd.f32 0.0, %v3723
  %v3725 = vpop.f32.mrb[0].mxu0
  %3726 = vmatprep.mubr.bf16.mxu0 %v3579
  %3727 = vmatmul.mubr.bf16.gmra.mrb[0].mxu0 %v3414
  %v3728 = vpop.f32.mrb[0].mxu0
  %v3729 = vadd.f32 0.0, %v3728
  %v3730 = vpop.f32.mrb[0].mxu0
  %v3731 = vpop.f32.mrb[0].mxu0
  %v3732 = vadd.f32 0.0, %v3731
  %v3733 = vpop.f32.mrb[0].mxu0
  %3734 = vmatprep.mubr.bf16.mxu0 %v3582
  %3735 = vmatmul.mubr.bf16.gmra.mrb[0].mxu0 %v3416
  %v3736 = vpop.f32.mrb[0].mxu0
  %v3737 = vadd.f32 0.0, %v3736
  %v3738 = vpop.f32.mrb[0].mxu0
  %v3739 = vpop.f32.mrb[0].mxu0
  %v3740 = vadd.f32 0.0, %v3739
  %v3741 = vpop.f32.mrb[0].mxu0
  %3742 = vmatprep.mubr.bf16.mxu0 %v3585
  %3743 = vmatmul.mubr.bf16.gmra.mrb[0].mxu0 %v3418
  %v3744 = vpop.f32.mrb[0].mxu0
  %v3745 = vadd.f32 0.0, %v3744
  %v3746 = vpop.f32.mrb[0].mxu0
  %v3747 = vpop.f32.mrb[0].mxu0
  %v3748 = vadd.f32 0.0, %v3747
  %v3749 = vpop.f32.mrb[0].mxu0
  %3750 = vmatprep.mubr.bf16.mxu0 %v3588
  %3751 = vmatmul.mubr.bf16.gmra.mrb[0].mxu0 %v3420
  %v3752 = vpop.f32.mrb[0].mxu0
  %v3753 = vadd.f32 0.0, %v3752
  %v3754 = vpop.f32.mrb[0].mxu0
  %v3755 = vpop.f32.mrb[0].mxu0
  %v3756 = vadd.f32 0.0, %v3755
  %v3757 = vpop.f32.mrb[0].mxu0
  %3758 = vmatprep.mubr.bf16.mxu0 %v3591
  %3759 = vmatmul.mubr.bf16.gmra.mrb[0].mxu0 %v3422
  %v3760 = vpop.f32.mrb[0].mxu0
  %v3761 = vadd.f32 0.0, %v3760
  %v3762 = vpop.f32.mrb[0].mxu0
  %v3763 = vpop.f32.mrb[0].mxu0
  %v3764 = vadd.f32 0.0, %v3763
  %v3765 = vpop.f32.mrb[0].mxu0
  %3766 = vmatprep.mubr.bf16.mxu0 %v3594
  %3767 = vmatmul.mubr.bf16.gmra.mrb[0].mxu0 %v3424
  %v3768 = vpop.f32.mrb[0].mxu0
  %v3769 = vadd.f32 0.0, %v3768
  %v3770 = vpop.f32.mrb[0].mxu0
  %v3771 = vpop.f32.mrb[0].mxu0
  %v3772 = vadd.f32 0.0, %v3771
  %v3773 = vpop.f32.mrb[0].mxu0
  %3774 = vmatprep.mubr.bf16.mxu0 %v3597
  %3775 = vmatmul.mubr.bf16.gmra.mrb[0].mxu0 %v3426
  %v3776 = vpop.f32.mrb[0].mxu0
  %v3777 = vadd.f32 0.0, %v3776
  %v3778 = vpop.f32.mrb[0].mxu0
  %v3779 = vpop.f32.mrb[0].mxu0
  %v3780 = vadd.f32 0.0, %v3779
  %v3781 = vpop.f32.mrb[0].mxu0
  %3782 = vmatprep.mubr.bf16.mxu0 %v3600
  %3783 = vmatmul.mubr.bf16.gmra.mrb[0].mxu0 %v3428
  %v3784 = vpop.f32.mrb[0].mxu0
  %v3785 = vadd.f32 0.0, %v3784
  %v3786 = vpop.f32.mrb[0].mxu0
  %v3787 = vpop.f32.mrb[0].mxu0
  %v3788 = vadd.f32 0.0, %v3787
  %v3789 = vpop.f32.mrb[0].mxu0
  %3790 = vmatprep.mubr.bf16.mxu0 %v3603
  %3791 = vmatmul.mubr.bf16.gmra.mrb[0].mxu0 %v3430
  %v3792 = vpop.f32.mrb[0].mxu0
  %v3793 = vadd.f32 0.0, %v3792
  %v3794 = vpop.f32.mrb[0].mxu0
  %v3795 = vpop.f32.mrb[0].mxu0
  %v3796 = vadd.f32 0.0, %v3795
  %v3797 = vpop.f32.mrb[0].mxu0
  %3798 = vmatprep.mubr.bf16.mxu0 %v3606
  %3799 = vmatmul.mubr.bf16.gmra.mrb[0].mxu0 %v3432
  %v3800 = vpop.f32.mrb[0].mxu0
  %v3801 = vadd.f32 0.0, %v3800
  %v3802 = vpop.f32.mrb[0].mxu0
  %v3803 = vpop.f32.mrb[0].mxu0
  %v3804 = vadd.f32 0.0, %v3803
  %v3805 = vpop.f32.mrb[0].mxu0
  %3806 = vmatprep.mubr.bf16.mxu0 %v3609
  %3807 = vmatmul.mubr.bf16.gmra.mrb[0].mxu0 %v3434
  %v3808 = vpop.f32.mrb[0].mxu0
  %v3809 = vadd.f32 0.0, %v3808
  %v3810 = vpop.f32.mrb[0].mxu0
  %v3811 = vpop.f32.mrb[0].mxu0
  %v3812 = vadd.f32 0.0, %v3811
  %v3813 = vpop.f32.mrb[0].mxu0
  %3814 = vmatprep.mubr.bf16.mxu0 %v3612
  %3815 = vmatmul.mubr.bf16.gmra.mrb[0].mxu0 %v3436
  %v3816 = vpop.f32.mrb[0].mxu0
  %v3817 = vadd.f32 0.0, %v3816
  %v3818 = vpop.f32.mrb[0].mxu0
  %v3819 = vpop.f32.mrb[0].mxu0
  %v3820 = vadd.f32 0.0, %v3819
  %v3821 = vpop.f32.mrb[0].mxu0
  %3822 = vmatprep.mubr.bf16.mxu0 %v3615
  %3823 = vmatmul.mubr.bf16.gmra.mrb[0].mxu0 %v3438
  %v3824 = vpop.f32.mrb[0].mxu0
  %v3825 = vadd.f32 0.0, %v3824
  %v3826 = vpop.f32.mrb[0].mxu0
  %v3827 = vpop.f32.mrb[0].mxu0
  %v3828 = vadd.f32 0.0, %v3827
  %v3829 = vpop.f32.mrb[0].mxu0
  %3830 = vmatprep.mubr.bf16.mxu0 %v3618
  %3831 = vmatmul.mubr.bf16.gmra.mrb[0].mxu0 %v3440
  %v3832 = vpop.f32.mrb[0].mxu0
  %v3833 = vadd.f32 0.0, %v3832
  %v3834 = vpop.f32.mrb[0].mxu0
  %v3835 = vpop.f32.mrb[0].mxu0
  %v3836 = vadd.f32 0.0, %v3835
  %v3837 = vpop.f32.mrb[0].mxu0
  %3838 = vmatprep.mubr.bf16.mxu0 %v3621
  %3839 = vmatmul.mubr.bf16.gmra.mrb[0].mxu0 %v3442
  %v3840 = vpop.f32.mrb[0].mxu0
  %v3841 = vadd.f32 0.0, %v3840
  %v3842 = vpop.f32.mrb[0].mxu0
  %v3843 = vpop.f32.mrb[0].mxu0
  %v3844 = vadd.f32 0.0, %v3843
  %v3845 = vpop.f32.mrb[0].mxu0
  %3846 = vmatprep.mubr.bf16.mxu0 %v3624
  %3847 = vmatmul.mubr.bf16.gmra.mrb[0].mxu0 %v3444
  %v3848 = vpop.f32.mrb[0].mxu0
  %v3849 = vadd.f32 0.0, %v3848
  %v3850 = vpop.f32.mrb[0].mxu0
  %v3851 = vpop.f32.mrb[0].mxu0
  %v3852 = vadd.f32 0.0, %v3851
  %v3853 = vpop.f32.mrb[0].mxu0
  %3854 = vmatprep.mubr.bf16.mxu0 %v3627
  %3855 = vmatmul.mubr.bf16.gmra.mrb[0].mxu0 %v3446
  %v3856 = vpop.f32.mrb[0].mxu0
  %v3857 = vadd.f32 0.0, %v3856
  %v3858 = vpop.f32.mrb[0].mxu0
  %v3859 = vpop.f32.mrb[0].mxu0
  %v3860 = vadd.f32 0.0, %v3859
  %v3861 = vpop.f32.mrb[0].mxu0
  %3862 = vmatprep.mubr.bf16.mxu0 %v3630
  %3863 = vmatmul.mubr.bf16.gmra.mrb[0].mxu0 %v3448
  %v3864 = vpop.f32.mrb[0].mxu0
  %v3865 = vadd.f32 0.0, %v3864
  %v3866 = vpop.f32.mrb[0].mxu0
  %v3867 = vpop.f32.mrb[0].mxu0
  %v3868 = vadd.f32 0.0, %v3867
  %v3869 = vpop.f32.mrb[0].mxu0
  %3870 = vmatprep.mubr.bf16.mxu0 %v3633
  %3871 = vmatmul.mubr.bf16.gmra.mrb[0].mxu0 %v3450
  %v3872 = vpop.f32.mrb[0].mxu0
  %v3873 = vadd.f32 0.0, %v3872
  %v3874 = vpop.f32.mrb[0].mxu0
  %v3875 = vpop.f32.mrb[0].mxu0
  %v3876 = vadd.f32 0.0, %v3875
  %v3877 = vpop.f32.mrb[0].mxu0
  %3878 = vmatprep.mubr.bf16.mxu0 %v3636
  %3879 = vmatmul.mubr.bf16.gmra.mrb[0].mxu0 %v3452
  %v3880 = vpop.f32.mrb[0].mxu0
  %v3881 = vadd.f32 0.0, %v3880
  %v3882 = vpop.f32.mrb[0].mxu0
  %v3883 = vpop.f32.mrb[0].mxu0
  %v3884 = vadd.f32 0.0, %v3883
  %v3885 = vpop.f32.mrb[0].mxu0
  %3886 = vmatprep.mubr.bf16.mxu0 %v3639
  %3887 = vmatmul.mubr.bf16.gmra.mrb[0].mxu0 %v3454
  %v3888 = vpop.f32.mrb[0].mxu0
  %v3889 = vadd.f32 0.0, %v3888
  %v3890 = vpop.f32.mrb[0].mxu0
  %v3891 = vpop.f32.mrb[0].mxu0
  %v3892 = vadd.f32 0.0, %v3891
  %v3893 = vpop.f32.mrb[0].mxu0
  %3894 = vmatprep.mubr.bf16.mxu0 %v3642
  %3895 = vmatmul.mubr.bf16.gmra.mrb[0].mxu0 %v3456
  %v3896 = vpop.f32.mrb[0].mxu0
  %v3897 = vadd.f32 0.0, %v3896
  %v3898 = vpop.f32.mrb[0].mxu0
  %v3899 = vpop.f32.mrb[0].mxu0
  %v3900 = vadd.f32 0.0, %v3899
  %v3901 = vpop.f32.mrb[0].mxu0
  %3902 = vmatprep.mubr.bf16.mxu0 %v3645
  %3903 = vmatmul.mubr.bf16.gmra.mrb[0].mxu0 %v3458
  %v3904 = vpop.f32.mrb[0].mxu0
  %v3905 = vadd.f32 0.0, %v3904
  %v3906 = vpop.f32.mrb[0].mxu0
  %v3907 = vpop.f32.mrb[0].mxu0
  %v3908 = vadd.f32 0.0, %v3907
  %v3909 = vpop.f32.mrb[0].mxu0
  %3910 = vmatprep.mubr.bf16.mxu0 %v3648
  %3911 = vmatmul.mubr.bf16.gmra.mrb[0].mxu0 %v3460
  %v3912 = vpop.f32.mrb[0].mxu0
  %v3913 = vadd.f32 0.0, %v3912
  %v3914 = vpop.f32.mrb[0].mxu0
  %v3915 = vpop.f32.mrb[0].mxu0
  %v3916 = vadd.f32 0.0, %v3915
  %v3917 = vpop.f32.mrb[0].mxu0
  %3918 = vmatprep.mubr.bf16.mxu0 %v3651
  %3919 = vmatmul.mubr.bf16.gmra.mrb[0].mxu0 %v3462
  %v3920 = vpop.f32.mrb[0].mxu0
  %v3921 = vadd.f32 0.0, %v3920
  %v3922 = vpop.f32.mrb[0].mxu0
  %v3923 = vpop.f32.mrb[0].mxu0
  %v3924 = vadd.f32 0.0, %v3923
  %v3925 = vpop.f32.mrb[0].mxu0
  %3926 = vmatprep.mubr.bf16.mxu0 %v3654
  %3927 = vmatmul.mubr.bf16.gmra.mrb[0].mxu0 %v3464
  %v3928 = vpop.f32.mrb[0].mxu0
  %v3929 = vadd.f32 0.0, %v3928
  %v3930 = vpop.f32.mrb[0].mxu0
  %v3931 = vpop.f32.mrb[0].mxu0
  %v3932 = vadd.f32 0.0, %v3931
  %v3933 = vpop.f32.mrb[0].mxu0
  %3934 = vmatprep.mubr.bf16.mxu0 %v3657
  %3935 = vmatmul.mubr.bf16.gmra.mrb[0].mxu0 %v3466
  %v3936 = vpop.f32.mrb[0].mxu0
  %v3937 = vadd.f32 0.0, %v3936
  %v3938 = vpop.f32.mrb[0].mxu0
  %v3939 = vpop.f32.mrb[0].mxu0
  %v3940 = vadd.f32 0.0, %v3939
  %v3941 = vpop.f32.mrb[0].mxu0
  %3942 = vmatprep.mubr.bf16.mxu0 %v3660
  %3943 = vmatmul.mubr.bf16.gmra.mrb[0].mxu0 %v3468
  %v3944 = vpop.f32.mrb[0].mxu0
  %v3945 = vadd.f32 0.0, %v3944
  %v3946 = vpop.f32.mrb[0].mxu0
  %v3947 = vpop.f32.mrb[0].mxu0
  %v3948 = vadd.f32 0.0, %v3947
  %v3949 = vpop.f32.mrb[0].mxu0
  %3950 = vdwg.mxu0
  %v3951 = vlaneseq
  %v3952 = vshrl.u32 %v3951, 7
  %v3953 = vsub.s32 0, %v3952
  %v3954 = vrot.slane %v34, %v3953
  %v3955 = vmul.f32 %v3697, %v3954
  %v3956 = vmul.f32 %v3700, %v3954
  %v3957 = vmul.f32 %v3705, %v3954
  %v3958 = vmul.f32 %v3708, %v3954
  %v3959 = vmul.f32 %v3713, %v3954
  %v3960 = vmul.f32 %v3716, %v3954
  %v3961 = vmul.f32 %v3721, %v3954
  %v3962 = vmul.f32 %v3724, %v3954
  %v3963 = vmul.f32 %v3729, %v3954
  %v3964 = vmul.f32 %v3732, %v3954
  %v3965 = vmul.f32 %v3737, %v3954
  %v3966 = vmul.f32 %v3740, %v3954
  %v3967 = vmul.f32 %v3745, %v3954
  %v3968 = vmul.f32 %v3748, %v3954
  %v3969 = vmul.f32 %v3753, %v3954
  %v3970 = vmul.f32 %v3756, %v3954
  %v3971 = vmul.f32 %v3761, %v3954
  %v3972 = vmul.f32 %v3764, %v3954
  %v3973 = vmul.f32 %v3769, %v3954
  %v3974 = vmul.f32 %v3772, %v3954
  %v3975 = vmul.f32 %v3777, %v3954
  %v3976 = vmul.f32 %v3780, %v3954
  %v3977 = vmul.f32 %v3785, %v3954
  %v3978 = vmul.f32 %v3788, %v3954
  %v3979 = vmul.f32 %v3793, %v3954
  %v3980 = vmul.f32 %v3796, %v3954
  %v3981 = vmul.f32 %v3801, %v3954
  %v3982 = vmul.f32 %v3804, %v3954
  %v3983 = vmul.f32 %v3809, %v3954
  %v3984 = vmul.f32 %v3812, %v3954
  %v3985 = vmul.f32 %v3817, %v3954
  %v3986 = vmul.f32 %v3820, %v3954
  %v3987 = vmul.f32 %v3825, %v3954
  %v3988 = vmul.f32 %v3828, %v3954
  %v3989 = vmul.f32 %v3833, %v3954
  %v3990 = vmul.f32 %v3836, %v3954
  %v3991 = vmul.f32 %v3841, %v3954
  %v3992 = vmul.f32 %v3844, %v3954
  %v3993 = vmul.f32 %v3849, %v3954
  %v3994 = vmul.f32 %v3852, %v3954
  %v3995 = vmul.f32 %v3857, %v3954
  %v3996 = vmul.f32 %v3860, %v3954
  %v3997 = vmul.f32 %v3865, %v3954
  %v3998 = vmul.f32 %v3868, %v3954
  %v3999 = vmul.f32 %v3873, %v3954
  %v4000 = vmul.f32 %v3876, %v3954
  %v4001 = vmul.f32 %v3881, %v3954
  %v4002 = vmul.f32 %v3884, %v3954
  %v4003 = vmul.f32 %v3889, %v3954
  %v4004 = vmul.f32 %v3892, %v3954
  %v4005 = vmul.f32 %v3897, %v3954
  %v4006 = vmul.f32 %v3900, %v3954
  %v4007 = vmul.f32 %v3905, %v3954
  %v4008 = vmul.f32 %v3908, %v3954
  %v4009 = vmul.f32 %v3913, %v3954
  %v4010 = vmul.f32 %v3916, %v3954
  %v4011 = vmul.f32 %v3921, %v3954
  %v4012 = vmul.f32 %v3924, %v3954
  %v4013 = vmul.f32 %v3929, %v3954
  %v4014 = vmul.f32 %v3932, %v3954
  %v4015 = vmul.f32 %v3937, %v3954
  %v4016 = vmul.f32 %v3940, %v3954
  %v4017 = vmul.f32 %v3945, %v3954
  %v4018 = vmul.f32 %v3948, %v3954
  %v4019 = vlaneseq
  %v4020 = vshrl.u32 %v4019, 7
  %v4021 = vsub.s32 0, %v4020
  %v4022 = vrot.slane %v35, %v4021
  %v4023 = vadd.f32 %v3955, %v4022
  %v4024 = vadd.f32 %v3956, %v4022
  %v4025 = vadd.f32 %v3957, %v4022
  %v4026 = vadd.f32 %v3958, %v4022
  %v4027 = vadd.f32 %v3959, %v4022
  %v4028 = vadd.f32 %v3960, %v4022
  %v4029 = vadd.f32 %v3961, %v4022
  %v4030 = vadd.f32 %v3962, %v4022
  %v4031 = vadd.f32 %v3963, %v4022
  %v4032 = vadd.f32 %v3964, %v4022
  %v4033 = vadd.f32 %v3965, %v4022
  %v4034 = vadd.f32 %v3966, %v4022
  %v4035 = vadd.f32 %v3967, %v4022
  %v4036 = vadd.f32 %v3968, %v4022
  %v4037 = vadd.f32 %v3969, %v4022
  %v4038 = vadd.f32 %v3970, %v4022
  %v4039 = vadd.f32 %v3971, %v4022
  %v4040 = vadd.f32 %v3972, %v4022
  %v4041 = vadd.f32 %v3973, %v4022
  %v4042 = vadd.f32 %v3974, %v4022
  %v4043 = vadd.f32 %v3975, %v4022
  %v4044 = vadd.f32 %v3976, %v4022
  %v4045 = vadd.f32 %v3977, %v4022
  %v4046 = vadd.f32 %v3978, %v4022
  %v4047 = vadd.f32 %v3979, %v4022
  %v4048 = vadd.f32 %v3980, %v4022
  %v4049 = vadd.f32 %v3981, %v4022
  %v4050 = vadd.f32 %v3982, %v4022
  %v4051 = vadd.f32 %v3983, %v4022
  %v4052 = vadd.f32 %v3984, %v4022
  %v4053 = vadd.f32 %v3985, %v4022
  %v4054 = vadd.f32 %v3986, %v4022
  %v4055 = vadd.f32 %v3987, %v4022
  %v4056 = vadd.f32 %v3988, %v4022
  %v4057 = vadd.f32 %v3989, %v4022
  %v4058 = vadd.f32 %v3990, %v4022
  %v4059 = vadd.f32 %v3991, %v4022
  %v4060 = vadd.f32 %v3992, %v4022
  %v4061 = vadd.f32 %v3993, %v4022
  %v4062 = vadd.f32 %v3994, %v4022
  %v4063 = vadd.f32 %v3995, %v4022
  %v4064 = vadd.f32 %v3996, %v4022
  %v4065 = vadd.f32 %v3997, %v4022
  %v4066 = vadd.f32 %v3998, %v4022
  %v4067 = vadd.f32 %v3999, %v4022
  %v4068 = vadd.f32 %v4000, %v4022
  %v4069 = vadd.f32 %v4001, %v4022
  %v4070 = vadd.f32 %v4002, %v4022
  %v4071 = vadd.f32 %v4003, %v4022
  %v4072 = vadd.f32 %v4004, %v4022
  %v4073 = vadd.f32 %v4005, %v4022
  %v4074 = vadd.f32 %v4006, %v4022
  %v4075 = vadd.f32 %v4007, %v4022
  %v4076 = vadd.f32 %v4008, %v4022
  %v4077 = vadd.f32 %v4009, %v4022
  %v4078 = vadd.f32 %v4010, %v4022
  %v4079 = vadd.f32 %v4011, %v4022
  %v4080 = vadd.f32 %v4012, %v4022
  %v4081 = vadd.f32 %v4013, %v4022
  %v4082 = vadd.f32 %v4014, %v4022
  %v4083 = vadd.f32 %v4015, %v4022
  %v4084 = vadd.f32 %v4016, %v4022
  %v4085 = vadd.f32 %v4017, %v4022
  %v4086 = vadd.f32 %v4018, %v4022
  %v4087 = vmax.f32 %v4023, 0.0
  %v4088 = vmax.f32 %v4024, 0.0
  %v4089 = vmax.f32 %v4025, 0.0
  %v4090 = vmax.f32 %v4026, 0.0
  %v4091 = vmax.f32 %v4027, 0.0
  %v4092 = vmax.f32 %v4028, 0.0
  %v4093 = vmax.f32 %v4029, 0.0
  %v4094 = vmax.f32 %v4030, 0.0
  %v4095 = vmax.f32 %v4031, 0.0
  %v4096 = vmax.f32 %v4032, 0.0
  %v4097 = vmax.f32 %v4033, 0.0
  %v4098 = vmax.f32 %v4034, 0.0
  %v4099 = vmax.f32 %v4035, 0.0
  %v4100 = vmax.f32 %v4036, 0.0
  %v4101 = vmax.f32 %v4037, 0.0
  %v4102 = vmax.f32 %v4038, 0.0
  %v4103 = vmax.f32 %v4039, 0.0
  %v4104 = vmax.f32 %v4040, 0.0
  %v4105 = vmax.f32 %v4041, 0.0
  %v4106 = vmax.f32 %v4042, 0.0
  %v4107 = vmax.f32 %v4043, 0.0
  %v4108 = vmax.f32 %v4044, 0.0
  %v4109 = vmax.f32 %v4045, 0.0
  %v4110 = vmax.f32 %v4046, 0.0
  %v4111 = vmax.f32 %v4047, 0.0
  %v4112 = vmax.f32 %v4048, 0.0
  %v4113 = vmax.f32 %v4049, 0.0
  %v4114 = vmax.f32 %v4050, 0.0
  %v4115 = vmax.f32 %v4051, 0.0
  %v4116 = vmax.f32 %v4052, 0.0
  %v4117 = vmax.f32 %v4053, 0.0
  %v4118 = vmax.f32 %v4054, 0.0
  %v4119 = vmax.f32 %v4055, 0.0
  %v4120 = vmax.f32 %v4056, 0.0
  %v4121 = vmax.f32 %v4057, 0.0
  %v4122 = vmax.f32 %v4058, 0.0
  %v4123 = vmax.f32 %v4059, 0.0
  %v4124 = vmax.f32 %v4060, 0.0
  %v4125 = vmax.f32 %v4061, 0.0
  %v4126 = vmax.f32 %v4062, 0.0
  %v4127 = vmax.f32 %v4063, 0.0
  %v4128 = vmax.f32 %v4064, 0.0
  %v4129 = vmax.f32 %v4065, 0.0
  %v4130 = vmax.f32 %v4066, 0.0
  %v4131 = vmax.f32 %v4067, 0.0
  %v4132 = vmax.f32 %v4068, 0.0
  %v4133 = vmax.f32 %v4069, 0.0
  %v4134 = vmax.f32 %v4070, 0.0
  %v4135 = vmax.f32 %v4071, 0.0
  %v4136 = vmax.f32 %v4072, 0.0
  %v4137 = vmax.f32 %v4073, 0.0
  %v4138 = vmax.f32 %v4074, 0.0
  %v4139 = vmax.f32 %v4075, 0.0
  %v4140 = vmax.f32 %v4076, 0.0
  %v4141 = vmax.f32 %v4077, 0.0
  %v4142 = vmax.f32 %v4078, 0.0
  %v4143 = vmax.f32 %v4079, 0.0
  %v4144 = vmax.f32 %v4080, 0.0
  %v4145 = vmax.f32 %v4081, 0.0
  %v4146 = vmax.f32 %v4082, 0.0
  %v4147 = vmax.f32 %v4083, 0.0
  %v4148 = vmax.f32 %v4084, 0.0
  %v4149 = vmax.f32 %v4085, 0.0
  %v4150 = vmax.f32 %v4086, 0.0
  %v4151 = vadd.f32 %v4087, %v4088
  %v4152 = vadd.f32 %v4151, %v4089
  %v4153 = vadd.f32 %v4152, %v4090
  %v4154 = vadd.f32 %v4153, %v4091
  %v4155 = vadd.f32 %v4154, %v4092
  %v4156 = vadd.f32 %v4155, %v4093
  %v4157 = vadd.f32 %v4156, %v4094
  %v4158 = vrot.slane %v4157, 4
  %v4159 = vadd.f32 %v4157, %v4158
  %v4160 = vrot.slane %v4159, 2
  %v4161 = vadd.f32 %v4159, %v4160
  %v4162 = vrot.slane %v4161, 1
  %v4163 = vadd.f32 %v4161, %v4162
  %v4164 = vadd.f32 %v4095, %v4096
  %v4165 = vadd.f32 %v4164, %v4097
  %v4166 = vadd.f32 %v4165, %v4098
  %v4167 = vadd.f32 %v4166, %v4099
  %v4168 = vadd.f32 %v4167, %v4100
  %v4169 = vadd.f32 %v4168, %v4101
  %v4170 = vadd.f32 %v4169, %v4102
  %v4171 = vrot.slane %v4170, 4
  %v4172 = vadd.f32 %v4170, %v4171
  %v4173 = vrot.slane %v4172, 2
  %v4174 = vadd.f32 %v4172, %v4173
  %v4175 = vrot.slane %v4174, 1
  %v4176 = vadd.f32 %v4174, %v4175
  %v4177 = vadd.f32 %v4103, %v4104
  %v4178 = vadd.f32 %v4177, %v4105
  %v4179 = vadd.f32 %v4178, %v4106
  %v4180 = vadd.f32 %v4179, %v4107
  %v4181 = vadd.f32 %v4180, %v4108
  %v4182 = vadd.f32 %v4181, %v4109
  %v4183 = vadd.f32 %v4182, %v4110
  %v4184 = vrot.slane %v4183, 4
  %v4185 = vadd.f32 %v4183, %v4184
  %v4186 = vrot.slane %v4185, 2
  %v4187 = vadd.f32 %v4185, %v4186
  %v4188 = vrot.slane %v4187, 1
  %v4189 = vadd.f32 %v4187, %v4188
  %v4190 = vadd.f32 %v4111, %v4112
  %v4191 = vadd.f32 %v4190, %v4113
  %v4192 = vadd.f32 %v4191, %v4114
  %v4193 = vadd.f32 %v4192, %v4115
  %v4194 = vadd.f32 %v4193, %v4116
  %v4195 = vadd.f32 %v4194, %v4117
  %v4196 = vadd.f32 %v4195, %v4118
  %v4197 = vrot.slane %v4196, 4
  %v4198 = vadd.f32 %v4196, %v4197
  %v4199 = vrot.slane %v4198, 2
  %v4200 = vadd.f32 %v4198, %v4199
  %v4201 = vrot.slane %v4200, 1
  %v4202 = vadd.f32 %v4200, %v4201
  %v4203 = vadd.f32 %v4119, %v4120
  %v4204 = vadd.f32 %v4203, %v4121
  %v4205 = vadd.f32 %v4204, %v4122
  %v4206 = vadd.f32 %v4205, %v4123
  %v4207 = vadd.f32 %v4206, %v4124
  %v4208 = vadd.f32 %v4207, %v4125
  %v4209 = vadd.f32 %v4208, %v4126
  %v4210 = vrot.slane %v4209, 4
  %v4211 = vadd.f32 %v4209, %v4210
  %v4212 = vrot.slane %v4211, 2
  %v4213 = vadd.f32 %v4211, %v4212
  %v4214 = vrot.slane %v4213, 1
  %v4215 = vadd.f32 %v4213, %v4214
  %v4216 = vadd.f32 %v4127, %v4128
  %v4217 = vadd.f32 %v4216, %v4129
  %v4218 = vadd.f32 %v4217, %v4130
  %v4219 = vadd.f32 %v4218, %v4131
  %v4220 = vadd.f32 %v4219, %v4132
  %v4221 = vadd.f32 %v4220, %v4133
  %v4222 = vadd.f32 %v4221, %v4134
  %v4223 = vrot.slane %v4222, 4
  %v4224 = vadd.f32 %v4222, %v4223
  %v4225 = vrot.slane %v4224, 2
  %v4226 = vadd.f32 %v4224, %v4225
  %v4227 = vrot.slane %v4226, 1
  %v4228 = vadd.f32 %v4226, %v4227
  %v4229 = vadd.f32 %v4135, %v4136
  %v4230 = vadd.f32 %v4229, %v4137
  %v4231 = vadd.f32 %v4230, %v4138
  %v4232 = vadd.f32 %v4231, %v4139
  %v4233 = vadd.f32 %v4232, %v4140
  %v4234 = vadd.f32 %v4233, %v4141
  %v4235 = vadd.f32 %v4234, %v4142
  %v4236 = vrot.slane %v4235, 4
  %v4237 = vadd.f32 %v4235, %v4236
  %v4238 = vrot.slane %v4237, 2
  %v4239 = vadd.f32 %v4237, %v4238
  %v4240 = vrot.slane %v4239, 1
  %v4241 = vadd.f32 %v4239, %v4240
  %v4242 = vadd.f32 %v4143, %v4144
  %v4243 = vadd.f32 %v4242, %v4145
  %v4244 = vadd.f32 %v4243, %v4146
  %v4245 = vadd.f32 %v4244, %v4147
  %v4246 = vadd.f32 %v4245, %v4148
  %v4247 = vadd.f32 %v4246, %v4149
  %v4248 = vadd.f32 %v4247, %v4150
  %v4249 = vrot.slane %v4248, 4
  %v4250 = vadd.f32 %v4248, %v4249
  %v4251 = vrot.slane %v4250, 2
  %v4252 = vadd.f32 %v4250, %v4251
  %v4253 = vrot.slane %v4252, 1
  %v4254 = vadd.f32 %v4252, %v4253
  %v4255 = vpack.c.bf16 %v4163, %v4163
  %v4256 = vpack.c.bf16 %v4176, %v4176
  %v4257 = vpack.c.bf16 %v4189, %v4189
  %v4258 = vpack.c.bf16 %v4202, %v4202
  %v4259 = vpack.c.bf16 %v4215, %v4215
  %v4260 = vpack.c.bf16 %v4228, %v4228
  %v4261 = vpack.c.bf16 %v4241, %v4241
  %v4262 = vpack.c.bf16 %v4254, %v4254
  %v4263 = vld [vmem:[%s4] sm:$0xff]
  %v4264 = vld [vmem:[%s4 + $0x8] sm:$0xff]
  %v4265 = vld [vmem:[%s4 + $0x10] sm:$0xff]
  %v4266 = vld [vmem:[%s4 + $0x18] sm:$0xff]
  %v4267 = vld [vmem:[%s4 + $0x20] sm:$0xff]
  %v4268 = vld [vmem:[%s4 + $0x28] sm:$0xff]
  %v4269 = vld [vmem:[%s4 + $0x30] sm:$0xff]
  %v4270 = vld [vmem:[%s4 + $0x38] sm:$0xff]
  %v4271 = vld [vmem:[%s4 + $0x40] sm:$0xff]
  %v4272 = vld [vmem:[%s4 + $0x48] sm:$0xff]
  %v4273 = vld [vmem:[%s4 + $0x50] sm:$0xff]
  %v4274 = vld [vmem:[%s4 + $0x58] sm:$0xff]
  %v4275 = vld [vmem:[%s4 + $0x60] sm:$0xff]
  %v4276 = vld [vmem:[%s4 + $0x68] sm:$0xff]
  %v4277 = vld [vmem:[%s4 + $0x70] sm:$0xff]
  %v4278 = vld [vmem:[%s4 + $0x78] sm:$0xff]
  %v4279 = vld [vmem:[%s4 + $0x80] sm:$0xff]
  %v4280 = vld [vmem:[%s4 + $0x88] sm:$0xff]
  %v4281 = vld [vmem:[%s4 + $0x90] sm:$0xff]
  %v4282 = vld [vmem:[%s4 + $0x98] sm:$0xff]
  %v4283 = vld [vmem:[%s4 + $0xa0] sm:$0xff]
  %v4284 = vld [vmem:[%s4 + $0xa8] sm:$0xff]
  %v4285 = vld [vmem:[%s4 + $0xb0] sm:$0xff]
  %v4286 = vld [vmem:[%s4 + $0xb8] sm:$0xff]
  %v4287 = vld [vmem:[%s4 + $0xc0] sm:$0xff]
  %v4288 = vld [vmem:[%s4 + $0xc8] sm:$0xff]
  %v4289 = vld [vmem:[%s4 + $0xd0] sm:$0xff]
  %v4290 = vld [vmem:[%s4 + $0xd8] sm:$0xff]
  %v4291 = vld [vmem:[%s4 + $0xe0] sm:$0xff]
  %v4292 = vld [vmem:[%s4 + $0xe8] sm:$0xff]
  %v4293 = vld [vmem:[%s4 + $0xf0] sm:$0xff]
  %v4294 = vld [vmem:[%s4 + $0xf8] sm:$0xff]
  %v4296 = vlaneseq
  %v4297 = vshrl.u32 %v4296, 7
  %v4298 = vsub.s32 0, %v4297
  %v4299 = vrot.slane %v36, %v4298
  %v4300 = vlaneseq
  %v4301 = vshrl.u32 %v4300, 7
  %v4302 = vsub.s32 1, %v4301
  %v4303 = vrot.slane %v36, %v4302
  %v4304 = vlaneseq
  %v4305 = vshrl.u32 %v4304, 7
  %v4306 = vsub.s32 2, %v4305
  %v4307 = vrot.slane %v36, %v4306
  %v4308 = vlaneseq
  %v4309 = vshrl.u32 %v4308, 7
  %v4310 = vsub.s32 3, %v4309
  %v4311 = vrot.slane %v36, %v4310
  %v4324 = vunpack.c.l.b16 %v4255
  %v4325 = vunpack.c.l.b16 %v4256
  %v4326 = vunpack.c.l.b16 %v4257
  %v4327 = vunpack.c.l.b16 %v4258
  %v4328 = vunpack.c.l.b16 %v4259
  %v4329 = vunpack.c.l.b16 %v4260
  %v4330 = vunpack.c.l.b16 %v4261
  %v4331 = vunpack.c.l.b16 %v4262
  %vm4332 = vcmask 1041409
  %v4333 = vsel %vm4332, %v4325, %v4324
  %vm4334 = vcmask 1042434
  %v4335 = vsel %vm4334, %v4326, %v4333
  %vm4336 = vcmask 1043459
  %v4337 = vsel %vm4336, %v4327, %v4335
  %vm4338 = vcmask 1044484
  %v4339 = vsel %vm4338, %v4328, %v4337
  %vm4340 = vcmask 1045509
  %v4341 = vsel %vm4340, %v4329, %v4339
  %vm4342 = vcmask 1046534
  %v4343 = vsel %vm4342, %v4330, %v4341
  %vm4344 = vcmask 1047559
  %v4345 = vsel %vm4344, %v4331, %v4343
  %v4346 = vpack.c.b16 %v4345, %v4345
  %v4380 = vunpack.c.l.b16 %v4263
  %v4381 = vunpack.c.h.b16 %v4263
  %v4382 = vunpack.c.l.b16 %v4264
  %v4383 = vunpack.c.h.b16 %v4264
  %v4384 = vunpack.c.l.b16 %v4265
  %v4385 = vunpack.c.h.b16 %v4265
  %v4386 = vunpack.c.l.b16 %v4266
  %v4387 = vunpack.c.h.b16 %v4266
  %v4388 = vunpack.c.l.b16 %v4267
  %v4389 = vunpack.c.h.b16 %v4267
  %v4390 = vunpack.c.l.b16 %v4268
  %v4391 = vunpack.c.h.b16 %v4268
  %v4392 = vunpack.c.l.b16 %v4269
  %v4393 = vunpack.c.h.b16 %v4269
  %v4394 = vunpack.c.l.b16 %v4270
  %v4395 = vunpack.c.h.b16 %v4270
  %v4396 = vunpack.c.l.b16 %v4271
  %v4397 = vunpack.c.h.b16 %v4271
  %v4398 = vunpack.c.l.b16 %v4272
  %v4399 = vunpack.c.h.b16 %v4272
  %v4400 = vunpack.c.l.b16 %v4273
  %v4401 = vunpack.c.h.b16 %v4273
  %v4402 = vunpack.c.l.b16 %v4274
  %v4403 = vunpack.c.h.b16 %v4274
  %v4404 = vunpack.c.l.b16 %v4275
  %v4405 = vunpack.c.h.b16 %v4275
  %v4406 = vunpack.c.l.b16 %v4276
  %v4407 = vunpack.c.h.b16 %v4276
  %v4408 = vunpack.c.l.b16 %v4277
  %v4409 = vunpack.c.h.b16 %v4277
  %v4410 = vunpack.c.l.b16 %v4278
  %v4411 = vunpack.c.h.b16 %v4278
  %v4412 = vunpack.c.l.b16 %v4279
  %v4413 = vunpack.c.h.b16 %v4279
  %v4414 = vunpack.c.l.b16 %v4280
  %v4415 = vunpack.c.h.b16 %v4280
  %v4416 = vunpack.c.l.b16 %v4281
  %v4417 = vunpack.c.h.b16 %v4281
  %v4418 = vunpack.c.l.b16 %v4282
  %v4419 = vunpack.c.h.b16 %v4282
  %v4420 = vunpack.c.l.b16 %v4283
  %v4421 = vunpack.c.h.b16 %v4283
  %v4422 = vunpack.c.l.b16 %v4284
  %v4423 = vunpack.c.h.b16 %v4284
  %v4424 = vunpack.c.l.b16 %v4285
  %v4425 = vunpack.c.h.b16 %v4285
  %v4426 = vunpack.c.l.b16 %v4286
  %v4427 = vunpack.c.h.b16 %v4286
  %v4428 = vunpack.c.l.b16 %v4287
  %v4429 = vunpack.c.h.b16 %v4287
  %v4430 = vunpack.c.l.b16 %v4288
  %v4431 = vunpack.c.h.b16 %v4288
  %v4432 = vunpack.c.l.b16 %v4289
  %v4433 = vunpack.c.h.b16 %v4289
  %v4434 = vunpack.c.l.b16 %v4290
  %v4435 = vunpack.c.h.b16 %v4290
  %v4436 = vunpack.c.l.b16 %v4291
  %v4437 = vunpack.c.h.b16 %v4291
  %v4438 = vunpack.c.l.b16 %v4292
  %v4439 = vunpack.c.h.b16 %v4292
  %v4440 = vunpack.c.l.b16 %v4293
  %v4441 = vunpack.c.h.b16 %v4293
  %v4442 = vunpack.c.l.b16 %v4294
  %v4443 = vunpack.c.h.b16 %v4294
  %v4444 = vpack.c.b16 %v4384, %v4380
  %v4445 = vpack.c.b16 %v4385, %v4381
  %v4446 = vpack.c.b16 %v4386, %v4382
  %v4447 = vpack.c.b16 %v4387, %v4383
  %v4448 = vpack.c.b16 %v4392, %v4388
  %v4449 = vpack.c.b16 %v4393, %v4389
  %v4450 = vpack.c.b16 %v4394, %v4390
  %v4451 = vpack.c.b16 %v4395, %v4391
  %v4452 = vpack.c.b16 %v4400, %v4396
  %v4453 = vpack.c.b16 %v4401, %v4397
  %v4454 = vpack.c.b16 %v4402, %v4398
  %v4455 = vpack.c.b16 %v4403, %v4399
  %v4456 = vpack.c.b16 %v4408, %v4404
  %v4457 = vpack.c.b16 %v4409, %v4405
  %v4458 = vpack.c.b16 %v4410, %v4406
  %v4459 = vpack.c.b16 %v4411, %v4407
  %v4460 = vpack.c.b16 %v4416, %v4412
  %v4461 = vpack.c.b16 %v4417, %v4413
  %v4462 = vpack.c.b16 %v4418, %v4414
  %v4463 = vpack.c.b16 %v4419, %v4415
  %v4464 = vpack.c.b16 %v4424, %v4420
  %v4465 = vpack.c.b16 %v4425, %v4421
  %v4466 = vpack.c.b16 %v4426, %v4422
  %v4467 = vpack.c.b16 %v4427, %v4423
  %v4468 = vpack.c.b16 %v4432, %v4428
  %v4469 = vpack.c.b16 %v4433, %v4429
  %v4470 = vpack.c.b16 %v4434, %v4430
  %v4471 = vpack.c.b16 %v4435, %v4431
  %v4472 = vpack.c.b16 %v4440, %v4436
  %v4473 = vpack.c.b16 %v4441, %v4437
  %v4474 = vpack.c.b16 %v4442, %v4438
  %v4475 = vpack.c.b16 %v4443, %v4439
  %4508 = vmatprep.subr.bf16.mxu0 %v4445
  %4509 = vmatpush1.bf16.msra.mxu0 %v4444
  %4510 = vmatprep.subr.bf16.mxu0 %v4449
  %4511 = vmatpush1.bf16.msra.mxu0 %v4448
  %4512 = vmatprep.subr.bf16.mxu0 %v4453
  %4513 = vmatpush1.bf16.msra.mxu0 %v4452
  %4514 = vmatprep.subr.bf16.mxu0 %v4457
  %4515 = vmatpush1.bf16.msra.mxu0 %v4456
  %4516 = vmatprep.subr.bf16.mxu0 %v4461
  %4517 = vmatpush1.bf16.msra.mxu0 %v4460
  %4518 = vmatprep.subr.bf16.mxu0 %v4465
  %4519 = vmatpush1.bf16.msra.mxu0 %v4464
  %4520 = vmatprep.subr.bf16.mxu0 %v4469
  %4521 = vmatpush1.bf16.msra.mxu0 %v4468
  %4522 = vmatprep.subr.bf16.mxu0 %v4473
  %4523 = vmatpush1.bf16.msra.mxu0 %v4472
  %4524 = vmatprep.subr.bf16.mxu0 0
  %4525 = vmatpush1.bf16.msra.mxu0 0
  %4526 = vmatprep.subr.bf16.mxu0 0
  %4527 = vmatpush1.bf16.msra.mxu0 0
  %4528 = vmatprep.subr.bf16.mxu0 0
  %4529 = vmatpush1.bf16.msra.mxu0 0
  %4530 = vmatprep.subr.bf16.mxu0 0
  %4531 = vmatpush1.bf16.msra.mxu0 0
  %4532 = vmatprep.subr.bf16.mxu0 0
  %4533 = vmatpush1.bf16.msra.mxu0 0
  %4534 = vmatprep.subr.bf16.mxu0 0
  %4535 = vmatpush1.bf16.msra.mxu0 0
  %4536 = vmatprep.subr.bf16.mxu0 0
  %4537 = vmatpush1.bf16.msra.mxu0 0
  %4538 = vmatprep.subr.bf16.mxu0 0
  %4539 = vmatpush1.bf16.msra.mxu0 0
  %4540 = vmatprep.mubr.bf16.mxu0 0
  %4541 = vmatmul.mubr.bf16.gmra.mrb[0].mxu0 %v4346
  %v4542 = vpop.f32.mrb[0].mxu0
  %v4543 = vadd.f32 %v4299, %v4542
  %v4544 = vpop.f32.mrb[0].mxu0
  %v4545 = vadd.f32 %v4303, %v4544
  %v4546 = vpop.f32.mrb[0].mxu0
  %v4547 = vpop.f32.mrb[0].mxu0
  %4548 = vdwg.mxu0
  %4549 = vmatprep.subr.bf16.mxu0 %v4447
  %4550 = vmatpush1.bf16.msra.mxu0 %v4446
  %4551 = vmatprep.subr.bf16.mxu0 %v4451
  %4552 = vmatpush1.bf16.msra.mxu0 %v4450
  %4553 = vmatprep.subr.bf16.mxu0 %v4455
  %4554 = vmatpush1.bf16.msra.mxu0 %v4454
  %4555 = vmatprep.subr.bf16.mxu0 %v4459
  %4556 = vmatpush1.bf16.msra.mxu0 %v4458
  %4557 = vmatprep.subr.bf16.mxu0 %v4463
  %4558 = vmatpush1.bf16.msra.mxu0 %v4462
  %4559 = vmatprep.subr.bf16.mxu0 %v4467
  %4560 = vmatpush1.bf16.msra.mxu0 %v4466
  %4561 = vmatprep.subr.bf16.mxu0 %v4471
  %4562 = vmatpush1.bf16.msra.mxu0 %v4470
  %4563 = vmatprep.subr.bf16.mxu0 %v4475
  %4564 = vmatpush1.bf16.msra.mxu0 %v4474
  %4565 = vmatprep.subr.bf16.mxu0 0
  %4566 = vmatpush1.bf16.msra.mxu0 0
  %4567 = vmatprep.subr.bf16.mxu0 0
  %4568 = vmatpush1.bf16.msra.mxu0 0
  %4569 = vmatprep.subr.bf16.mxu0 0
  %4570 = vmatpush1.bf16.msra.mxu0 0
  %4571 = vmatprep.subr.bf16.mxu0 0
  %4572 = vmatpush1.bf16.msra.mxu0 0
  %4573 = vmatprep.subr.bf16.mxu0 0
  %4574 = vmatpush1.bf16.msra.mxu0 0
  %4575 = vmatprep.subr.bf16.mxu0 0
  %4576 = vmatpush1.bf16.msra.mxu0 0
  %4577 = vmatprep.subr.bf16.mxu0 0
  %4578 = vmatpush1.bf16.msra.mxu0 0
  %4579 = vmatprep.subr.bf16.mxu0 0
  %4580 = vmatpush1.bf16.msra.mxu0 0
  %4581 = vmatprep.mubr.bf16.mxu0 0
  %4582 = vmatmul.mubr.bf16.gmra.mrb[0].mxu0 %v4346
  %v4583 = vpop.f32.mrb[0].mxu0
  %v4584 = vadd.f32 %v4307, %v4583
  %v4585 = vpop.f32.mrb[0].mxu0
  %v4586 = vadd.f32 %v4311, %v4585
  %v4587 = vpop.f32.mrb[0].mxu0
  %v4588 = vpop.f32.mrb[0].mxu0
  %4589 = vdwg.mxu0
  %v4590 = vmul.f32 %v4543, %v4543
  %v4591 = vmul.f32 %v4545, %v4545
  %v4592 = vmul.f32 %v4584, %v4584
  %v4593 = vmul.f32 %v4586, %v4586
  %v4594 = vadd.f32 %v4590, %v4591
  %v4595 = vadd.f32 %v4594, %v4592
  %v4596 = vadd.f32 %v4595, %v4593
  %4597 = vadd.xlane.f32.xlu0 %v4596
  %v4598 = vpop.xlane.xlu0 %4597
  %v4599 = vmax.f32 %v4598, 1e-24
  %v4600 = vrsqrt.pop %v4599
  %v4601 = vmul.f32 %v4543, %v4600
  %v4602 = vmul.f32 %v4545, %v4600
  %v4603 = vmul.f32 %v4584, %v4600
  %v4604 = vmul.f32 %v4586, %v4600
  %v4605 = vpack.c.bf16 %v4601, %v4601
  %v4606 = vpack.c.bf16 %v4602, %v4602
  %v4607 = vpack.c.bf16 %v4603, %v4603
  %v4608 = vpack.c.bf16 %v4604, %v4604
  %v4609 = vld [vmem:[%s5] sm:$0xf]
  %v4610 = vld [vmem:[%s5 + $0x4] sm:$0xf]
  %v4611 = vld [vmem:[%s5 + $0x8] sm:$0xf]
  %v4612 = vld [vmem:[%s5 + $0xc] sm:$0xf]
  %v4613 = vld [vmem:[%s5 + $0x10] sm:$0xf]
  %v4614 = vld [vmem:[%s5 + $0x14] sm:$0xf]
  %v4615 = vld [vmem:[%s5 + $0x18] sm:$0xf]
  %v4616 = vld [vmem:[%s5 + $0x1c] sm:$0xf]
  %v4617 = vld [vmem:[%s5 + $0x20] sm:$0xf]
  %v4618 = vld [vmem:[%s5 + $0x24] sm:$0xf]
  %v4619 = vld [vmem:[%s5 + $0x28] sm:$0xf]
  %v4620 = vld [vmem:[%s5 + $0x2c] sm:$0xf]
  %v4621 = vld [vmem:[%s5 + $0x30] sm:$0xf]
  %v4622 = vld [vmem:[%s5 + $0x34] sm:$0xf]
  %v4623 = vld [vmem:[%s5 + $0x38] sm:$0xf]
  %v4624 = vld [vmem:[%s5 + $0x3c] sm:$0xf]
  %v4625 = vld [vmem:[%s5 + $0x40] sm:$0xf]
  %v4626 = vld [vmem:[%s5 + $0x44] sm:$0xf]
  %v4627 = vld [vmem:[%s5 + $0x48] sm:$0xf]
  %v4628 = vld [vmem:[%s5 + $0x4c] sm:$0xf]
  %v4629 = vld [vmem:[%s5 + $0x50] sm:$0xf]
  %v4630 = vld [vmem:[%s5 + $0x54] sm:$0xf]
  %v4631 = vld [vmem:[%s5 + $0x58] sm:$0xf]
  %v4632 = vld [vmem:[%s5 + $0x5c] sm:$0xf]
  %v4633 = vld [vmem:[%s5 + $0x60] sm:$0xf]
  %v4634 = vld [vmem:[%s5 + $0x64] sm:$0xf]
  %v4635 = vld [vmem:[%s5 + $0x68] sm:$0xf]
  %v4636 = vld [vmem:[%s5 + $0x6c] sm:$0xf]
  %v4637 = vld [vmem:[%s5 + $0x70] sm:$0xf]
  %v4638 = vld [vmem:[%s5 + $0x74] sm:$0xf]
  %v4639 = vld [vmem:[%s5 + $0x78] sm:$0xf]
  %v4640 = vld [vmem:[%s5 + $0x7c] sm:$0xf]
  %v4641 = vld [vmem:[%s5 + $0x80] sm:$0xf]
  %v4642 = vld [vmem:[%s5 + $0x84] sm:$0xf]
  %v4643 = vld [vmem:[%s5 + $0x88] sm:$0xf]
  %v4644 = vld [vmem:[%s5 + $0x8c] sm:$0xf]
  %v4645 = vld [vmem:[%s5 + $0x90] sm:$0xf]
  %v4646 = vld [vmem:[%s5 + $0x94] sm:$0xf]
  %v4647 = vld [vmem:[%s5 + $0x98] sm:$0xf]
  %v4648 = vld [vmem:[%s5 + $0x9c] sm:$0xf]
  %v4649 = vld [vmem:[%s5 + $0xa0] sm:$0xf]
  %v4650 = vld [vmem:[%s5 + $0xa4] sm:$0xf]
  %v4651 = vld [vmem:[%s5 + $0xa8] sm:$0xf]
  %v4652 = vld [vmem:[%s5 + $0xac] sm:$0xf]
  %v4653 = vld [vmem:[%s5 + $0xb0] sm:$0xf]
  %v4654 = vld [vmem:[%s5 + $0xb4] sm:$0xf]
  %v4655 = vld [vmem:[%s5 + $0xb8] sm:$0xf]
  %v4656 = vld [vmem:[%s5 + $0xbc] sm:$0xf]
  %v4657 = vld [vmem:[%s5 + $0xc0] sm:$0xf]
  %v4658 = vld [vmem:[%s5 + $0xc4] sm:$0xf]
  %v4659 = vld [vmem:[%s5 + $0xc8] sm:$0xf]
  %v4660 = vld [vmem:[%s5 + $0xcc] sm:$0xf]
  %v4661 = vld [vmem:[%s5 + $0xd0] sm:$0xf]
  %v4662 = vld [vmem:[%s5 + $0xd4] sm:$0xf]
  %v4663 = vld [vmem:[%s5 + $0xd8] sm:$0xf]
  %v4664 = vld [vmem:[%s5 + $0xdc] sm:$0xf]
  %v4665 = vld [vmem:[%s5 + $0xe0] sm:$0xf]
  %v4666 = vld [vmem:[%s5 + $0xe4] sm:$0xf]
  %v4667 = vld [vmem:[%s5 + $0xe8] sm:$0xf]
  %v4668 = vld [vmem:[%s5 + $0xec] sm:$0xf]
  %v4669 = vld [vmem:[%s5 + $0xf0] sm:$0xf]
  %v4670 = vld [vmem:[%s5 + $0xf4] sm:$0xf]
  %v4671 = vld [vmem:[%s5 + $0xf8] sm:$0xf]
  %v4672 = vld [vmem:[%s5 + $0xfc] sm:$0xf]
  %v4674 = vlaneseq
  %v4675 = vshrl.u32 %v4674, 7
  %v4676 = vsub.s32 0, %v4675
  %v4677 = vrot.slane %v37, %v4676
  %v4743 = vunpack.c.l.b16 %v4609
  %v4744 = vunpack.c.l.b16 %v4610
  %v4745 = vunpack.c.l.b16 %v4611
  %v4746 = vunpack.c.l.b16 %v4612
  %v4747 = vunpack.c.l.b16 %v4613
  %v4748 = vunpack.c.l.b16 %v4614
  %v4749 = vunpack.c.l.b16 %v4615
  %v4750 = vunpack.c.l.b16 %v4616
  %v4751 = vunpack.c.l.b16 %v4617
  %v4752 = vunpack.c.l.b16 %v4618
  %v4753 = vunpack.c.l.b16 %v4619
  %v4754 = vunpack.c.l.b16 %v4620
  %v4755 = vunpack.c.l.b16 %v4621
  %v4756 = vunpack.c.l.b16 %v4622
  %v4757 = vunpack.c.l.b16 %v4623
  %v4758 = vunpack.c.l.b16 %v4624
  %v4759 = vunpack.c.l.b16 %v4625
  %v4760 = vunpack.c.l.b16 %v4626
  %v4761 = vunpack.c.l.b16 %v4627
  %v4762 = vunpack.c.l.b16 %v4628
  %v4763 = vunpack.c.l.b16 %v4629
  %v4764 = vunpack.c.l.b16 %v4630
  %v4765 = vunpack.c.l.b16 %v4631
  %v4766 = vunpack.c.l.b16 %v4632
  %v4767 = vunpack.c.l.b16 %v4633
  %v4768 = vunpack.c.l.b16 %v4634
  %v4769 = vunpack.c.l.b16 %v4635
  %v4770 = vunpack.c.l.b16 %v4636
  %v4771 = vunpack.c.l.b16 %v4637
  %v4772 = vunpack.c.l.b16 %v4638
  %v4773 = vunpack.c.l.b16 %v4639
  %v4774 = vunpack.c.l.b16 %v4640
  %v4775 = vunpack.c.l.b16 %v4641
  %v4776 = vunpack.c.l.b16 %v4642
  %v4777 = vunpack.c.l.b16 %v4643
  %v4778 = vunpack.c.l.b16 %v4644
  %v4779 = vunpack.c.l.b16 %v4645
  %v4780 = vunpack.c.l.b16 %v4646
  %v4781 = vunpack.c.l.b16 %v4647
  %v4782 = vunpack.c.l.b16 %v4648
  %v4783 = vunpack.c.l.b16 %v4649
  %v4784 = vunpack.c.l.b16 %v4650
  %v4785 = vunpack.c.l.b16 %v4651
  %v4786 = vunpack.c.l.b16 %v4652
  %v4787 = vunpack.c.l.b16 %v4653
  %v4788 = vunpack.c.l.b16 %v4654
  %v4789 = vunpack.c.l.b16 %v4655
  %v4790 = vunpack.c.l.b16 %v4656
  %v4791 = vunpack.c.l.b16 %v4657
  %v4792 = vunpack.c.l.b16 %v4658
  %v4793 = vunpack.c.l.b16 %v4659
  %v4794 = vunpack.c.l.b16 %v4660
  %v4795 = vunpack.c.l.b16 %v4661
  %v4796 = vunpack.c.l.b16 %v4662
  %v4797 = vunpack.c.l.b16 %v4663
  %v4798 = vunpack.c.l.b16 %v4664
  %v4799 = vunpack.c.l.b16 %v4665
  %v4800 = vunpack.c.l.b16 %v4666
  %v4801 = vunpack.c.l.b16 %v4667
  %v4802 = vunpack.c.l.b16 %v4668
  %v4803 = vunpack.c.l.b16 %v4669
  %v4804 = vunpack.c.l.b16 %v4670
  %v4805 = vunpack.c.l.b16 %v4671
  %v4806 = vunpack.c.l.b16 %v4672
  %v4807 = vpack.c.b16 %v4744, %v4743
  %v4808 = vpack.c.b16 %v4746, %v4745
  %v4809 = vpack.c.b16 %v4748, %v4747
  %v4810 = vpack.c.b16 %v4750, %v4749
  %v4811 = vpack.c.b16 %v4752, %v4751
  %v4812 = vpack.c.b16 %v4754, %v4753
  %v4813 = vpack.c.b16 %v4756, %v4755
  %v4814 = vpack.c.b16 %v4758, %v4757
  %v4815 = vpack.c.b16 %v4760, %v4759
  %v4816 = vpack.c.b16 %v4762, %v4761
  %v4817 = vpack.c.b16 %v4764, %v4763
  %v4818 = vpack.c.b16 %v4766, %v4765
  %v4819 = vpack.c.b16 %v4768, %v4767
  %v4820 = vpack.c.b16 %v4770, %v4769
  %v4821 = vpack.c.b16 %v4772, %v4771
  %v4822 = vpack.c.b16 %v4774, %v4773
  %v4823 = vpack.c.b16 %v4776, %v4775
  %v4824 = vpack.c.b16 %v4778, %v4777
  %v4825 = vpack.c.b16 %v4780, %v4779
  %v4826 = vpack.c.b16 %v4782, %v4781
  %v4827 = vpack.c.b16 %v4784, %v4783
  %v4828 = vpack.c.b16 %v4786, %v4785
  %v4829 = vpack.c.b16 %v4788, %v4787
  %v4830 = vpack.c.b16 %v4790, %v4789
  %v4831 = vpack.c.b16 %v4792, %v4791
  %v4832 = vpack.c.b16 %v4794, %v4793
  %v4833 = vpack.c.b16 %v4796, %v4795
  %v4834 = vpack.c.b16 %v4798, %v4797
  %v4835 = vpack.c.b16 %v4800, %v4799
  %v4836 = vpack.c.b16 %v4802, %v4801
  %v4837 = vpack.c.b16 %v4804, %v4803
  %v4838 = vpack.c.b16 %v4806, %v4805
  %4871 = vmatprep.subr.bf16.mxu0 0
  %4872 = vmatpush1.bf16.msra.mxu0 %v4807
  %4873 = vmatprep.subr.bf16.mxu0 0
  %4874 = vmatpush1.bf16.msra.mxu0 %v4808
  %4875 = vmatprep.subr.bf16.mxu0 0
  %4876 = vmatpush1.bf16.msra.mxu0 %v4809
  %4877 = vmatprep.subr.bf16.mxu0 0
  %4878 = vmatpush1.bf16.msra.mxu0 %v4810
  %4879 = vmatprep.subr.bf16.mxu0 0
  %4880 = vmatpush1.bf16.msra.mxu0 %v4811
  %4881 = vmatprep.subr.bf16.mxu0 0
  %4882 = vmatpush1.bf16.msra.mxu0 %v4812
  %4883 = vmatprep.subr.bf16.mxu0 0
  %4884 = vmatpush1.bf16.msra.mxu0 %v4813
  %4885 = vmatprep.subr.bf16.mxu0 0
  %4886 = vmatpush1.bf16.msra.mxu0 %v4814
  %4887 = vmatprep.subr.bf16.mxu0 0
  %4888 = vmatpush1.bf16.msra.mxu0 %v4815
  %4889 = vmatprep.subr.bf16.mxu0 0
  %4890 = vmatpush1.bf16.msra.mxu0 %v4816
  %4891 = vmatprep.subr.bf16.mxu0 0
  %4892 = vmatpush1.bf16.msra.mxu0 %v4817
  %4893 = vmatprep.subr.bf16.mxu0 0
  %4894 = vmatpush1.bf16.msra.mxu0 %v4818
  %4895 = vmatprep.subr.bf16.mxu0 0
  %4896 = vmatpush1.bf16.msra.mxu0 %v4819
  %4897 = vmatprep.subr.bf16.mxu0 0
  %4898 = vmatpush1.bf16.msra.mxu0 %v4820
  %4899 = vmatprep.subr.bf16.mxu0 0
  %4900 = vmatpush1.bf16.msra.mxu0 %v4821
  %4901 = vmatprep.subr.bf16.mxu0 0
  %4902 = vmatpush1.bf16.msra.mxu0 %v4822
  %4903 = vmatprep.mubr.bf16.mxu0 %v4606
  %4904 = vmatmul.mubr.bf16.gmra.mrb[0].mxu0 %v4605
  %v4905 = vpop.f32.mrb[0].mxu0
  %v4906 = vadd.f32 %v4677, %v4905
  %v4907 = vpop.f32.mrb[0].mxu0
  %v4908 = vpop.f32.mrb[0].mxu0
  %v4909 = vpop.f32.mrb[0].mxu0
  %4910 = vdwg.mxu0
  %4911 = vmatprep.subr.bf16.mxu0 0
  %4912 = vmatpush1.bf16.msra.mxu0 %v4823
  %4913 = vmatprep.subr.bf16.mxu0 0
  %4914 = vmatpush1.bf16.msra.mxu0 %v4824
  %4915 = vmatprep.subr.bf16.mxu0 0
  %4916 = vmatpush1.bf16.msra.mxu0 %v4825
  %4917 = vmatprep.subr.bf16.mxu0 0
  %4918 = vmatpush1.bf16.msra.mxu0 %v4826
  %4919 = vmatprep.subr.bf16.mxu0 0
  %4920 = vmatpush1.bf16.msra.mxu0 %v4827
  %4921 = vmatprep.subr.bf16.mxu0 0
  %4922 = vmatpush1.bf16.msra.mxu0 %v4828
  %4923 = vmatprep.subr.bf16.mxu0 0
  %4924 = vmatpush1.bf16.msra.mxu0 %v4829
  %4925 = vmatprep.subr.bf16.mxu0 0
  %4926 = vmatpush1.bf16.msra.mxu0 %v4830
  %4927 = vmatprep.subr.bf16.mxu0 0
  %4928 = vmatpush1.bf16.msra.mxu0 %v4831
  %4929 = vmatprep.subr.bf16.mxu0 0
  %4930 = vmatpush1.bf16.msra.mxu0 %v4832
  %4931 = vmatprep.subr.bf16.mxu0 0
  %4932 = vmatpush1.bf16.msra.mxu0 %v4833
  %4933 = vmatprep.subr.bf16.mxu0 0
  %4934 = vmatpush1.bf16.msra.mxu0 %v4834
  %4935 = vmatprep.subr.bf16.mxu0 0
  %4936 = vmatpush1.bf16.msra.mxu0 %v4835
  %4937 = vmatprep.subr.bf16.mxu0 0
  %4938 = vmatpush1.bf16.msra.mxu0 %v4836
  %4939 = vmatprep.subr.bf16.mxu0 0
  %4940 = vmatpush1.bf16.msra.mxu0 %v4837
  %4941 = vmatprep.subr.bf16.mxu0 0
  %4942 = vmatpush1.bf16.msra.mxu0 %v4838
  %4943 = vmatprep.mubr.bf16.mxu0 %v4608
  %4944 = vmatmul.mubr.bf16.gmra.mrb[0].mxu0 %v4607
  %v4945 = vpop.f32.mrb[0].mxu0
  %v4946 = vadd.f32 %v4906, %v4945
  %v4947 = vpop.f32.mrb[0].mxu0
  %v4948 = vpop.f32.mrb[0].mxu0
  %v4949 = vpop.f32.mrb[0].mxu0
  %4950 = vdwg.mxu0
  %4951 = vst [vmem:[%s8] sm:$0xff] %v4946
  // Predicated region
  $region34: #{model1_forward.1} parent=0 // pred_check
    _
  $region35: #{model1_forward.1} parent=0 // pred_check_branch
    %4953 = sbr.rel (0) target = $region37
  $region36: #{model1_forward.1} parent=0 // pred_region
    _
  $region37: #{model1_forward.1} parent=0 // pred_fallthru
    _
  // Predicated region
  $region38: #{model1_forward.1} parent=0 // pred_check
    _
  $region39: #{model1_forward.1} parent=0 // pred_check_branch
    %4955 = sbr.rel (0) target = $region41
  $region40: #{model1_forward.1} parent=0 // pred_region
    _
  $region41: #{model1_forward.1} parent=0 // pred_fallthru
    _

</llo_original>
